<compile_context>
chip_gen: v7x
topology: tpu7x:2x2x1
jax: 0.10.0
libtpu: 0.0.40
codegen_flags: <defaults>
</compile_context>

<pallas_src>
import functools

import numpy as np
import jax
import jax.numpy as jnp
from jax import lax
from jax.experimental import pallas as pl
from jax.experimental.pallas import tpu as pltpu

# ------------------------- scaled-down, structure-preserving config ----------
BS = 2
IMG = 64                    # input_size
PATCH = 16
RES = IMG // PATCH          # eval_spatial_resolution = 4
D_MODEL = 128               # reference: 768
H1, H2, H3, PROJ = 256, 256, 128, 128   # reference mlp_head: 768->1024->1024->512->256
NUM_PROTOS = 16             # reference: 20
CROP_IMG = 96               # crop images -> 6x6 tokens (as in reference)
CROP_RES = CROP_IMG // PATCH            # 6
OUT_RES = 24                # reference: 96 (scaled down)
EPSILON = 0.05
SINKHORN_ITERS = 3
TEMP = 0.1
N_CROPS = 2
ROW_TILE = 128              # MLP row tile (keep grid >= 2 for v7x; 256-512 at ref scale)
CROP_ROW_TILE = 288         # rows of the OUT*OUT axis per kernel-3 step (512-1024 at ref scale)
VMEM_LIMIT = 32 * 1024 * 1024   # explicit scoped-VMEM budget, safe on v5e/v6e/v7x


def _gelu(x):
    # TODO(synk): torch.nn.GELU() default is the exact erf form; tanh approximation
    # is used here (erf has no reliable Mosaic lowering), max abs diff ~1e-3.
    return jax.nn.gelu(x, approximate=True)


# ---- kernel 1: fused 4-layer MLP head + normalize/score epilogue (row-tiled) ----
def _mlp_head_kernel(x_ref, w1_ref, b1_ref, w2_ref, b2_ref, w3_ref, b3_ref,
                     w4_ref, b4_ref, pT_ref, proj_ref, scr_ref):
    # bf16 operands on the MXU, f32 accumulation, GELU math in f32.
    h = jnp.dot(x_ref[...], w1_ref[...], preferred_element_type=jnp.float32) + b1_ref[...]
    h = _gelu(h).astype(jnp.bfloat16)
    h = jnp.dot(h, w2_ref[...], preferred_element_type=jnp.float32) + b2_ref[...]
    h = _gelu(h).astype(jnp.bfloat16)
    h = jnp.dot(h, w3_ref[...], preferred_element_type=jnp.float32) + b3_ref[...]
    h = _gelu(h).astype(jnp.bfloat16)
    h4 = jnp.dot(h, w4_ref[...], preferred_element_type=jnp.float32) + b4_ref[...]
    proj_ref[...] = h4
    # Fused epilogue (h4 still resident in vregs): rsqrt-normalize (EUP slot)
    # + prototype scores.  eps semantics match torch F.normalize (norm clamp 1e-12).
    sumsq = jnp.sum(h4 * h4, axis=-1, keepdims=True)
    xn = h4 * lax.rsqrt(jnp.maximum(sumsq, 1e-24))
    scr_ref[...] = jnp.dot(xn, pT_ref[...], preferred_element_type=jnp.float32)


def mlp_head_and_scores(x_bf16, mlp_params, protos_t, *, tm=ROW_TILE):
    """x_bf16: [N, D_MODEL] bf16 (N multiple of tm), protos_t: [PROJ, K] f32
    -> (proj [N, PROJ] f32, scores [N, K] f32)."""
    n, d = x_bf16.shape
    out_dim = mlp_params[-2].shape[1]
    k = protos_t.shape[1]
    in_specs = [pl.BlockSpec((tm, d), lambda i: (i, 0))]
    in_specs += [pl.BlockSpec(p.shape, lambda i: (0, 0)) for p in mlp_params]
    in_specs += [pl.BlockSpec(protos_t.shape, lambda i: (0, 0))]
    return pl.pallas_call(
        _mlp_head_kernel,
        out_shape=(jax.ShapeDtypeStruct((n, out_dim), jnp.float32),
                   jax.ShapeDtypeStruct((n, k), jnp.float32)),
        grid=(n // tm,),
        in_specs=in_specs,
        out_specs=(pl.BlockSpec((tm, out_dim), lambda i: (i, 0)),
                   pl.BlockSpec((tm, k), lambda i: (i, 0))),
        compiler_params=pltpu.CompilerParams(
            dimension_semantics=("parallel",),
            vmem_limit_bytes=VMEM_LIMIT),
    )(x_bf16, *mlp_params, protos_t)


# -------- kernel 2: img1 branch: Sinkhorn (tokens-on-lanes) -> argmax labels ----
def _sinkhorn_label_kernel(s_ref, lab_ref, *, epsilon, n_iters):
    # s_ref: [K, N] f32 = scores.T -> this IS the reference's Q = exp(scores/eps).t()
    s = s_ref[...]
    k, n = s.shape
    # Subtracting the global max before exp is exactly equivalent (cancels in
    # the sum normalization) and keeps exp(./epsilon) finite.
    # TODO(synk): reference detaches scores before Sinkhorn; forward-only here.
    a = jnp.exp((s - jnp.max(s)) / epsilon)
    a = a / jnp.sum(a)
    r = 1.0 / k                       # prototype marginal
    c = 1.0 / n                       # sample marginal (world_size = 1)
    tiny = 1e-30                      # guard: exp(./0.05) underflow -> zero rows/cols
    for _ in range(n_iters):
        u = jnp.sum(a, axis=1, keepdims=True)        # == Q.sum(dim=1), [K,1]
        a = a * (r / jnp.maximum(u, tiny))
        col = jnp.sum(a, axis=0, keepdims=True)      # == Q.sum(dim=0), [1,N]
        a = a * (c / jnp.maximum(col, tiny))
    # Reference's final per-column normalization is a positive per-token scale
    # -> cannot change the per-token argmax, so take argmax over K directly.
    m = jnp.max(a, axis=0, keepdims=True)
    idx = lax.broadcasted_iota(jnp.int32, a.shape, 0).astype(jnp.float32)
    lab = jnp.min(jnp.where(a == m, idx, float(k)), axis=0, keepdims=True)
    lab_ref[...] = lab.astype(jnp.int32)


def img1_pseudo_labels(scores_t):
    """scores_t: [K, N] f32 (tokens on lanes) -> [1, N] int32 pseudo-labels."""
    k, n = scores_t.shape
    kern = functools.partial(_sinkhorn_label_kernel, epsilon=EPSILON, n_iters=SINKHORN_ITERS)
    return pl.pallas_call(
        kern,
        out_shape=jax.ShapeDtypeStruct((1, n), jnp.int32),
        grid=(1,),
        in_specs=[pl.BlockSpec((k, n), lambda i: (0, 0))],
        out_specs=pl.BlockSpec((1, n), lambda i: (0, 0)),
    )(scores_t)


# --- kernel 3: crop branch (Gram refactor): resize+normalize+score -> CE sums ---
def _crop_loss_kernel(f_ref, m_ref, pT_ref, tgt_ref, o_ref, s36_ref, gram_ref,
                      *, inv_temp):
    r = pl.program_id(1)

    @pl.when(r == 0)
    def _():
        f = f_ref[0]                                                   # [36, PROJ]
        # once per crop-batch: prototype scores of the 36 raw tokens and Gram matrix
        s36_ref[...] = jnp.dot(f, pT_ref[...], preferred_element_type=jnp.float32)
        gram_ref[...] = lax.dot_general(f, f, (((1,), (1,)), ((), ())),
                                        preferred_element_type=jnp.float32)
        o_ref[...] = jnp.zeros_like(o_ref)                             # accumulator init

    # F.interpolate(bilinear, align_corners=False) folded into a precomputed
    # [OUT*OUT, 36] interpolation matrix; with the Gram refactor the
    # [tile, PROJ] resized features are never materialized:
    #   logits = normalize(M@F) @ protos_t = (M @ S36) * rsqrt(rowsum((M@G) * M))
    m = m_ref[...]                                                     # [TR, 36]
    logits_num = jnp.dot(m, s36_ref[...], preferred_element_type=jnp.float32)   # [TR, K]
    mg = jnp.dot(m, gram_ref[...], preferred_element_type=jnp.float32)          # [TR, 36]
    sumsq = jnp.sum(mg * m, axis=-1, keepdims=True)                             # [TR, 1]
    inv_norm = lax.rsqrt(jnp.maximum(sumsq, 1e-24))    # == / max(||.||, 1e-12)
    logits = logits_num * (inv_norm * inv_temp)

    t = tgt_ref[0]                                                     # [TR, 1] int32
    mx = jnp.max(logits, axis=-1, keepdims=True)
    lse = mx + jnp.log(jnp.sum(jnp.exp(logits - mx), axis=-1, keepdims=True))
    cls = lax.broadcasted_iota(jnp.int32, logits.shape, 1)
    picked = jnp.sum(jnp.where(cls == t, logits, 0.0), axis=-1, keepdims=True)
    partial = jnp.sum(lse - picked)                                    # scalar
    o_ref[...] = o_ref[...] + partial                                  # resident accumulator


def crop_clustering_partials(proj_crops, m_resize, protos_t, targets, *, tr=CROP_ROW_TILE):
    """proj_crops: [G, 36, PROJ] f32, m_resize: [OUT*OUT, 36] f32,
    protos_t: [PROJ, K] f32 (normalized), targets: [G, OUT*OUT, 1] int32
    -> [G, 1, 128] per-(crop,batch) CE partial sums (value broadcast over lanes)."""
    g, t_in, d = proj_crops.shape
    out_rows = m_resize.shape[0]
    k = protos_t.shape[1]
    kern = functools.partial(_crop_loss_kernel, inv_temp=1.0 / TEMP)
    return pl.pallas_call(
        kern,
        out_shape=jax.ShapeDtypeStruct((g, 1, 128), jnp.float32),
        grid=(g, out_rows // tr),
        in_specs=[pl.BlockSpec((1, t_in, d), lambda i, r: (i, 0, 0)),
                  pl.BlockSpec((tr, t_in), lambda i, r: (r, 0)),
                  pl.BlockSpec((d, k), lambda i, r: (0, 0)),
                  pl.BlockSpec((1, tr, 1), lambda i, r: (i, r, 0))],
        out_specs=pl.BlockSpec((1, 1, 128), lambda i, r: (i, 0, 0)),
        scratch_shapes=[pltpu.VMEM((t_in, k), jnp.float32),      # S36 per crop-batch
                        pltpu.VMEM((t_in, t_in), jnp.float32)],  # Gram per crop-batch
        compiler_params=pltpu.CompilerParams(
            dimension_semantics=("parallel", "arbitrary"),
            vmem_limit_bytes=VMEM_LIMIT),
    )(proj_crops, m_resize, protos_t, targets)


# --------------------------------- glue (JAX) ---------------------------------
def backbone_stub(imgs_nchw, w_embed):
    # TODO(synk): the real FeatureExtractor wraps a frozen ViT backbone; replaced
    # with a deterministic linear patch embedding (patchify + projection).
    b, c, h, w = imgs_nchw.shape
    p = PATCH
    x = imgs_nchw.reshape(b, c, h // p, p, w // p, p)
    x = x.transpose(0, 2, 4, 1, 3, 5).reshape(b, (h // p) * (w // p), c * p * p)
    return jnp.einsum('btd,de->bte', x, w_embed)


def nearest_resize(x, out_h, out_w):
    # matches F.interpolate(mode='nearest'): src = floor(dst * in / out)
    b, h, w = x.shape
    ri = (jnp.arange(out_h) * h) // out_h
    ci = (jnp.arange(out_w) * w) // out_w
    return x[:, ri][:, :, ci]


def _bilinear_matrix(out_len, in_len):
    # per-axis weights for F.interpolate(mode='bilinear', align_corners=False)
    R = np.zeros((out_len, in_len), np.float32)
    scale = in_len / out_len
    for o in range(out_len):
        src = max((o + 0.5) * scale - 0.5, 0.0)
        lo = min(int(np.floor(src)), in_len - 1)
        hi = min(lo + 1, in_len - 1)
        frac = src - lo
        R[o, lo] += 1.0 - frac
        R[o, hi] += frac
    return R


# [OUT_RES*OUT_RES, CROP_RES*CROP_RES] separable bilinear-resize matrix.
M_RESIZE = np.kron(_bilinear_matrix(OUT_RES, CROP_RES),
                   _bilinear_matrix(OUT_RES, CROP_RES)).astype(np.float32)


def saliency_from_bbox(bb, img_h, img_w, patch):
    # host-side index logic (bbox values determine shapes, as in the reference)
    x0, y0, x1, y1 = (int(v) for v in bb)
    crop = np.zeros((img_h, img_w), np.float32)
    crop[y0:y1, x0:x1] = 1.0
    ph, pw = img_h // patch, img_w // patch
    patch_sum = crop.reshape(ph, patch, pw, patch).transpose(0, 2, 1, 3).reshape(ph, pw, -1).sum(-1)
    idx = np.flatnonzero(patch_sum > 0)
    sh, sw = (y1 - y0) // patch, (x1 - x0) // patch
    return idx.reshape(sh, sw).astype(np.int32)


# ------------------------------- jitted forward --------------------------------
def _forward_impl(params, imgs1, crops, sal_list, m_resize):
    # crops: [n_crops, bs, 3, CROP_IMG, CROP_IMG]; sal_list: tuple of [sh, sw] int32
    n_crops, bs = crops.shape[0], crops.shape[1]

    # normalize_prototypes() once (rsqrt, same eps semantics as F.normalize), pre-transposed.
    protos = params['prototypes']
    protos = protos * lax.rsqrt(jnp.maximum(
        jnp.sum(protos * protos, axis=1, keepdims=True), 1e-24))
    protos_t = protos.T                                           # [PROJ, K] f32

    # bf16 MLP weights (halves weight DMA, doubles MXU rate); biases stay f32.
    w1, b1, w2, b2, w3, b3, w4, b4 = params['mlp']
    mlp_bf16 = (w1.astype(jnp.bfloat16), b1, w2.astype(jnp.bfloat16), b2,
                w3.astype(jnp.bfloat16), b3, w4.astype(jnp.bfloat16), b4)

    # patch-embed everything
    img1_tokens = backbone_stub(imgs1, params['w_embed'])                          # [bs, 16, D]
    crop_tokens = backbone_stub(
        crops.reshape(n_crops * bs, 3, CROP_IMG, CROP_IMG), params['w_embed'])     # [n_crops*bs, 36, D]

    # one batched mlp_head (+ fused normalize/score epilogue) over all token sets
    n_crop_rows = n_crops * bs * CROP_RES * CROP_RES
    n_img_rows = bs * RES * RES
    n_total = n_crop_rows + n_img_rows
    x_all = jnp.concatenate([crop_tokens.reshape(-1, D_MODEL),
                             img1_tokens.reshape(-1, D_MODEL)], axis=0)
    n_pad = pl.cdiv(n_total, ROW_TILE) * ROW_TILE
    x_all = jnp.pad(x_all, ((0, n_pad - n_total), (0, 0))).astype(jnp.bfloat16)
    proj_all, scores_all = mlp_head_and_scores(x_all, mlp_bf16, protos_t)
    proj_crops = proj_all[:n_crop_rows].reshape(n_crops * bs, CROP_RES * CROP_RES, PROJ)

    # loop-invariant img1 branch (hoisted): Sinkhorn + argmax on the [K, N] layout.
    scores_img_t = scores_all[n_crop_rows:n_total].T                              # [K, bs*16]
    labels = img1_pseudo_labels(scores_img_t)                                     # [1, bs*16] int32
    q_flat = labels.reshape(bs, RES * RES)

    # CE targets for every (crop, batch): gather by saliency + nearest resize (tiny int ops)
    tgt_list = []
    for i in range(n_crops):
        sal_idx = sal_list[i]
        sh, sw = sal_idx.shape
        cropped_q = q_flat[:, sal_idx.reshape(-1)].reshape(bs, sh, sw)
        resized = nearest_resize(cropped_q, OUT_RES, OUT_RES)                      # [bs, OUT, OUT]
        tgt_list.append(resized.reshape(bs, OUT_RES * OUT_RES))
    targets = jnp.concatenate(tgt_list, axis=0)[..., None].astype(jnp.int32)       # [G, OUT*OUT, 1]

    # fused crop branch: Gram-form resize/normalize/score -> /temp -> CE sums
    partials = crop_clustering_partials(proj_crops, m_resize, protos_t, targets)   # [G, 1, 128]
    total = jnp.sum(partials[:, 0, 0])
    # per-crop CE mean uses the same denominator bs*OUT*OUT; average over crops.
    return total / (bs * OUT_RES * OUT_RES) / n_crops


_forward_jit = jax.jit(_forward_impl)


def dense_tuning_forward(params, imgs1, crop_list, bboxs_np):
    patch_size = imgs1.shape[-1] // RES
    # Only the last sample's bbox survives the reference's inner bbox loop
    # (the per-sample cropped_labels it builds are dead code).
    sal_list = tuple(
        jnp.asarray(saliency_from_bbox(bboxs_np[-1, i], imgs1.shape[-2], imgs1.shape[-1], patch_size))
        for i in range(len(crop_list)))
    crops = jnp.stack(crop_list, axis=0)                     # [n_crops, bs, 3, H, W]
    return _forward_jit(params, imgs1, crops, sal_list, jnp.asarray(M_RESIZE))


# ---------------------------------- params -------------------------------------
def init_params(key):
    ks = jax.random.split(key, 6)

    def lin(k, fan_in, fan_out):
        kw, kb = jax.random.split(k)
        bound = 1.0 / np.sqrt(fan_in)
        w = jax.random.uniform(kw, (fan_in, fan_out), jnp.float32, -bound, bound)
        b = jax.random.uniform(kb, (1, fan_out), jnp.float32, -bound, bound)
        return w, b

    w1, b1 = lin(ks[0], D_MODEL, H1)
    w2, b2 = lin(ks[1], H1, H2)
    w3, b3 = lin(ks[2], H2, H3)
    w4, b4 = lin(ks[3], H3, PROJ)
    w_embed = jax.random.normal(ks[4], (3 * PATCH * PATCH, D_MODEL), jnp.float32) * 0.02
    prototypes = jax.random.normal(ks[5], (NUM_PROTOS, PROJ), jnp.float32)
    return {'mlp': (w1, b1, w2, b2, w3, b3, w4, b4),
            'w_embed': w_embed,
            'prototypes': prototypes}


if __name__ == "__main__":
    key = jax.random.PRNGKey(0)
    kp, k1, k2, k3 = jax.random.split(key, 4)
    params = init_params(kp)

    imgs1 = jax.random.uniform(k1, (BS, 3, IMG, IMG), jnp.float32)
    crop_list = [jax.random.uniform(k2, (BS, 3, CROP_IMG, CROP_IMG), jnp.float32),
                 jax.random.uniform(k3, (BS, 3, CROP_IMG, CROP_IMG), jnp.float32)]
    # bboxes aligned to the 16-pixel patch grid: (x0, y0, x1, y1); shape [BS, N_CROPS, 4]
    bboxs = np.array([
        [[0, 0, 32, 32], [16, 0, 64, 48]],
        [[16, 16, 48, 48], [0, 16, 48, 64]],
    ], dtype=np.int64)

    loss = dense_tuning_forward(params, imgs1, crop_list, bboxs)
    loss = jax.block_until_ready(loss)
    assert np.isfinite(float(loss))
    print("KERNEL_OK")
</pallas_src>

<mosaic_0001>
module attributes {stable_mosaic.version = 11 : i64} {
  func.func @_mlp_head_kernel(%arg0: i32, %arg1: memref<128x128xbf16, #tpu.memory_space<vmem>>, %arg2: memref<128x256xbf16, #tpu.memory_space<vmem>>, %arg3: memref<1x256xf32, #tpu.memory_space<vmem>>, %arg4: memref<256x256xbf16, #tpu.memory_space<vmem>>, %arg5: memref<1x256xf32, #tpu.memory_space<vmem>>, %arg6: memref<256x128xbf16, #tpu.memory_space<vmem>>, %arg7: memref<1x128xf32, #tpu.memory_space<vmem>>, %arg8: memref<128x128xbf16, #tpu.memory_space<vmem>>, %arg9: memref<1x128xf32, #tpu.memory_space<vmem>>, %arg10: memref<128x16xf32, #tpu.memory_space<vmem>>, %arg11: memref<128x128xf32, #tpu.memory_space<vmem>>, %arg12: memref<128x16xf32, #tpu.memory_space<vmem>>) attributes {dimension_semantics = [#tpu.dimension_semantics<parallel>], iteration_bounds = array<i64: 2>, scalar_prefetch = 0 : i64, scratch_operands = 0 : i64, tpu.core_type = #tpu.core_type<tc>, window_params = [{transform_indices = @transform_0, window_bounds = array<i64: 128, 128>}, {pipeline_mode = #tpu.pipeline_mode<synchronous>, transform_indices = @transform_1, window_bounds = array<i64: 128, 256>}, {pipeline_mode = #tpu.pipeline_mode<synchronous>, transform_indices = @transform_2, window_bounds = array<i64: 1, 256>}, {pipeline_mode = #tpu.pipeline_mode<synchronous>, transform_indices = @transform_3, window_bounds = array<i64: 256, 256>}, {pipeline_mode = #tpu.pipeline_mode<synchronous>, transform_indices = @transform_4, window_bounds = array<i64: 1, 256>}, {pipeline_mode = #tpu.pipeline_mode<synchronous>, transform_indices = @transform_5, window_bounds = array<i64: 256, 128>}, {pipeline_mode = #tpu.pipeline_mode<synchronous>, transform_indices = @transform_6, window_bounds = array<i64: 1, 128>}, {pipeline_mode = #tpu.pipeline_mode<synchronous>, transform_indices = @transform_7, window_bounds = array<i64: 128, 128>}, {pipeline_mode = #tpu.pipeline_mode<synchronous>, transform_indices = @transform_8, window_bounds = array<i64: 1, 128>}, {pipeline_mode = #tpu.pipeline_mode<synchronous>, transform_indices = @transform_9, window_bounds = array<i64: 128, 16>}, {transform_indices = @transform_10, window_bounds = array<i64: 128, 128>}, {transform_indices = @transform_11, window_bounds = array<i64: 128, 16>}]} {
    %c0 = arith.constant 0 : index
    %c0_0 = arith.constant 0 : index
    %0 = vector.load %arg1[%c0, %c0_0] : memref<128x128xbf16, #tpu.memory_space<vmem>>, vector<128x128xbf16>
    %c0_1 = arith.constant 0 : index
    %c0_2 = arith.constant 0 : index
    %1 = vector.load %arg2[%c0_1, %c0_2] : memref<128x256xbf16, #tpu.memory_space<vmem>>, vector<128x256xbf16>
    %cst = arith.constant dense<0.000000e+00> : vector<128x256xf32>
    %2 = tpu.matmul %0, %1, %cst {dimension_numbers = #tpu.dot_dimension_numbers<[1], [0], [0], [1], [0, 0, 1, 1], [], []>} : vector<128x128xbf16>, vector<128x256xbf16>, vector<128x256xf32> -> vector<128x256xf32>
    %c0_3 = arith.constant 0 : index
    %c0_4 = arith.constant 0 : index
    %3 = vector.load %arg3[%c0_3, %c0_4] : memref<1x256xf32, #tpu.memory_space<vmem>>, vector<1x256xf32>
    %4 = vector.broadcast %3 : vector<1x256xf32> to vector<128x256xf32>
    %5 = arith.addf %2, %4 : vector<128x256xf32>
    %6 = arith.mulf %5, %5 : vector<128x256xf32>
    %7 = arith.mulf %5, %6 : vector<128x256xf32>
    %cst_5 = arith.constant 4.471500e-02 : f32
    %8 = vector.broadcast %cst_5 : f32 to vector<128x256xf32>
    %9 = arith.mulf %8, %7 : vector<128x256xf32>
    %10 = arith.addf %5, %9 : vector<128x256xf32>
    %cst_6 = arith.constant 0.797884583 : f32
    %11 = vector.broadcast %cst_6 : f32 to vector<128x256xf32>
    %12 = arith.mulf %11, %10 : vector<128x256xf32>
    %13 = math.tanh %12 : vector<128x256xf32>
    %cst_7 = arith.constant 1.000000e+00 : f32
    %14 = vector.broadcast %cst_7 : f32 to vector<128x256xf32>
    %15 = arith.addf %14, %13 : vector<128x256xf32>
    %cst_8 = arith.constant 5.000000e-01 : f32
    %16 = vector.broadcast %cst_8 : f32 to vector<128x256xf32>
    %17 = arith.mulf %16, %15 : vector<128x256xf32>
    %18 = arith.mulf %5, %17 : vector<128x256xf32>
    %19 = arith.truncf %18 : vector<128x256xf32> to vector<128x256xbf16>
    %c0_9 = arith.constant 0 : index
    %c0_10 = arith.constant 0 : index
    %20 = vector.load %arg4[%c0_9, %c0_10] : memref<256x256xbf16, #tpu.memory_space<vmem>>, vector<256x256xbf16>
    %cst_11 = arith.constant dense<0.000000e+00> : vector<128x256xf32>
    %21 = tpu.matmul %19, %20, %cst_11 {dimension_numbers = #tpu.dot_dimension_numbers<[1], [0], [0], [1], [0, 0, 1, 1], [], []>} : vector<128x256xbf16>, vector<256x256xbf16>, vector<128x256xf32> -> vector<128x256xf32>
    %c0_12 = arith.constant 0 : index
    %c0_13 = arith.constant 0 : index
    %22 = vector.load %arg5[%c0_12, %c0_13] : memref<1x256xf32, #tpu.memory_space<vmem>>, vector<1x256xf32>
    %23 = vector.broadcast %22 : vector<1x256xf32> to vector<128x256xf32>
    %24 = arith.addf %21, %23 : vector<128x256xf32>
    %25 = arith.mulf %24, %24 : vector<128x256xf32>
    %26 = arith.mulf %24, %25 : vector<128x256xf32>
    %cst_14 = arith.constant 4.471500e-02 : f32
    %27 = vector.broadcast %cst_14 : f32 to vector<128x256xf32>
    %28 = arith.mulf %27, %26 : vector<128x256xf32>
    %29 = arith.addf %24, %28 : vector<128x256xf32>
    %cst_15 = arith.constant 0.797884583 : f32
    %30 = vector.broadcast %cst_15 : f32 to vector<128x256xf32>
    %31 = arith.mulf %30, %29 : vector<128x256xf32>
    %32 = math.tanh %31 : vector<128x256xf32>
    %cst_16 = arith.constant 1.000000e+00 : f32
    %33 = vector.broadcast %cst_16 : f32 to vector<128x256xf32>
    %34 = arith.addf %33, %32 : vector<128x256xf32>
    %cst_17 = arith.constant 5.000000e-01 : f32
    %35 = vector.broadcast %cst_17 : f32 to vector<128x256xf32>
    %36 = arith.mulf %35, %34 : vector<128x256xf32>
    %37 = arith.mulf %24, %36 : vector<128x256xf32>
    %38 = arith.truncf %37 : vector<128x256xf32> to vector<128x256xbf16>
    %c0_18 = arith.constant 0 : index
    %c0_19 = arith.constant 0 : index
    %39 = vector.load %arg6[%c0_18, %c0_19] : memref<256x128xbf16, #tpu.memory_space<vmem>>, vector<256x128xbf16>
    %cst_20 = arith.constant dense<0.000000e+00> : vector<128x128xf32>
    %40 = tpu.matmul %38, %39, %cst_20 {dimension_numbers = #tpu.dot_dimension_numbers<[1], [0], [0], [1], [0, 0, 1, 1], [], []>} : vector<128x256xbf16>, vector<256x128xbf16>, vector<128x128xf32> -> vector<128x128xf32>
    %c0_21 = arith.constant 0 : index
    %c0_22 = arith.constant 0 : index
    %41 = vector.load %arg7[%c0_21, %c0_22] : memref<1x128xf32, #tpu.memory_space<vmem>>, vector<1x128xf32>
    %42 = vector.broadcast %41 : vector<1x128xf32> to vector<128x128xf32>
    %43 = arith.addf %40, %42 : vector<128x128xf32>
    %44 = arith.mulf %43, %43 : vector<128x128xf32>
    %45 = arith.mulf %43, %44 : vector<128x128xf32>
    %cst_23 = arith.constant 4.471500e-02 : f32
    %46 = vector.broadcast %cst_23 : f32 to vector<128x128xf32>
    %47 = arith.mulf %46, %45 : vector<128x128xf32>
    %48 = arith.addf %43, %47 : vector<128x128xf32>
    %cst_24 = arith.constant 0.797884583 : f32
    %49 = vector.broadcast %cst_24 : f32 to vector<128x128xf32>
    %50 = arith.mulf %49, %48 : vector<128x128xf32>
    %51 = math.tanh %50 : vector<128x128xf32>
    %cst_25 = arith.constant 1.000000e+00 : f32
    %52 = vector.broadcast %cst_25 : f32 to vector<128x128xf32>
    %53 = arith.addf %52, %51 : vector<128x128xf32>
    %cst_26 = arith.constant 5.000000e-01 : f32
    %54 = vector.broadcast %cst_26 : f32 to vector<128x128xf32>
    %55 = arith.mulf %54, %53 : vector<128x128xf32>
    %56 = arith.mulf %43, %55 : vector<128x128xf32>
    %57 = arith.truncf %56 : vector<128x128xf32> to vector<128x128xbf16>
    %c0_27 = arith.constant 0 : index
    %c0_28 = arith.constant 0 : index
    %58 = vector.load %arg8[%c0_27, %c0_28] : memref<128x128xbf16, #tpu.memory_space<vmem>>, vector<128x128xbf16>
    %cst_29 = arith.constant dense<0.000000e+00> : vector<128x128xf32>
    %59 = tpu.matmul %57, %58, %cst_29 {dimension_numbers = #tpu.dot_dimension_numbers<[1], [0], [0], [1], [0, 0, 1, 1], [], []>} : vector<128x128xbf16>, vector<128x128xbf16>, vector<128x128xf32> -> vector<128x128xf32>
    %c0_30 = arith.constant 0 : index
    %c0_31 = arith.constant 0 : index
    %60 = vector.load %arg9[%c0_30, %c0_31] : memref<1x128xf32, #tpu.memory_space<vmem>>, vector<1x128xf32>
    %61 = vector.broadcast %60 : vector<1x128xf32> to vector<128x128xf32>
    %62 = arith.addf %59, %61 : vector<128x128xf32>
    %c0_32 = arith.constant 0 : index
    %c0_33 = arith.constant 0 : index
    %63 = vector.load %arg11[%c0_32, %c0_33] : memref<128x128xf32, #tpu.memory_space<vmem>>, vector<128x128xf32>
    tpu.vector_store %arg11[%c0_32, %c0_33], %62 {strides = array<i32>} : memref<128x128xf32, #tpu.memory_space<vmem>>, vector<128x128xf32>,
    %64 = arith.mulf %62, %62 : vector<128x128xf32>
    %cst_34 = arith.constant dense<0.000000e+00> : vector<128xf32>
    %65 = vector.multi_reduction <add>, %64, %cst_34 [1] : vector<128x128xf32> to vector<128xf32>
    %66 = vector.shape_cast %65 : vector<128xf32> to vector<128x1xf32>
    %cst_35 = arith.constant 1.000000e-24 : f32
    %67 = vector.broadcast %cst_35 : f32 to vector<128x1xf32>
    %68 = arith.maximumf %66, %67 : vector<128x1xf32>
    %69 = math.rsqrt %68 : vector<128x1xf32>
    %70 = vector.broadcast %69 : vector<128x1xf32> to vector<128x128xf32>
    %71 = arith.mulf %62, %70 : vector<128x128xf32>
    %c0_36 = arith.constant 0 : index
    %c0_37 = arith.constant 0 : index
    %72 = vector.load %arg10[%c0_36, %c0_37] : memref<128x16xf32, #tpu.memory_space<vmem>>, vector<128x16xf32>
    %cst_38 = arith.constant dense<0.000000e+00> : vector<128x16xf32>
    %73 = tpu.matmul %71, %72, %cst_38 {dimension_numbers = #tpu.dot_dimension_numbers<[1], [0], [0], [1], [0, 0, 1, 1], [], []>} : vector<128x128xf32>, vector<128x16xf32>, vector<128x16xf32> -> vector<128x16xf32>
    %c0_39 = arith.constant 0 : index
    %c0_40 = arith.constant 0 : index
    %74 = vector.load %arg12[%c0_39, %c0_40] : memref<128x16xf32, #tpu.memory_space<vmem>>, vector<128x16xf32>
    tpu.vector_store %arg12[%c0_39, %c0_40], %73 {strides = array<i32>} : memref<128x16xf32, #tpu.memory_space<vmem>>, vector<128x16xf32>,
    return
  }
  func.func @transform_0(%arg0: i32) -> (i32, i32) {
    %c0_i32 = arith.constant 0 : i32
    %c0_i32_0 = arith.constant 0 : i32
    return %arg0, %c0_i32 : i32, i32
  }
  func.func @transform_1(%arg0: i32) -> (i32, i32) {
    %c0_i32 = arith.constant 0 : i32
    %c0_i32_0 = arith.constant 0 : i32
    %c0_i32_1 = arith.constant 0 : i32
    return %c0_i32, %c0_i32_0 : i32, i32
  }
  func.func @transform_2(%arg0: i32) -> (i32, i32) {
    %c0_i32 = arith.constant 0 : i32
    %c0_i32_0 = arith.constant 0 : i32
    %c0_i32_1 = arith.constant 0 : i32
    return %c0_i32, %c0_i32_0 : i32, i32
  }
  func.func @transform_3(%arg0: i32) -> (i32, i32) {
    %c0_i32 = arith.constant 0 : i32
    %c0_i32_0 = arith.constant 0 : i32
    %c0_i32_1 = arith.constant 0 : i32
    return %c0_i32, %c0_i32_0 : i32, i32
  }
  func.func @transform_4(%arg0: i32) -> (i32, i32) {
    %c0_i32 = arith.constant 0 : i32
    %c0_i32_0 = arith.constant 0 : i32
    %c0_i32_1 = arith.constant 0 : i32
    return %c0_i32, %c0_i32_0 : i32, i32
  }
  func.func @transform_5(%arg0: i32) -> (i32, i32) {
    %c0_i32 = arith.constant 0 : i32
    %c0_i32_0 = arith.constant 0 : i32
    %c0_i32_1 = arith.constant 0 : i32
    return %c0_i32, %c0_i32_0 : i32, i32
  }
  func.func @transform_6(%arg0: i32) -> (i32, i32) {
    %c0_i32 = arith.constant 0 : i32
    %c0_i32_0 = arith.constant 0 : i32
    %c0_i32_1 = arith.constant 0 : i32
    return %c0_i32, %c0_i32_0 : i32, i32
  }
  func.func @transform_7(%arg0: i32) -> (i32, i32) {
    %c0_i32 = arith.constant 0 : i32
    %c0_i32_0 = arith.constant 0 : i32
    %c0_i32_1 = arith.constant 0 : i32
    return %c0_i32, %c0_i32_0 : i32, i32
  }
  func.func @transform_8(%arg0: i32) -> (i32, i32) {
    %c0_i32 = arith.constant 0 : i32
    %c0_i32_0 = arith.constant 0 : i32
    %c0_i32_1 = arith.constant 0 : i32
    return %c0_i32, %c0_i32_0 : i32, i32
  }
  func.func @transform_9(%arg0: i32) -> (i32, i32) {
    %c0_i32 = arith.constant 0 : i32
    %c0_i32_0 = arith.constant 0 : i32
    %c0_i32_1 = arith.constant 0 : i32
    return %c0_i32, %c0_i32_0 : i32, i32
  }
  func.func @transform_10(%arg0: i32) -> (i32, i32) {
    %c0_i32 = arith.constant 0 : i32
    %c0_i32_0 = arith.constant 0 : i32
    return %arg0, %c0_i32 : i32, i32
  }
  func.func @transform_11(%arg0: i32) -> (i32, i32) {
    %c0_i32 = arith.constant 0 : i32
    %c0_i32_0 = arith.constant 0 : i32
    return %arg0, %c0_i32 : i32, i32
  }
}

module attributes {stable_mosaic.version = 11 : i64} {
  func.func @_sinkhorn_label_kernel(%arg0: i32, %arg1: memref<16x32xf32, #tpu.memory_space<vmem>>, %arg2: memref<1x32xi32, #tpu.memory_space<vmem>>) attributes {dimension_semantics = [#tpu.dimension_semantics<arbitrary>], iteration_bounds = array<i64: 1>, scalar_prefetch = 0 : i64, scratch_operands = 0 : i64, tpu.core_type = #tpu.core_type<tc>, window_params = [{pipeline_mode = #tpu.pipeline_mode<synchronous>, transform_indices = @transform_0, window_bounds = array<i64: 16, 32>}, {pipeline_mode = #tpu.pipeline_mode<synchronous>, transform_indices = @transform_1, window_bounds = array<i64: 1, 32>}]} {
    %c0 = arith.constant 0 : index
    %c0_0 = arith.constant 0 : index
    %0 = vector.load %arg1[%c0, %c0_0] : memref<16x32xf32, #tpu.memory_space<vmem>>, vector<16x32xf32>
    %1 = vector.shape_cast %0 : vector<16x32xf32> to vector<1x16x32xf32>
    %cst = arith.constant dense<0xFF800000> : vector<1xf32>
    %2 = vector.multi_reduction <maximumf>, %1, %cst [1, 2] : vector<1x16x32xf32> to vector<1xf32>
    %3 = vector.shape_cast %2 : vector<1xf32> to vector<1x1x1xf32>
    %4 = vector.extract %3[0, 0, 0] : f32 from vector<1x1x1xf32>
    %5 = vector.broadcast %4 : f32 to vector<16x32xf32>
    %6 = arith.subf %0, %5 : vector<16x32xf32>
    %cst_1 = arith.constant 5.000000e-02 : f32
    %7 = vector.broadcast %cst_1 : f32 to vector<16x32xf32>
    %8 = arith.divf %6, %7 : vector<16x32xf32>
    %9 = math.exp %8 : vector<16x32xf32>
    %10 = vector.shape_cast %9 : vector<16x32xf32> to vector<1x16x32xf32>
    %cst_2 = arith.constant dense<0.000000e+00> : vector<1xf32>
    %11 = vector.multi_reduction <add>, %10, %cst_2 [1, 2] : vector<1x16x32xf32> to vector<1xf32>
    %12 = vector.shape_cast %11 : vector<1xf32> to vector<1x1x1xf32>
    %13 = vector.extract %12[0, 0, 0] : f32 from vector<1x1x1xf32>
    %14 = vector.broadcast %13 : f32 to vector<16x32xf32>
    %15 = arith.divf %9, %14 : vector<16x32xf32>
    %cst_3 = arith.constant dense<0.000000e+00> : vector<16xf32>
    %16 = vector.multi_reduction <add>, %15, %cst_3 [1] : vector<16x32xf32> to vector<16xf32>
    %17 = vector.shape_cast %16 : vector<16xf32> to vector<16x1xf32>
    %cst_4 = arith.constant 1.000000e-30 : f32
    %18 = vector.broadcast %cst_4 : f32 to vector<16x1xf32>
    %19 = arith.maximumf %17, %18 : vector<16x1xf32>
    %cst_5 = arith.constant 6.250000e-02 : f32
    %20 = vector.broadcast %cst_5 : f32 to vector<16x1xf32>
    %21 = arith.divf %20, %19 : vector<16x1xf32>
    %22 = vector.broadcast %21 : vector<16x1xf32> to vector<16x32xf32>
    %23 = arith.mulf %15, %22 : vector<16x32xf32>
    %cst_6 = arith.constant dense<0.000000e+00> : vector<32xf32>
    %24 = vector.multi_reduction <add>, %23, %cst_6 [0] : vector<16x32xf32> to vector<32xf32>
    %25 = vector.shape_cast %24 : vector<32xf32> to vector<1x32xf32>
    %cst_7 = arith.constant 1.000000e-30 : f32
    %26 = vector.broadcast %cst_7 : f32 to vector<1x32xf32>
    %27 = arith.maximumf %25, %26 : vector<1x32xf32>
    %cst_8 = arith.constant 3.125000e-02 : f32
    %28 = vector.broadcast %cst_8 : f32 to vector<1x32xf32>
    %29 = arith.divf %28, %27 : vector<1x32xf32>
    %30 = vector.broadcast %29 : vector<1x32xf32> to vector<16x32xf32>
    %31 = arith.mulf %23, %30 : vector<16x32xf32>
    %cst_9 = arith.constant dense<0.000000e+00> : vector<16xf32>
    %32 = vector.multi_reduction <add>, %31, %cst_9 [1] : vector<16x32xf32> to vector<16xf32>
    %33 = vector.shape_cast %32 : vector<16xf32> to vector<16x1xf32>
    %cst_10 = arith.constant 1.000000e-30 : f32
    %34 = vector.broadcast %cst_10 : f32 to vector<16x1xf32>
    %35 = arith.maximumf %33, %34 : vector<16x1xf32>
    %cst_11 = arith.constant 6.250000e-02 : f32
    %36 = vector.broadcast %cst_11 : f32 to vector<16x1xf32>
    %37 = arith.divf %36, %35 : vector<16x1xf32>
    %38 = vector.broadcast %37 : vector<16x1xf32> to vector<16x32xf32>
    %39 = arith.mulf %31, %38 : vector<16x32xf32>
    %cst_12 = arith.constant dense<0.000000e+00> : vector<32xf32>
    %40 = vector.multi_reduction <add>, %39, %cst_12 [0] : vector<16x32xf32> to vector<32xf32>
    %41 = vector.shape_cast %40 : vector<32xf32> to vector<1x32xf32>
    %cst_13 = arith.constant 1.000000e-30 : f32
    %42 = vector.broadcast %cst_13 : f32 to vector<1x32xf32>
    %43 = arith.maximumf %41, %42 : vector<1x32xf32>
    %cst_14 = arith.constant 3.125000e-02 : f32
    %44 = vector.broadcast %cst_14 : f32 to vector<1x32xf32>
    %45 = arith.divf %44, %43 : vector<1x32xf32>
    %46 = vector.broadcast %45 : vector<1x32xf32> to vector<16x32xf32>
    %47 = arith.mulf %39, %46 : vector<16x32xf32>
    %cst_15 = arith.constant dense<0.000000e+00> : vector<16xf32>
    %48 = vector.multi_reduction <add>, %47, %cst_15 [1] : vector<16x32xf32> to vector<16xf32>
    %49 = vector.shape_cast %48 : vector<16xf32> to vector<16x1xf32>
    %cst_16 = arith.constant 1.000000e-30 : f32
    %50 = vector.broadcast %cst_16 : f32 to vector<16x1xf32>
    %51 = arith.maximumf %49, %50 : vector<16x1xf32>
    %cst_17 = arith.constant 6.250000e-02 : f32
    %52 = vector.broadcast %cst_17 : f32 to vector<16x1xf32>
    %53 = arith.divf %52, %51 : vector<16x1xf32>
    %54 = vector.broadcast %53 : vector<16x1xf32> to vector<16x32xf32>
    %55 = arith.mulf %47, %54 : vector<16x32xf32>
    %cst_18 = arith.constant dense<0.000000e+00> : vector<32xf32>
    %56 = vector.multi_reduction <add>, %55, %cst_18 [0] : vector<16x32xf32> to vector<32xf32>
    %57 = vector.shape_cast %56 : vector<32xf32> to vector<1x32xf32>
    %cst_19 = arith.constant 1.000000e-30 : f32
    %58 = vector.broadcast %cst_19 : f32 to vector<1x32xf32>
    %59 = arith.maximumf %57, %58 : vector<1x32xf32>
    %cst_20 = arith.constant 3.125000e-02 : f32
    %60 = vector.broadcast %cst_20 : f32 to vector<1x32xf32>
    %61 = arith.divf %60, %59 : vector<1x32xf32>
    %62 = vector.broadcast %61 : vector<1x32xf32> to vector<16x32xf32>
    %63 = arith.mulf %55, %62 : vector<16x32xf32>
    %cst_21 = arith.constant dense<0xFF800000> : vector<32xf32>
    %64 = vector.multi_reduction <maximumf>, %63, %cst_21 [0] : vector<16x32xf32> to vector<32xf32>
    %65 = vector.shape_cast %64 : vector<32xf32> to vector<1x32xf32>
    %66 = tpu.iota {dimensions = array<i32: 0>} : vector<16x32xi32>
    %67 = arith.sitofp %66 : vector<16x32xi32> to vector<16x32xf32>
    %68 = vector.broadcast %65 : vector<1x32xf32> to vector<16x32xf32>
    %69 = arith.cmpf oeq, %63, %68 : vector<16x32xf32>
    %cst_22 = arith.constant 1.600000e+01 : f32
    %70 = vector.broadcast %cst_22 : f32 to vector<16x32xf32>
    %71 = arith.select %69, %67, %70 : vector<16x32xi1>, vector<16x32xf32>
    %cst_23 = arith.constant dense<0x7F800000> : vector<32xf32>
    %72 = vector.multi_reduction <minimumf>, %71, %cst_23 [0] : vector<16x32xf32> to vector<32xf32>
    %73 = vector.shape_cast %72 : vector<32xf32> to vector<1x32xf32>
    %74 = arith.fptosi %73 : vector<1x32xf32> to vector<1x32xi32>
    %c0_24 = arith.constant 0 : index
    %c0_25 = arith.constant 0 : index
    %75 = vector.load %arg2[%c0_24, %c0_25] : memref<1x32xi32, #tpu.memory_space<vmem>>, vector<1x32xi32>
    tpu.vector_store %arg2[%c0_24, %c0_25], %74 {strides = array<i32>} : memref<1x32xi32, #tpu.memory_space<vmem>>, vector<1x32xi32>,
    return
  }
  func.func @transform_0(%arg0: i32) -> (i32, i32) {
    %c0_i32 = arith.constant 0 : i32
    %c0_i32_0 = arith.constant 0 : i32
    %c0_i32_1 = arith.constant 0 : i32
    return %c0_i32, %c0_i32_0 : i32, i32
  }
  func.func @transform_1(%arg0: i32) -> (i32, i32) {
    %c0_i32 = arith.constant 0 : i32
    %c0_i32_0 = arith.constant 0 : i32
    %c0_i32_1 = arith.constant 0 : i32
    return %c0_i32, %c0_i32_0 : i32, i32
  }
}

module attributes {stable_mosaic.version = 11 : i64} {
  func.func @_crop_loss_kernel(%arg0: i32, %arg1: i32, %arg2: memref<1x36x128xf32, #tpu.memory_space<vmem>>, %arg3: memref<288x36xf32, #tpu.memory_space<vmem>>, %arg4: memref<128x16xf32, #tpu.memory_space<vmem>>, %arg5: memref<1x288x1xi32, #tpu.memory_space<vmem>>, %arg6: memref<1x1x128xf32, #tpu.memory_space<vmem>>, %arg7: memref<36x16xf32, #tpu.memory_space<vmem>>, %arg8: memref<36x36xf32, #tpu.memory_space<vmem>>) attributes {dimension_semantics = [#tpu.dimension_semantics<parallel>, #tpu.dimension_semantics<arbitrary>], iteration_bounds = array<i64: 4, 2>, scalar_prefetch = 0 : i64, scratch_operands = 2 : i64, tpu.core_type = #tpu.core_type<tc>, window_params = [{transform_indices = @transform_0, window_bounds = array<i64: 1, 36, 128>}, {transform_indices = @transform_1, window_bounds = array<i64: 288, 36>}, {pipeline_mode = #tpu.pipeline_mode<synchronous>, transform_indices = @transform_2, window_bounds = array<i64: 128, 16>}, {transform_indices = @transform_3, window_bounds = array<i64: 1, 288, 1>}, {transform_indices = @transform_4, window_bounds = array<i64: 1, 1, 128>}]} {
    %c0_i32 = arith.constant 0 : i32
    %0 = arith.cmpi eq, %arg1, %c0_i32 : i32
    %1 = arith.extui %0 : i1 to i32
    %c0_i32_0 = arith.constant 0 : i32
    %2 = arith.cmpi ne, %1, %c0_i32_0 : i32
    scf.if %2 {
      %c0_24 = arith.constant 0 : index
      %c0_25 = arith.constant 0 : index
      %c0_26 = arith.constant 0 : index
      %45 = vector.load %arg2[%c0_24, %c0_25, %c0_26] : memref<1x36x128xf32, #tpu.memory_space<vmem>>, vector<1x36x128xf32>
      %46 = vector.shape_cast %45 : vector<1x36x128xf32> to vector<36x128xf32>
      %c0_27 = arith.constant 0 : index
      %c0_28 = arith.constant 0 : index
      %47 = vector.load %arg4[%c0_27, %c0_28] : memref<128x16xf32, #tpu.memory_space<vmem>>, vector<128x16xf32>
      %cst_29 = arith.constant dense<0.000000e+00> : vector<36x16xf32>
      %48 = tpu.matmul %46, %47, %cst_29 {dimension_numbers = #tpu.dot_dimension_numbers<[1], [0], [0], [1], [0, 0, 1, 1], [], []>} : vector<36x128xf32>, vector<128x16xf32>, vector<36x16xf32> -> vector<36x16xf32>
      %c0_30 = arith.constant 0 : index
      %c0_31 = arith.constant 0 : index
      %49 = vector.load %arg7[%c0_30, %c0_31] : memref<36x16xf32, #tpu.memory_space<vmem>>, vector<36x16xf32>
      tpu.vector_store %arg7[%c0_30, %c0_31], %48 {strides = array<i32>} : memref<36x16xf32, #tpu.memory_space<vmem>>, vector<36x16xf32>,
      %cst_32 = arith.constant dense<0.000000e+00> : vector<36x36xf32>
      %50 = tpu.matmul %46, %46, %cst_32 {dimension_numbers = #tpu.dot_dimension_numbers<[1], [1], [0], [0], [0, 0, 1, 0], [], []>} : vector<36x128xf32>, vector<36x128xf32>, vector<36x36xf32> -> vector<36x36xf32>
      %c0_33 = arith.constant 0 : index
      %c0_34 = arith.constant 0 : index
      %51 = vector.load %arg8[%c0_33, %c0_34] : memref<36x36xf32, #tpu.memory_space<vmem>>, vector<36x36xf32>
      tpu.vector_store %arg8[%c0_33, %c0_34], %50 {strides = array<i32>} : memref<36x36xf32, #tpu.memory_space<vmem>>, vector<36x36xf32>,
      %cst_35 = arith.constant 0.000000e+00 : f32
      %52 = vector.broadcast %cst_35 : f32 to vector<1x1x128xf32>
      %c0_36 = arith.constant 0 : index
      %c0_37 = arith.constant 0 : index
      %c0_38 = arith.constant 0 : index
      %53 = vector.load %arg6[%c0_36, %c0_37, %c0_38] : memref<1x1x128xf32, #tpu.memory_space<vmem>>, vector<1x1x128xf32>
      tpu.vector_store %arg6[%c0_36, %c0_37, %c0_38], %52 {strides = array<i32>} : memref<1x1x128xf32, #tpu.memory_space<vmem>>, vector<1x1x128xf32>,
    } else {
    }
    %c0 = arith.constant 0 : index
    %c0_1 = arith.constant 0 : index
    %3 = vector.load %arg3[%c0, %c0_1] : memref<288x36xf32, #tpu.memory_space<vmem>>, vector<288x36xf32>
    %c0_2 = arith.constant 0 : index
    %c0_3 = arith.constant 0 : index
    %4 = vector.load %arg7[%c0_2, %c0_3] : memref<36x16xf32, #tpu.memory_space<vmem>>, vector<36x16xf32>
    %cst = arith.constant dense<0.000000e+00> : vector<288x16xf32>
    %5 = tpu.matmul %3, %4, %cst {dimension_numbers = #tpu.dot_dimension_numbers<[1], [0], [0], [1], [0, 0, 1, 1], [], []>} : vector<288x36xf32>, vector<36x16xf32>, vector<288x16xf32> -> vector<288x16xf32>
    %c0_4 = arith.constant 0 : index
    %c0_5 = arith.constant 0 : index
    %6 = vector.load %arg8[%c0_4, %c0_5] : memref<36x36xf32, #tpu.memory_space<vmem>>, vector<36x36xf32>
    %cst_6 = arith.constant dense<0.000000e+00> : vector<288x36xf32>
    %7 = tpu.matmul %3, %6, %cst_6 {dimension_numbers = #tpu.dot_dimension_numbers<[1], [0], [0], [1], [0, 0, 1, 1], [], []>} : vector<288x36xf32>, vector<36x36xf32>, vector<288x36xf32> -> vector<288x36xf32>
    %8 = arith.mulf %7, %3 : vector<288x36xf32>
    %cst_7 = arith.constant dense<0.000000e+00> : vector<288xf32>
    %9 = vector.multi_reduction <add>, %8, %cst_7 [1] : vector<288x36xf32> to vector<288xf32>
    %10 = vector.shape_cast %9 : vector<288xf32> to vector<288x1xf32>
    %cst_8 = arith.constant 1.000000e-24 : f32
    %11 = vector.broadcast %cst_8 : f32 to vector<288x1xf32>
    %12 = arith.maximumf %10, %11 : vector<288x1xf32>
    %13 = math.rsqrt %12 : vector<288x1xf32>
    %cst_9 = arith.constant 1.000000e+01 : f32
    %14 = vector.broadcast %cst_9 : f32 to vector<288x1xf32>
    %15 = arith.mulf %13, %14 : vector<288x1xf32>
    %16 = vector.broadcast %15 : vector<288x1xf32> to vector<288x16xf32>
    %17 = arith.mulf %5, %16 : vector<288x16xf32>
    %c0_10 = arith.constant 0 : index
    %c0_11 = arith.constant 0 : index
    %c0_12 = arith.constant 0 : index
    %18 = vector.load %arg5[%c0_10, %c0_11, %c0_12] : memref<1x288x1xi32, #tpu.memory_space<vmem>>, vector<1x288x1xi32>
    %19 = vector.shape_cast %18 : vector<1x288x1xi32> to vector<288x1xi32>
    %cst_13 = arith.constant dense<0xFF800000> : vector<288xf32>
    %20 = vector.multi_reduction <maximumf>, %17, %cst_13 [1] : vector<288x16xf32> to vector<288xf32>
    %21 = vector.shape_cast %20 : vector<288xf32> to vector<288x1xf32>
    %22 = vector.broadcast %21 : vector<288x1xf32> to vector<288x16xf32>
    %23 = arith.subf %17, %22 : vector<288x16xf32>
    %24 = math.exp %23 : vector<288x16xf32>
    %cst_14 = arith.constant dense<0.000000e+00> : vector<288xf32>
    %25 = vector.multi_reduction <add>, %24, %cst_14 [1] : vector<288x16xf32> to vector<288xf32>
    %26 = vector.shape_cast %25 : vector<288xf32> to vector<288x1xf32>
    %27 = math.log %26 : vector<288x1xf32>
    %28 = arith.addf %21, %27 : vector<288x1xf32>
    %29 = tpu.iota {dimensions = array<i32: 1>} : vector<288x16xi32>
    %30 = vector.broadcast %19 : vector<288x1xi32> to vector<288x16xi32>
    %31 = arith.cmpi eq, %29, %30 : vector<288x16xi32>
    %cst_15 = arith.constant 0.000000e+00 : f32
    %32 = vector.broadcast %cst_15 : f32 to vector<288x16xf32>
    %33 = arith.select %31, %17, %32 : vector<288x16xi1>, vector<288x16xf32>
    %cst_16 = arith.constant dense<0.000000e+00> : vector<288xf32>
    %34 = vector.multi_reduction <add>, %33, %cst_16 [1] : vector<288x16xf32> to vector<288xf32>
    %35 = vector.shape_cast %34 : vector<288xf32> to vector<288x1xf32>
    %36 = arith.subf %28, %35 : vector<288x1xf32>
    %37 = vector.shape_cast %36 : vector<288x1xf32> to vector<1x288x1xf32>
    %cst_17 = arith.constant dense<0.000000e+00> : vector<1xf32>
    %38 = vector.multi_reduction <add>, %37, %cst_17 [1, 2] : vector<1x288x1xf32> to vector<1xf32>
    %39 = vector.shape_cast %38 : vector<1xf32> to vector<1x1x1xf32>
    %40 = vector.extract %39[0, 0, 0] : f32 from vector<1x1x1xf32>
    %c0_18 = arith.constant 0 : index
    %c0_19 = arith.constant 0 : index
    %c0_20 = arith.constant 0 : index
    %41 = vector.load %arg6[%c0_18, %c0_19, %c0_20] : memref<1x1x128xf32, #tpu.memory_space<vmem>>, vector<1x1x128xf32>
    %42 = vector.broadcast %40 : f32 to vector<1x1x128xf32>
    %43 = arith.addf %41, %42 : vector<1x1x128xf32>
    %c0_21 = arith.constant 0 : index
    %c0_22 = arith.constant 0 : index
    %c0_23 = arith.constant 0 : index
    %44 = vector.load %arg6[%c0_21, %c0_22, %c0_23] : memref<1x1x128xf32, #tpu.memory_space<vmem>>, vector<1x1x128xf32>
    tpu.vector_store %arg6[%c0_21, %c0_22, %c0_23], %43 {strides = array<i32>} : memref<1x1x128xf32, #tpu.memory_space<vmem>>, vector<1x1x128xf32>,
    return
  }
  func.func @transform_0(%arg0: i32, %arg1: i32) -> (i32, i32, i32) {
    %c0_i32 = arith.constant 0 : i32
    %c0_i32_0 = arith.constant 0 : i32
    %c0_i32_1 = arith.constant 0 : i32
    return %arg0, %c0_i32, %c0_i32_0 : i32, i32, i32
  }
  func.func @transform_1(%arg0: i32, %arg1: i32) -> (i32, i32) {
    %c0_i32 = arith.constant 0 : i32
    %c0_i32_0 = arith.constant 0 : i32
    return %arg1, %c0_i32 : i32, i32
  }
  func.func @transform_2(%arg0: i32, %arg1: i32) -> (i32, i32) {
    %c0_i32 = arith.constant 0 : i32
    %c0_i32_0 = arith.constant 0 : i32
    %c0_i32_1 = arith.constant 0 : i32
    return %c0_i32, %c0_i32_0 : i32, i32
  }
  func.func @transform_3(%arg0: i32, %arg1: i32) -> (i32, i32, i32) {
    %c0_i32 = arith.constant 0 : i32
    %c0_i32_0 = arith.constant 0 : i32
    return %arg0, %arg1, %c0_i32 : i32, i32, i32
  }
  func.func @transform_4(%arg0: i32, %arg1: i32) -> (i32, i32, i32) {
    %c0_i32 = arith.constant 0 : i32
    %c0_i32_0 = arith.constant 0 : i32
    %c0_i32_1 = arith.constant 0 : i32
    return %arg0, %c0_i32, %c0_i32_0 : i32, i32, i32
  }
}

</mosaic_0001>

<llo_original>
// kernel: _forward_impl.4
$region0: #{_forward_impl.4}
  #allocation0 [shape = 'u32[]', space=smem, size = 0x4, offset = 0x4, fixed_abs, tag = 'smem constant byte address 0x4 - core index']
  #allocation1 [shape = 'u32[144,128]{1,0:T(1,128)}', space=vmem, size = 0x12000, scoped, tag = 'internal scratch']
  %s0 = inlined_call_operand.vmem [shape: f32[16,32], index: 0, kind: input, shape index: {}]
  %s1 = inlined_call_operand.vmem [shape: s32[1,32], index: 1, kind: output, shape index: {}]
  %s2 = sld [smem:[#allocation0]]
  $region14: #{_forward_impl.4} parent=0
    _
  %s4 = ssub.s32 1, %s2
  %s5 = scalar_select 0, %s4, %s2
  // Predicated region
  $region2: #{_forward_impl.4} parent=0 // pred_check
    _
  $region3: #{_forward_impl.4} parent=0 // pred_check_branch
    %7 = sbr.rel (0) target = $region5
  $region4: #{_forward_impl.4} parent=0 // pred_region
    _
  $region5: #{_forward_impl.4} parent=0 // pred_fallthru
    _
  %v8 = vld [vmem:[%s0] sm:$0xff]
  %v9 = vld [vmem:[%s0 + $0x8] sm:$0xff]
  %vm10 = vcmask 261120
  %v11 = vsel %vm10, %v8, -inf
  %v12 = vsel %vm10, %v9, -inf
  %v13 = vmax.f32 %v11, %v12
  %14 = vmax.xlane.f32.xlu0 %v13
  %v15 = vpop.xlane.xlu0 %14
  %v16 = vrot.slane %v15, 4
  %v17 = vmax.f32 %v15, %v16
  %v18 = vrot.slane %v17, 2
  %v19 = vmax.f32 %v17, %v18
  %v20 = vrot.slane %v19, 1
  %v21 = vmax.f32 %v19, %v20
  %s22 = vtos %v21
  %v23 = vstv %s22
  %v24 = vsub.f32 %v8, %v23
  %v25 = vsub.f32 %v9, %v23
  %v26 = vrcp.pop 0.05
  %v27 = vmul.f32 %v24, %v26
  %v28 = vmul.f32 %v25, %v26
  %v29 = vmul.f32 %v27, 1.442695
  %v30 = vpow.pop %v29
  %v31 = vmul.f32 %v28, 1.442695
  %v32 = vpow.pop %v31
  %v33 = vsel %vm10, %v30, 0.0
  %v34 = vsel %vm10, %v32, 0.0
  %v35 = vadd.f32 %v33, %v34
  %36 = vadd.xlane.f32.xlu0 %v35
  %v37 = vpop.xlane.xlu0 %36
  %v38 = vrot.slane %v37, 4
  %v39 = vadd.f32 %v37, %v38
  %v40 = vrot.slane %v39, 2
  %v41 = vadd.f32 %v39, %v40
  %v42 = vrot.slane %v41, 1
  %v43 = vadd.f32 %v41, %v42
  %s44 = vtos %v43
  %v45 = vstv %s44
  %v46 = vrcp.pop %v45
  %v47 = vmul.f32 %v30, %v46
  %v48 = vmul.f32 %v32, %v46
  %v49 = vsel %vm10, %v47, 0.0
  %50 = vadd.xlane.f32.xlu0 %v49
  %v51 = vpop.xlane.xlu0 %50
  %v52 = vsel %vm10, %v48, 0.0
  %53 = vadd.xlane.f32.xlu0 %v52
  %v54 = vpop.xlane.xlu0 %53
  %v55 = vmax.f32 %v51, 1e-30
  %v56 = vmax.f32 %v54, 1e-30
  %v57 = vrcp.pop %v55
  %v58 = vmul.f32 0.0625, %v57
  %v59 = vrcp.pop %v56
  %v60 = vmul.f32 0.0625, %v59
  %v61 = vmul.f32 %v47, %v58
  %v62 = vmul.f32 %v48, %v60
  %v63 = vsel %vm10, %v61, 0.0
  %v64 = vsel %vm10, %v62, 0.0
  %v65 = vadd.f32 %v63, %v64
  %v66 = vrot.slane %v65, 4
  %v67 = vadd.f32 %v65, %v66
  %v68 = vrot.slane %v67, 2
  %v69 = vadd.f32 %v67, %v68
  %v70 = vrot.slane %v69, 1
  %v71 = vadd.f32 %v69, %v70
  %v72 = vmax.f32 %v71, 1e-30
  %v73 = vrcp.pop %v72
  %v74 = vmul.f32 0.03125, %v73
  %v75 = vmul.f32 %v61, %v74
  %v76 = vmul.f32 %v62, %v74
  %v77 = vsel %vm10, %v75, 0.0
  %78 = vadd.xlane.f32.xlu0 %v77
  %v79 = vpop.xlane.xlu0 %78
  %v80 = vsel %vm10, %v76, 0.0
  %81 = vadd.xlane.f32.xlu0 %v80
  %v82 = vpop.xlane.xlu0 %81
  %v83 = vmax.f32 %v79, 1e-30
  %v84 = vmax.f32 %v82, 1e-30
  %v85 = vrcp.pop %v83
  %v86 = vmul.f32 0.0625, %v85
  %v87 = vrcp.pop %v84
  %v88 = vmul.f32 0.0625, %v87
  %v89 = vmul.f32 %v75, %v86
  %v90 = vmul.f32 %v76, %v88
  %v91 = vsel %vm10, %v89, 0.0
  %v92 = vsel %vm10, %v90, 0.0
  %v93 = vadd.f32 %v91, %v92
  %v94 = vrot.slane %v93, 4
  %v95 = vadd.f32 %v93, %v94
  %v96 = vrot.slane %v95, 2
  %v97 = vadd.f32 %v95, %v96
  %v98 = vrot.slane %v97, 1
  %v99 = vadd.f32 %v97, %v98
  %v100 = vmax.f32 %v99, 1e-30
  %v101 = vrcp.pop %v100
  %v102 = vmul.f32 0.03125, %v101
  %v103 = vmul.f32 %v89, %v102
  %v104 = vmul.f32 %v90, %v102
  %v105 = vsel %vm10, %v103, 0.0
  %106 = vadd.xlane.f32.xlu0 %v105
  %v107 = vpop.xlane.xlu0 %106
  %v108 = vsel %vm10, %v104, 0.0
  %109 = vadd.xlane.f32.xlu0 %v108
  %v110 = vpop.xlane.xlu0 %109
  %v111 = vmax.f32 %v107, 1e-30
  %v112 = vmax.f32 %v110, 1e-30
  %v113 = vrcp.pop %v111
  %v114 = vmul.f32 0.0625, %v113
  %v115 = vrcp.pop %v112
  %v116 = vmul.f32 0.0625, %v115
  %v117 = vmul.f32 %v103, %v114
  %v118 = vmul.f32 %v104, %v116
  %v119 = vsel %vm10, %v117, 0.0
  %v120 = vsel %vm10, %v118, 0.0
  %v121 = vadd.f32 %v119, %v120
  %v122 = vrot.slane %v121, 4
  %v123 = vadd.f32 %v121, %v122
  %v124 = vrot.slane %v123, 2
  %v125 = vadd.f32 %v123, %v124
  %v126 = vrot.slane %v125, 1
  %v127 = vadd.f32 %v125, %v126
  %v128 = vmax.f32 %v127, 1e-30
  %v129 = vrcp.pop %v128
  %v130 = vmul.f32 0.03125, %v129
  %v131 = vmul.f32 %v117, %v130
  %v132 = vmul.f32 %v118, %v130
  %v133 = vsel %vm10, %v131, -inf
  %v134 = vsel %vm10, %v132, -inf
  %v135 = vmax.f32 %v133, %v134
  %v136 = vrot.slane %v135, 4
  %v137 = vmax.f32 %v135, %v136
  %v138 = vrot.slane %v137, 2
  %v139 = vmax.f32 %v137, %v138
  %v140 = vrot.slane %v139, 1
  %v141 = vmax.f32 %v139, %v140
  %v142 = vlaneseq
  %v143 = vshrl.u32 %v142, 7
  %v144 = vadd.s32 %v143, 8
  %v145 = vcvt.s32.f32 %v143
  %v146 = vcvt.s32.f32 %v144
  %vm147 = vcmp.eq.f32.partialorder %v131, %v141
  %vm148 = vcmp.eq.f32.partialorder %v132, %v141
  %v149 = vsel %vm147, %v145, 16.0
  %v150 = vsel %vm148, %v146, 16.0
  %v151 = vsel %vm10, %v149, inf
  %v152 = vsel %vm10, %v150, inf
  %v153 = vmin.f32 %v151, %v152
  %v154 = vrot.slane %v153, 4
  %v155 = vmin.f32 %v153, %v154
  %v156 = vrot.slane %v155, 2
  %v157 = vmin.f32 %v155, %v156
  %v158 = vrot.slane %v157, 1
  %v159 = vmin.f32 %v157, %v158
  %v160 = vcvt.f32.s32.to.zero.pseudo %v159
  %vm161 = vcmask 253952
  %162 = vst.msk [vmem:[%s1] sm:$0x1] %vm161, %v160
  // Predicated region
  $region6: #{_forward_impl.4} parent=0 // pred_check
    _
  $region7: #{_forward_impl.4} parent=0 // pred_check_branch
    %164 = sbr.rel (0) target = $region9
  $region8: #{_forward_impl.4} parent=0 // pred_region
    _
  $region9: #{_forward_impl.4} parent=0 // pred_fallthru
    _
  // Predicated region
  $region10: #{_forward_impl.4} parent=0 // pred_check
    _
  $region11: #{_forward_impl.4} parent=0 // pred_check_branch
    %166 = sbr.rel (0) target = $region13
  $region12: #{_forward_impl.4} parent=0 // pred_region
    _
  $region13: #{_forward_impl.4} parent=0 // pred_fallthru
    _

// kernel: _forward_impl.3
$region0: #{_forward_impl.3}
  #allocation0 [shape = 'u32[]', space=smem, size = 0x4, offset = 0x4, fixed_abs, tag = 'smem constant byte address 0x4 - core index']
  #allocation1 [shape = 'u32[144,128]{1,0:T(1,128)}', space=vmem, size = 0x12000, scoped, tag = 'internal scratch']
  %s0 = inlined_call_operand.vmem [shape: bf16[256,128], index: 0, kind: input, shape index: {}]
  %s1 = inlined_call_operand.vmem [shape: bf16[128,256], index: 1, kind: input, shape index: {}]
  %s2 = inlined_call_operand.vmem [shape: f32[1,256], index: 2, kind: input, shape index: {}]
  %s3 = inlined_call_operand.vmem [shape: bf16[256,256], index: 3, kind: input, shape index: {}]
  %s4 = inlined_call_operand.vmem [shape: f32[1,256], index: 4, kind: input, shape index: {}]
  %s5 = inlined_call_operand.vmem [shape: bf16[256,128], index: 5, kind: input, shape index: {}]
  %s6 = inlined_call_operand.vmem [shape: f32[1,128], index: 6, kind: input, shape index: {}]
  %s7 = inlined_call_operand.vmem [shape: bf16[128,128], index: 7, kind: input, shape index: {}]
  %s8 = inlined_call_operand.vmem [shape: f32[1,128], index: 8, kind: input, shape index: {}]
  %s9 = inlined_call_operand.vmem [shape: f32[128,16], index: 9, kind: input, shape index: {}]
  %s10 = inlined_call_operand.vmem [shape: f32[256,128], index: 10, kind: output, shape index: {0}]
  %s11 = inlined_call_operand.vmem [shape: f32[256,16], index: 11, kind: output, shape index: {1}]
  %12 = xla_tuple %s10, %s11
  %s13 = sld [smem:[#allocation0]]
  $region81: #{_forward_impl.3} parent=0
    _
  %s15 = ssub.s32 1, %s13
  %s16 = scalar_select 0, %s15, %s13
  loop: start=0, step=1, limit=4
  $region2: #{_forward_impl.3} parent=0 // loop_pre_header
    _
  $region3: #{_forward_impl.3} parent=0 // loop_header
    %s18 = sphi 0, %s22
    %p19 = scmp.ge.s32.totalorder %s18, 4
    %s28 = sphi 0, %s30
    %s31 = sphi 0, %s28
    %s32 = sphi 0, %s31
    %s48 = sphi 0, %s32
    %s52 = sphi 0, %s52
    %s54 = sphi 0, %s52
    %s55 = sphi 0, %s54
    %s69 = sphi 0, %s55
    %s73 = sphi 0, %s73
    %s75 = sphi 0, %s73
    %s76 = sphi 0, %s75
    %s90 = sphi 0, %s76
    %s94 = sphi 0, %s94
    %s96 = sphi 0, %s94
    %s97 = sphi 0, %s96
    %s111 = sphi 0, %s97
    %s115 = sphi 0, %s115
    %s117 = sphi 0, %s115
    %s118 = sphi 0, %s117
    %s132 = sphi 0, %s118
    %s136 = sphi 0, %s136
    %s138 = sphi 0, %s136
    %s139 = sphi 0, %s138
    %s153 = sphi 0, %s139
    %s157 = sphi 0, %s157
    %s159 = sphi 0, %s157
    %s160 = sphi 0, %s159
    %s174 = sphi 0, %s160
    %s178 = sphi 0, %s178
    %s180 = sphi 0, %s178
    %s181 = sphi 0, %s180
    %s195 = sphi 0, %s181
    %s199 = sphi 0, %s199
    %s201 = sphi 0, %s199
    %s202 = sphi 0, %s201
    %s216 = sphi 0, %s202
    %s220 = sphi 0, %s220
    %s222 = sphi 0, %s220
    %s223 = sphi 0, %s222
    %s237 = sphi 0, %s223
    %s243 = sphi 0, %s245
    %s246 = sphi 0, %s243
    %s247 = sphi 0, %s246
    %s263 = sphi 0, %s247
    %s269 = sphi 0, %s271
    %s272 = sphi 0, %s269
    %s273 = sphi 0, %s272
    %s289 = sphi 0, %s273
  $region4: #{_forward_impl.3} parent=0 // loop_header_branch
    %21 = sbr.rel (%p19) target = $region8
  $region5: #{_forward_impl.3} parent=0 // loop_body
    %s23 = ssub.s32 %s18, 1
    %s24 = ssub.s32 %s18, 2
    %s25 = sadd.s32 %s18, 1
    %s26 = ssub.s32 %s18, %s25
    %p27 = scmp.eq.s32.totalorder %s26, 0
    %s29 = sadd.s32 %s28, 1
    %s30 = scalar_select %p27, %s28, %s29
    %p33 = pneg %p27
    %p34 = scmp.eq.s32.totalorder %s18, 1
    %p35 = por %p33, %p34
    %p36 = scmp.ne.s32.totalorder %s28, %s31
    %p37 = scmp.eq.s32.totalorder %s18, 0
    %p38 = por %p36, %p37
    %p39 = scmp.ne.s32.totalorder %s28, %s31
    %p40 = scmp.eq.s32.totalorder %s23, 1
    %p41 = por %p39, %p40
    %p42 = scmp.ne.s32.totalorder %s31, %s32
    %p43 = scmp.eq.s32.totalorder %s23, 0
    %p44 = por %p42, %p43
    %p45 = scmp.ne.s32.totalorder %s31, %s32
    %p46 = scmp.eq.s32.totalorder %s24, 1
    %p47 = por %p45, %p46
    %p49 = scmp.ne.s32.totalorder %s32, %s48
    %p50 = scmp.eq.s32.totalorder %s24, 0
    %p51 = por %p49, %p50
    %s53 = sadd.s32 %s52, 1
    %p56 = scmp.eq.s32.totalorder %s18, 1
    %p57 = scmp.ne.s32.totalorder %s52, %s54
    %p58 = scmp.eq.s32.totalorder %s18, 0
    %p59 = por %p57, %p58
    %p60 = scmp.ne.s32.totalorder %s52, %s54
    %p61 = scmp.eq.s32.totalorder %s23, 1
    %p62 = por %p60, %p61
    %p63 = scmp.ne.s32.totalorder %s54, %s55
    %p64 = scmp.eq.s32.totalorder %s23, 0
    %p65 = por %p63, %p64
    %p66 = scmp.ne.s32.totalorder %s54, %s55
    %p67 = scmp.eq.s32.totalorder %s24, 1
    %p68 = por %p66, %p67
    %p70 = scmp.ne.s32.totalorder %s55, %s69
    %p71 = scmp.eq.s32.totalorder %s24, 0
    %p72 = por %p70, %p71
    %s74 = sadd.s32 %s73, 1
    %p77 = scmp.eq.s32.totalorder %s18, 1
    %p78 = scmp.ne.s32.totalorder %s73, %s75
    %p79 = scmp.eq.s32.totalorder %s18, 0
    %p80 = por %p78, %p79
    %p81 = scmp.ne.s32.totalorder %s73, %s75
    %p82 = scmp.eq.s32.totalorder %s23, 1
    %p83 = por %p81, %p82
    %p84 = scmp.ne.s32.totalorder %s75, %s76
    %p85 = scmp.eq.s32.totalorder %s23, 0
    %p86 = por %p84, %p85
    %p87 = scmp.ne.s32.totalorder %s75, %s76
    %p88 = scmp.eq.s32.totalorder %s24, 1
    %p89 = por %p87, %p88
    %p91 = scmp.ne.s32.totalorder %s76, %s90
    %p92 = scmp.eq.s32.totalorder %s24, 0
    %p93 = por %p91, %p92
    %s95 = sadd.s32 %s94, 1
    %p98 = scmp.eq.s32.totalorder %s18, 1
    %p99 = scmp.ne.s32.totalorder %s94, %s96
    %p100 = scmp.eq.s32.totalorder %s18, 0
    %p101 = por %p99, %p100
    %p102 = scmp.ne.s32.totalorder %s94, %s96
    %p103 = scmp.eq.s32.totalorder %s23, 1
    %p104 = por %p102, %p103
    %p105 = scmp.ne.s32.totalorder %s96, %s97
    %p106 = scmp.eq.s32.totalorder %s23, 0
    %p107 = por %p105, %p106
    %p108 = scmp.ne.s32.totalorder %s96, %s97
    %p109 = scmp.eq.s32.totalorder %s24, 1
    %p110 = por %p108, %p109
    %p112 = scmp.ne.s32.totalorder %s97, %s111
    %p113 = scmp.eq.s32.totalorder %s24, 0
    %p114 = por %p112, %p113
    %s116 = sadd.s32 %s115, 1
    %p119 = scmp.eq.s32.totalorder %s18, 1
    %p120 = scmp.ne.s32.totalorder %s115, %s117
    %p121 = scmp.eq.s32.totalorder %s18, 0
    %p122 = por %p120, %p121
    %p123 = scmp.ne.s32.totalorder %s115, %s117
    %p124 = scmp.eq.s32.totalorder %s23, 1
    %p125 = por %p123, %p124
    %p126 = scmp.ne.s32.totalorder %s117, %s118
    %p127 = scmp.eq.s32.totalorder %s23, 0
    %p128 = por %p126, %p127
    %p129 = scmp.ne.s32.totalorder %s117, %s118
    %p130 = scmp.eq.s32.totalorder %s24, 1
    %p131 = por %p129, %p130
    %p133 = scmp.ne.s32.totalorder %s118, %s132
    %p134 = scmp.eq.s32.totalorder %s24, 0
    %p135 = por %p133, %p134
    %s137 = sadd.s32 %s136, 1
    %p140 = scmp.eq.s32.totalorder %s18, 1
    %p141 = scmp.ne.s32.totalorder %s136, %s138
    %p142 = scmp.eq.s32.totalorder %s18, 0
    %p143 = por %p141, %p142
    %p144 = scmp.ne.s32.totalorder %s136, %s138
    %p145 = scmp.eq.s32.totalorder %s23, 1
    %p146 = por %p144, %p145
    %p147 = scmp.ne.s32.totalorder %s138, %s139
    %p148 = scmp.eq.s32.totalorder %s23, 0
    %p149 = por %p147, %p148
    %p150 = scmp.ne.s32.totalorder %s138, %s139
    %p151 = scmp.eq.s32.totalorder %s24, 1
    %p152 = por %p150, %p151
    %p154 = scmp.ne.s32.totalorder %s139, %s153
    %p155 = scmp.eq.s32.totalorder %s24, 0
    %p156 = por %p154, %p155
    %s158 = sadd.s32 %s157, 1
    %p161 = scmp.eq.s32.totalorder %s18, 1
    %p162 = scmp.ne.s32.totalorder %s157, %s159
    %p163 = scmp.eq.s32.totalorder %s18, 0
    %p164 = por %p162, %p163
    %p165 = scmp.ne.s32.totalorder %s157, %s159
    %p166 = scmp.eq.s32.totalorder %s23, 1
    %p167 = por %p165, %p166
    %p168 = scmp.ne.s32.totalorder %s159, %s160
    %p169 = scmp.eq.s32.totalorder %s23, 0
    %p170 = por %p168, %p169
    %p171 = scmp.ne.s32.totalorder %s159, %s160
    %p172 = scmp.eq.s32.totalorder %s24, 1
    %p173 = por %p171, %p172
    %p175 = scmp.ne.s32.totalorder %s160, %s174
    %p176 = scmp.eq.s32.totalorder %s24, 0
    %p177 = por %p175, %p176
    %s179 = sadd.s32 %s178, 1
    %p182 = scmp.eq.s32.totalorder %s18, 1
    %p183 = scmp.ne.s32.totalorder %s178, %s180
    %p184 = scmp.eq.s32.totalorder %s18, 0
    %p185 = por %p183, %p184
    %p186 = scmp.ne.s32.totalorder %s178, %s180
    %p187 = scmp.eq.s32.totalorder %s23, 1
    %p188 = por %p186, %p187
    %p189 = scmp.ne.s32.totalorder %s180, %s181
    %p190 = scmp.eq.s32.totalorder %s23, 0
    %p191 = por %p189, %p190
    %p192 = scmp.ne.s32.totalorder %s180, %s181
    %p193 = scmp.eq.s32.totalorder %s24, 1
    %p194 = por %p192, %p193
    %p196 = scmp.ne.s32.totalorder %s181, %s195
    %p197 = scmp.eq.s32.totalorder %s24, 0
    %p198 = por %p196, %p197
    %s200 = sadd.s32 %s199, 1
    %p203 = scmp.eq.s32.totalorder %s18, 1
    %p204 = scmp.ne.s32.totalorder %s199, %s201
    %p205 = scmp.eq.s32.totalorder %s18, 0
    %p206 = por %p204, %p205
    %p207 = scmp.ne.s32.totalorder %s199, %s201
    %p208 = scmp.eq.s32.totalorder %s23, 1
    %p209 = por %p207, %p208
    %p210 = scmp.ne.s32.totalorder %s201, %s202
    %p211 = scmp.eq.s32.totalorder %s23, 0
    %p212 = por %p210, %p211
    %p213 = scmp.ne.s32.totalorder %s201, %s202
    %p214 = scmp.eq.s32.totalorder %s24, 1
    %p215 = por %p213, %p214
    %p217 = scmp.ne.s32.totalorder %s202, %s216
    %p218 = scmp.eq.s32.totalorder %s24, 0
    %p219 = por %p217, %p218
    %s221 = sadd.s32 %s220, 1
    %p224 = scmp.eq.s32.totalorder %s18, 1
    %p225 = scmp.ne.s32.totalorder %s220, %s222
    %p226 = scmp.eq.s32.totalorder %s18, 0
    %p227 = por %p225, %p226
    %p228 = scmp.ne.s32.totalorder %s220, %s222
    %p229 = scmp.eq.s32.totalorder %s23, 1
    %p230 = por %p228, %p229
    %p231 = scmp.ne.s32.totalorder %s222, %s223
    %p232 = scmp.eq.s32.totalorder %s23, 0
    %p233 = por %p231, %p232
    %p234 = scmp.ne.s32.totalorder %s222, %s223
    %p235 = scmp.eq.s32.totalorder %s24, 1
    %p236 = por %p234, %p235
    %p238 = scmp.ne.s32.totalorder %s223, %s237
    %p239 = scmp.eq.s32.totalorder %s24, 0
    %p240 = por %p238, %p239
    %s241 = ssub.s32 %s18, %s25
    %p242 = scmp.eq.s32.totalorder %s241, 0
    %s244 = sadd.s32 %s243, 1
    %s245 = scalar_select %p242, %s243, %s244
    %p248 = pneg %p242
    %p249 = scmp.eq.s32.totalorder %s18, 1
    %p250 = por %p248, %p249
    %p251 = scmp.ne.s32.totalorder %s243, %s246
    %p252 = scmp.eq.s32.totalorder %s18, 0
    %p253 = por %p251, %p252
    %p254 = scmp.ne.s32.totalorder %s243, %s246
    %p255 = scmp.eq.s32.totalorder %s23, 1
    %p256 = por %p254, %p255
    %p257 = scmp.ne.s32.totalorder %s246, %s247
    %p258 = scmp.eq.s32.totalorder %s23, 0
    %p259 = por %p257, %p258
    %p260 = scmp.ne.s32.totalorder %s246, %s247
    %p261 = scmp.eq.s32.totalorder %s24, 1
    %p262 = por %p260, %p261
    %p264 = scmp.ne.s32.totalorder %s247, %s263
    %p265 = scmp.eq.s32.totalorder %s24, 0
    %p266 = por %p264, %p265
    %s267 = ssub.s32 %s18, %s25
    %p268 = scmp.eq.s32.totalorder %s267, 0
    %s270 = sadd.s32 %s269, 1
    %s271 = scalar_select %p268, %s269, %s270
    %p274 = pneg %p268
    %p275 = scmp.eq.s32.totalorder %s18, 1
    %p276 = por %p274, %p275
    %p277 = scmp.ne.s32.totalorder %s269, %s272
    %p278 = scmp.eq.s32.totalorder %s18, 0
    %p279 = por %p277, %p278
    %p280 = scmp.ne.s32.totalorder %s269, %s272
    %p281 = scmp.eq.s32.totalorder %s23, 1
    %p282 = por %p280, %p281
    %p283 = scmp.ne.s32.totalorder %s272, %s273
    %p284 = scmp.eq.s32.totalorder %s23, 0
    %p285 = por %p283, %p284
    %p286 = scmp.ne.s32.totalorder %s272, %s273
    %p287 = scmp.eq.s32.totalorder %s24, 1
    %p288 = por %p286, %p287
    %p290 = scmp.ne.s32.totalorder %s273, %s289
    %p291 = scmp.eq.s32.totalorder %s24, 0
    %p292 = por %p290, %p291
    %p293 = scmp.le.s32.totalorder 1, %s18
    %p294 = scmp.lt.s32.totalorder %s18, 3
    %p295 = pnand %p293, %p294
    %p296 = pneg %p295
    // Predicated region
    $region9: #{_forward_impl.3} parent=5 // pred_check
      _
    $region10: #{_forward_impl.3} parent=5 // pred_check_branch
      %298 = sbr.rel (%p295) target = $region12
    $region11: #{_forward_impl.3} parent=5 // pred_region
      %s299 = ssub.s32 %s18, 1
      // Predicated region
      $region13: #{_forward_impl.3} parent=11 // pred_check
        %p300 = pneg %p65
      $region14: #{_forward_impl.3} parent=11 // pred_check_branch
        %302 = sbr.rel (%p300) target = $region16
      $region15: #{_forward_impl.3} parent=11 // pred_region
        _
      $region16: #{_forward_impl.3} parent=11 // pred_fallthru
        _
      // Predicated region
      $region17: #{_forward_impl.3} parent=11 // pred_check
        %p303 = pneg %p86
      $region18: #{_forward_impl.3} parent=11 // pred_check_branch
        %305 = sbr.rel (%p303) target = $region20
      $region19: #{_forward_impl.3} parent=11 // pred_region
        _
      $region20: #{_forward_impl.3} parent=11 // pred_fallthru
        _
      // Predicated region
      $region21: #{_forward_impl.3} parent=11 // pred_check
        %p306 = pneg %p107
      $region22: #{_forward_impl.3} parent=11 // pred_check_branch
        %308 = sbr.rel (%p306) target = $region24
      $region23: #{_forward_impl.3} parent=11 // pred_region
        _
      $region24: #{_forward_impl.3} parent=11 // pred_fallthru
        _
      // Predicated region
      $region25: #{_forward_impl.3} parent=11 // pred_check
        %p309 = pneg %p128
      $region26: #{_forward_impl.3} parent=11 // pred_check_branch
        %311 = sbr.rel (%p309) target = $region28
      $region27: #{_forward_impl.3} parent=11 // pred_region
        _
      $region28: #{_forward_impl.3} parent=11 // pred_fallthru
        _
      // Predicated region
      $region29: #{_forward_impl.3} parent=11 // pred_check
        %p312 = pneg %p149
      $region30: #{_forward_impl.3} parent=11 // pred_check_branch
        %314 = sbr.rel (%p312) target = $region32
      $region31: #{_forward_impl.3} parent=11 // pred_region
        _
      $region32: #{_forward_impl.3} parent=11 // pred_fallthru
        _
      // Predicated region
      $region33: #{_forward_impl.3} parent=11 // pred_check
        %p315 = pneg %p170
      $region34: #{_forward_impl.3} parent=11 // pred_check_branch
        %317 = sbr.rel (%p315) target = $region36
      $region35: #{_forward_impl.3} parent=11 // pred_region
        _
      $region36: #{_forward_impl.3} parent=11 // pred_fallthru
        _
      // Predicated region
      $region37: #{_forward_impl.3} parent=11 // pred_check
        %p318 = pneg %p191
      $region38: #{_forward_impl.3} parent=11 // pred_check_branch
        %320 = sbr.rel (%p318) target = $region40
      $region39: #{_forward_impl.3} parent=11 // pred_region
        _
      $region40: #{_forward_impl.3} parent=11 // pred_fallthru
        _
      // Predicated region
      $region41: #{_forward_impl.3} parent=11 // pred_check
        %p321 = pneg %p212
      $region42: #{_forward_impl.3} parent=11 // pred_check_branch
        %323 = sbr.rel (%p321) target = $region44
      $region43: #{_forward_impl.3} parent=11 // pred_region
        _
      $region44: #{_forward_impl.3} parent=11 // pred_fallthru
        _
      // Predicated region
      $region45: #{_forward_impl.3} parent=11 // pred_check
        %p324 = pneg %p233
      $region46: #{_forward_impl.3} parent=11 // pred_check_branch
        %326 = sbr.rel (%p324) target = $region48
      $region47: #{_forward_impl.3} parent=11 // pred_region
        _
      $region48: #{_forward_impl.3} parent=11 // pred_fallthru
        _
    $region12: #{_forward_impl.3} parent=5 // pred_fallthru
      _
    %p327 = scmp.lt.s32.totalorder %s18, 2
    // Predicated region
    $region49: #{_forward_impl.3} parent=5 // pred_check
      %p328 = pneg %p327
    $region50: #{_forward_impl.3} parent=5 // pred_check_branch
      %330 = sbr.rel (%p328) target = $region52
    $region51: #{_forward_impl.3} parent=5 // pred_region
      // Predicated region
      $region53: #{_forward_impl.3} parent=51 // pred_check
        %p331 = pneg %p38
      $region54: #{_forward_impl.3} parent=51 // pred_check_branch
        %333 = sbr.rel (%p331) target = $region56
      $region55: #{_forward_impl.3} parent=51 // pred_region
        %s334 = smul.u32 16, %s18
        %p335 = scmp.lt.s32.totalorder %s334, 31
        %s336 = scalar_select %p335, %s334, 31
        %s337 = smul.addr %s336, 4
        %s338 = scalar_lea.vmem %s0, %s337
        %s339 = smul.u32 16, %s18
      $region56: #{_forward_impl.3} parent=51 // pred_fallthru
        _
    $region52: #{_forward_impl.3} parent=5 // pred_fallthru
      _
    %p340 = scmp.le.s32.totalorder 1, %s18
    %p341 = scmp.lt.s32.totalorder %s18, 3
    %p342 = pnand %p340, %p341
    %p343 = pneg %p342
    // Predicated region
    $region57: #{_forward_impl.3} parent=5 // pred_check
      _
    $region58: #{_forward_impl.3} parent=5 // pred_check_branch
      %345 = sbr.rel (%p342) target = $region60
    $region59: #{_forward_impl.3} parent=5 // pred_region
      %s346 = ssub.s32 %s18, 1
      %s347 = smul.u32 16, %s23
      %p348 = scmp.lt.s32.totalorder %s347, 31
      %s349 = scalar_select %p348, %s347, 31
      %s350 = smul.addr %s349, 4
      %s351 = scalar_lea.vmem %s0, %s350
      %p352 = pneg %p44
      %p353 = pneg %p41
      %p354 = pneg %p65
      %p355 = pneg %p62
      %p356 = pneg %p86
      %p357 = pneg %p83
      %p358 = pneg %p107
      %p359 = pneg %p104
      %p360 = pneg %p128
      %p361 = pneg %p125
      %p362 = pneg %p149
      %p363 = pneg %p146
      %p364 = pneg %p170
      %p365 = pneg %p167
      %p366 = pneg %p191
      %p367 = pneg %p188
      %p368 = pneg %p212
      %p369 = pneg %p209
      %p370 = pneg %p233
      %p371 = pneg %p230
      %p372 = pneg %p259
      %p373 = pneg %p256
      %s374 = smul.u32 16, %s23
      %p375 = scmp.lt.s32.totalorder %s374, 31
      %s376 = scalar_select %p375, %s374, 31
      %s377 = smul.addr %s376, 8
      %s378 = scalar_lea.vmem %s10, %s377
      %p379 = pneg %p285
      %p380 = pneg %p282
      %s381 = smul.u32 16, %s23
      %p382 = scmp.lt.s32.totalorder %s381, 31
      %s383 = scalar_select %p382, %s381, 31
      %s384 = smul.addr %s383, 8
      %s385 = scalar_lea.vmem %s11, %s384
      %s386 = smul.u32 16, %s23
      %p387 = scmp.lt.s32.totalorder %s386, 31
      %s388 = scalar_select %p387, %s386, 31
      %s389 = smul.addr %s388, 4
      %s390 = scalar_lea.vmem %s0, %s389
      %s391 = smul.u32 16, %s23
      %s392 = smul.u32 16, %s23
      %p393 = scmp.lt.s32.totalorder %s392, 31
      %s394 = scalar_select %p393, %s392, 31
      %s395 = smul.addr %s394, 8
      %s396 = scalar_lea.vmem %s10, %s395
      %s397 = smul.u32 16, %s23
      %s398 = smul.u32 16, %s23
      %p399 = scmp.lt.s32.totalorder %s398, 31
      %s400 = scalar_select %p399, %s398, 31
      %s401 = smul.addr %s400, 8
      %s402 = scalar_lea.vmem %s11, %s401
      %s403 = smul.u32 16, %s23
      %v405 = vld [vmem:[%s390] sm:$0xf]
      %v406 = vld [vmem:[%s390 + $0x4] sm:$0xf]
      %v407 = vld [vmem:[%s390 + $0x8] sm:$0xf]
      %v408 = vld [vmem:[%s390 + $0xc] sm:$0xf]
      %v409 = vld [vmem:[%s390 + $0x10] sm:$0xf]
      %v410 = vld [vmem:[%s390 + $0x14] sm:$0xf]
      %v411 = vld [vmem:[%s390 + $0x18] sm:$0xf]
      %v412 = vld [vmem:[%s390 + $0x1c] sm:$0xf]
      %v413 = vld [vmem:[%s390 + $0x20] sm:$0xf]
      %v414 = vld [vmem:[%s390 + $0x24] sm:$0xf]
      %v415 = vld [vmem:[%s390 + $0x28] sm:$0xf]
      %v416 = vld [vmem:[%s390 + $0x2c] sm:$0xf]
      %v417 = vld [vmem:[%s390 + $0x30] sm:$0xf]
      %v418 = vld [vmem:[%s390 + $0x34] sm:$0xf]
      %v419 = vld [vmem:[%s390 + $0x38] sm:$0xf]
      %v420 = vld [vmem:[%s390 + $0x3c] sm:$0xf]
      %v421 = vld [vmem:[%s1] sm:$0xff]
      %v422 = vld [vmem:[%s1 + $0x8] sm:$0xff]
      %v423 = vld [vmem:[%s1 + $0x10] sm:$0xff]
      %v424 = vld [vmem:[%s1 + $0x18] sm:$0xff]
      %v425 = vld [vmem:[%s1 + $0x20] sm:$0xff]
      %v426 = vld [vmem:[%s1 + $0x28] sm:$0xff]
      %v427 = vld [vmem:[%s1 + $0x30] sm:$0xff]
      %v428 = vld [vmem:[%s1 + $0x38] sm:$0xff]
      %v429 = vld [vmem:[%s1 + $0x40] sm:$0xff]
      %v430 = vld [vmem:[%s1 + $0x48] sm:$0xff]
      %v431 = vld [vmem:[%s1 + $0x50] sm:$0xff]
      %v432 = vld [vmem:[%s1 + $0x58] sm:$0xff]
      %v433 = vld [vmem:[%s1 + $0x60] sm:$0xff]
      %v434 = vld [vmem:[%s1 + $0x68] sm:$0xff]
      %v435 = vld [vmem:[%s1 + $0x70] sm:$0xff]
      %v436 = vld [vmem:[%s1 + $0x78] sm:$0xff]
      %v437 = vld [vmem:[%s2] sm:$0x3]
      %v439 = vlaneseq
      %v440 = vshrl.u32 %v439, 7
      %v441 = vsub.s32 0, %v440
      %v442 = vrot.slane %v437, %v441
      %v443 = vlaneseq
      %v444 = vshrl.u32 %v443, 7
      %v445 = vsub.s32 1, %v444
      %v446 = vrot.slane %v437, %v445
      %v465 = vunpack.c.l.b16 %v405
      %v466 = vunpack.c.l.b16 %v406
      %v467 = vunpack.c.l.b16 %v407
      %v468 = vunpack.c.l.b16 %v408
      %v469 = vunpack.c.l.b16 %v409
      %v470 = vunpack.c.l.b16 %v410
      %v471 = vunpack.c.l.b16 %v411
      %v472 = vunpack.c.l.b16 %v412
      %v473 = vunpack.c.l.b16 %v413
      %v474 = vunpack.c.l.b16 %v414
      %v475 = vunpack.c.l.b16 %v415
      %v476 = vunpack.c.l.b16 %v416
      %v477 = vunpack.c.l.b16 %v417
      %v478 = vunpack.c.l.b16 %v418
      %v479 = vunpack.c.l.b16 %v419
      %v480 = vunpack.c.l.b16 %v420
      %v481 = vpack.c.b16 %v466, %v465
      %v482 = vpack.c.b16 %v468, %v467
      %v483 = vpack.c.b16 %v470, %v469
      %v484 = vpack.c.b16 %v472, %v471
      %v485 = vpack.c.b16 %v474, %v473
      %v486 = vpack.c.b16 %v476, %v475
      %v487 = vpack.c.b16 %v478, %v477
      %v488 = vpack.c.b16 %v480, %v479
      %v513 = vunpack.c.l.b16 %v421
      %v514 = vunpack.c.h.b16 %v421
      %v515 = vunpack.c.l.b16 %v422
      %v516 = vunpack.c.h.b16 %v422
      %v517 = vunpack.c.l.b16 %v423
      %v518 = vunpack.c.h.b16 %v423
      %v519 = vunpack.c.l.b16 %v424
      %v520 = vunpack.c.h.b16 %v424
      %v521 = vunpack.c.l.b16 %v425
      %v522 = vunpack.c.h.b16 %v425
      %v523 = vunpack.c.l.b16 %v426
      %v524 = vunpack.c.h.b16 %v426
      %v525 = vunpack.c.l.b16 %v427
      %v526 = vunpack.c.h.b16 %v427
      %v527 = vunpack.c.l.b16 %v428
      %v528 = vunpack.c.h.b16 %v428
      %v529 = vunpack.c.l.b16 %v429
      %v530 = vunpack.c.h.b16 %v429
      %v531 = vunpack.c.l.b16 %v430
      %v532 = vunpack.c.h.b16 %v430
      %v533 = vunpack.c.l.b16 %v431
      %v534 = vunpack.c.h.b16 %v431
      %v535 = vunpack.c.l.b16 %v432
      %v536 = vunpack.c.h.b16 %v432
      %v537 = vunpack.c.l.b16 %v433
      %v538 = vunpack.c.h.b16 %v433
      %v539 = vunpack.c.l.b16 %v434
      %v540 = vunpack.c.h.b16 %v434
      %v541 = vunpack.c.l.b16 %v435
      %v542 = vunpack.c.h.b16 %v435
      %v543 = vunpack.c.l.b16 %v436
      %v544 = vunpack.c.h.b16 %v436
      %v545 = vpack.c.b16 %v515, %v513
      %v546 = vpack.c.b16 %v516, %v514
      %v547 = vpack.c.b16 %v519, %v517
      %v548 = vpack.c.b16 %v520, %v518
      %v549 = vpack.c.b16 %v523, %v521
      %v550 = vpack.c.b16 %v524, %v522
      %v551 = vpack.c.b16 %v527, %v525
      %v552 = vpack.c.b16 %v528, %v526
      %v553 = vpack.c.b16 %v531, %v529
      %v554 = vpack.c.b16 %v532, %v530
      %v555 = vpack.c.b16 %v535, %v533
      %v556 = vpack.c.b16 %v536, %v534
      %v557 = vpack.c.b16 %v539, %v537
      %v558 = vpack.c.b16 %v540, %v538
      %v559 = vpack.c.b16 %v543, %v541
      %v560 = vpack.c.b16 %v544, %v542
      %577 = vmatprep.subr.bf16.mxu0 %v546
      %578 = vmatpush1.bf16.msra.mxu0 %v545
      %579 = vmatprep.subr.bf16.mxu0 %v548
      %580 = vmatpush1.bf16.msra.mxu0 %v547
      %581 = vmatprep.subr.bf16.mxu0 %v550
      %582 = vmatpush1.bf16.msra.mxu0 %v549
      %583 = vmatprep.subr.bf16.mxu0 %v552
      %584 = vmatpush1.bf16.msra.mxu0 %v551
      %585 = vmatprep.subr.bf16.mxu0 %v554
      %586 = vmatpush1.bf16.msra.mxu0 %v553
      %587 = vmatprep.subr.bf16.mxu0 %v556
      %588 = vmatpush1.bf16.msra.mxu0 %v555
      %589 = vmatprep.subr.bf16.mxu0 %v558
      %590 = vmatpush1.bf16.msra.mxu0 %v557
      %591 = vmatprep.subr.bf16.mxu0 %v560
      %592 = vmatpush1.bf16.msra.mxu0 %v559
      %593 = vmatprep.subr.bf16.mxu0 0
      %594 = vmatpush1.bf16.msra.mxu0 0
      %595 = vmatprep.subr.bf16.mxu0 0
      %596 = vmatpush1.bf16.msra.mxu0 0
      %597 = vmatprep.subr.bf16.mxu0 0
      %598 = vmatpush1.bf16.msra.mxu0 0
      %599 = vmatprep.subr.bf16.mxu0 0
      %600 = vmatpush1.bf16.msra.mxu0 0
      %601 = vmatprep.subr.bf16.mxu0 0
      %602 = vmatpush1.bf16.msra.mxu0 0
      %603 = vmatprep.subr.bf16.mxu0 0
      %604 = vmatpush1.bf16.msra.mxu0 0
      %605 = vmatprep.subr.bf16.mxu0 0
      %606 = vmatpush1.bf16.msra.mxu0 0
      %607 = vmatprep.subr.bf16.mxu0 0
      %608 = vmatpush1.bf16.msra.mxu0 0
      %609 = vmatprep.mubr.bf16.mxu0 0
      %610 = vmatmul.mubr.bf16.gmra.mrb[0].mxu0 %v481
      %v611 = vpop.f32.mrb[0].mxu0
      %v612 = vadd.f32 %v442, %v611
      %v613 = vpop.f32.mrb[0].mxu0
      %v614 = vadd.f32 %v446, %v613
      %v615 = vpop.f32.mrb[0].mxu0
      %v616 = vadd.f32 %v442, %v615
      %v617 = vpop.f32.mrb[0].mxu0
      %v618 = vadd.f32 %v446, %v617
      %619 = vmatprep.mubr.bf16.mxu0 0
      %620 = vmatmul.mubr.bf16.gmra.mrb[0].mxu0 %v482
      %v621 = vpop.f32.mrb[0].mxu0
      %v622 = vadd.f32 %v442, %v621
      %v623 = vpop.f32.mrb[0].mxu0
      %v624 = vadd.f32 %v446, %v623
      %v625 = vpop.f32.mrb[0].mxu0
      %v626 = vadd.f32 %v442, %v625
      %v627 = vpop.f32.mrb[0].mxu0
      %v628 = vadd.f32 %v446, %v627
      %629 = vmatprep.mubr.bf16.mxu0 0
      %630 = vmatmul.mubr.bf16.gmra.mrb[0].mxu0 %v483
      %v631 = vpop.f32.mrb[0].mxu0
      %v632 = vadd.f32 %v442, %v631
      %v633 = vpop.f32.mrb[0].mxu0
      %v634 = vadd.f32 %v446, %v633
      %v635 = vpop.f32.mrb[0].mxu0
      %v636 = vadd.f32 %v442, %v635
      %v637 = vpop.f32.mrb[0].mxu0
      %v638 = vadd.f32 %v446, %v637
      %639 = vmatprep.mubr.bf16.mxu0 0
      %640 = vmatmul.mubr.bf16.gmra.mrb[0].mxu0 %v484
      %v641 = vpop.f32.mrb[0].mxu0
      %v642 = vadd.f32 %v442, %v641
      %v643 = vpop.f32.mrb[0].mxu0
      %v644 = vadd.f32 %v446, %v643
      %v645 = vpop.f32.mrb[0].mxu0
      %v646 = vadd.f32 %v442, %v645
      %v647 = vpop.f32.mrb[0].mxu0
      %v648 = vadd.f32 %v446, %v647
      %649 = vmatprep.mubr.bf16.mxu0 0
      %650 = vmatmul.mubr.bf16.gmra.mrb[0].mxu0 %v485
      %v651 = vpop.f32.mrb[0].mxu0
      %v652 = vadd.f32 %v442, %v651
      %v653 = vpop.f32.mrb[0].mxu0
      %v654 = vadd.f32 %v446, %v653
      %v655 = vpop.f32.mrb[0].mxu0
      %v656 = vadd.f32 %v442, %v655
      %v657 = vpop.f32.mrb[0].mxu0
      %v658 = vadd.f32 %v446, %v657
      %659 = vmatprep.mubr.bf16.mxu0 0
      %660 = vmatmul.mubr.bf16.gmra.mrb[0].mxu0 %v486
      %v661 = vpop.f32.mrb[0].mxu0
      %v662 = vadd.f32 %v442, %v661
      %v663 = vpop.f32.mrb[0].mxu0
      %v664 = vadd.f32 %v446, %v663
      %v665 = vpop.f32.mrb[0].mxu0
      %v666 = vadd.f32 %v442, %v665
      %v667 = vpop.f32.mrb[0].mxu0
      %v668 = vadd.f32 %v446, %v667
      %669 = vmatprep.mubr.bf16.mxu0 0
      %670 = vmatmul.mubr.bf16.gmra.mrb[0].mxu0 %v487
      %v671 = vpop.f32.mrb[0].mxu0
      %v672 = vadd.f32 %v442, %v671
      %v673 = vpop.f32.mrb[0].mxu0
      %v674 = vadd.f32 %v446, %v673
      %v675 = vpop.f32.mrb[0].mxu0
      %v676 = vadd.f32 %v442, %v675
      %v677 = vpop.f32.mrb[0].mxu0
      %v678 = vadd.f32 %v446, %v677
      %679 = vmatprep.mubr.bf16.mxu0 0
      %680 = vmatmul.mubr.bf16.gmra.mrb[0].mxu0 %v488
      %v681 = vpop.f32.mrb[0].mxu0
      %v682 = vadd.f32 %v442, %v681
      %v683 = vpop.f32.mrb[0].mxu0
      %v684 = vadd.f32 %v446, %v683
      %v685 = vpop.f32.mrb[0].mxu0
      %v686 = vadd.f32 %v442, %v685
      %v687 = vpop.f32.mrb[0].mxu0
      %v688 = vadd.f32 %v446, %v687
      %689 = vdwg.mxu0
      %v690 = vmul.f32 %v612, %v612
      %v691 = vmul.f32 %v614, %v614
      %v692 = vmul.f32 %v616, %v616
      %v693 = vmul.f32 %v618, %v618
      %v694 = vmul.f32 %v622, %v622
      %v695 = vmul.f32 %v624, %v624
      %v696 = vmul.f32 %v626, %v626
      %v697 = vmul.f32 %v628, %v628
      %v698 = vmul.f32 %v632, %v632
      %v699 = vmul.f32 %v634, %v634
      %v700 = vmul.f32 %v636, %v636
      %v701 = vmul.f32 %v638, %v638
      %v702 = vmul.f32 %v642, %v642
      %v703 = vmul.f32 %v644, %v644
      %v704 = vmul.f32 %v646, %v646
      %v705 = vmul.f32 %v648, %v648
      %v706 = vmul.f32 %v652, %v652
      %v707 = vmul.f32 %v654, %v654
      %v708 = vmul.f32 %v656, %v656
      %v709 = vmul.f32 %v658, %v658
      %v710 = vmul.f32 %v662, %v662
      %v711 = vmul.f32 %v664, %v664
      %v712 = vmul.f32 %v666, %v666
      %v713 = vmul.f32 %v668, %v668
      %v714 = vmul.f32 %v672, %v672
      %v715 = vmul.f32 %v674, %v674
      %v716 = vmul.f32 %v676, %v676
      %v717 = vmul.f32 %v678, %v678
      %v718 = vmul.f32 %v682, %v682
      %v719 = vmul.f32 %v684, %v684
      %v720 = vmul.f32 %v686, %v686
      %v721 = vmul.f32 %v688, %v688
      %v722 = vmul.f32 %v612, %v690
      %v723 = vmul.f32 %v614, %v691
      %v724 = vmul.f32 %v616, %v692
      %v725 = vmul.f32 %v618, %v693
      %v726 = vmul.f32 %v622, %v694
      %v727 = vmul.f32 %v624, %v695
      %v728 = vmul.f32 %v626, %v696
      %v729 = vmul.f32 %v628, %v697
      %v730 = vmul.f32 %v632, %v698
      %v731 = vmul.f32 %v634, %v699
      %v732 = vmul.f32 %v636, %v700
      %v733 = vmul.f32 %v638, %v701
      %v734 = vmul.f32 %v642, %v702
      %v735 = vmul.f32 %v644, %v703
      %v736 = vmul.f32 %v646, %v704
      %v737 = vmul.f32 %v648, %v705
      %v738 = vmul.f32 %v652, %v706
      %v739 = vmul.f32 %v654, %v707
      %v740 = vmul.f32 %v656, %v708
      %v741 = vmul.f32 %v658, %v709
      %v742 = vmul.f32 %v662, %v710
      %v743 = vmul.f32 %v664, %v711
      %v744 = vmul.f32 %v666, %v712
      %v745 = vmul.f32 %v668, %v713
      %v746 = vmul.f32 %v672, %v714
      %v747 = vmul.f32 %v674, %v715
      %v748 = vmul.f32 %v676, %v716
      %v749 = vmul.f32 %v678, %v717
      %v750 = vmul.f32 %v682, %v718
      %v751 = vmul.f32 %v684, %v719
      %v752 = vmul.f32 %v686, %v720
      %v753 = vmul.f32 %v688, %v721
      %v754 = vmul.f32 %v722, 0.044715
      %v755 = vmul.f32 %v723, 0.044715
      %v756 = vmul.f32 %v724, 0.044715
      %v757 = vmul.f32 %v725, 0.044715
      %v758 = vmul.f32 %v726, 0.044715
      %v759 = vmul.f32 %v727, 0.044715
      %v760 = vmul.f32 %v728, 0.044715
      %v761 = vmul.f32 %v729, 0.044715
      %v762 = vmul.f32 %v730, 0.044715
      %v763 = vmul.f32 %v731, 0.044715
      %v764 = vmul.f32 %v732, 0.044715
      %v765 = vmul.f32 %v733, 0.044715
      %v766 = vmul.f32 %v734, 0.044715
      %v767 = vmul.f32 %v735, 0.044715
      %v768 = vmul.f32 %v736, 0.044715
      %v769 = vmul.f32 %v737, 0.044715
      %v770 = vmul.f32 %v738, 0.044715
      %v771 = vmul.f32 %v739, 0.044715
      %v772 = vmul.f32 %v740, 0.044715
      %v773 = vmul.f32 %v741, 0.044715
      %v774 = vmul.f32 %v742, 0.044715
      %v775 = vmul.f32 %v743, 0.044715
      %v776 = vmul.f32 %v744, 0.044715
      %v777 = vmul.f32 %v745, 0.044715
      %v778 = vmul.f32 %v746, 0.044715
      %v779 = vmul.f32 %v747, 0.044715
      %v780 = vmul.f32 %v748, 0.044715
      %v781 = vmul.f32 %v749, 0.044715
      %v782 = vmul.f32 %v750, 0.044715
      %v783 = vmul.f32 %v751, 0.044715
      %v784 = vmul.f32 %v752, 0.044715
      %v785 = vmul.f32 %v753, 0.044715
      %v786 = vadd.f32 %v612, %v754
      %v787 = vadd.f32 %v614, %v755
      %v788 = vadd.f32 %v616, %v756
      %v789 = vadd.f32 %v618, %v757
      %v790 = vadd.f32 %v622, %v758
      %v791 = vadd.f32 %v624, %v759
      %v792 = vadd.f32 %v626, %v760
      %v793 = vadd.f32 %v628, %v761
      %v794 = vadd.f32 %v632, %v762
      %v795 = vadd.f32 %v634, %v763
      %v796 = vadd.f32 %v636, %v764
      %v797 = vadd.f32 %v638, %v765
      %v798 = vadd.f32 %v642, %v766
      %v799 = vadd.f32 %v644, %v767
      %v800 = vadd.f32 %v646, %v768
      %v801 = vadd.f32 %v648, %v769
      %v802 = vadd.f32 %v652, %v770
      %v803 = vadd.f32 %v654, %v771
      %v804 = vadd.f32 %v656, %v772
      %v805 = vadd.f32 %v658, %v773
      %v806 = vadd.f32 %v662, %v774
      %v807 = vadd.f32 %v664, %v775
      %v808 = vadd.f32 %v666, %v776
      %v809 = vadd.f32 %v668, %v777
      %v810 = vadd.f32 %v672, %v778
      %v811 = vadd.f32 %v674, %v779
      %v812 = vadd.f32 %v676, %v780
      %v813 = vadd.f32 %v678, %v781
      %v814 = vadd.f32 %v682, %v782
      %v815 = vadd.f32 %v684, %v783
      %v816 = vadd.f32 %v686, %v784
      %v817 = vadd.f32 %v688, %v785
      %v818 = vmul.f32 %v786, 0.7978846
      %v819 = vmul.f32 %v787, 0.7978846
      %v820 = vmul.f32 %v788, 0.7978846
      %v821 = vmul.f32 %v789, 0.7978846
      %v822 = vmul.f32 %v790, 0.7978846
      %v823 = vmul.f32 %v791, 0.7978846
      %v824 = vmul.f32 %v792, 0.7978846
      %v825 = vmul.f32 %v793, 0.7978846
      %v826 = vmul.f32 %v794, 0.7978846
      %v827 = vmul.f32 %v795, 0.7978846
      %v828 = vmul.f32 %v796, 0.7978846
      %v829 = vmul.f32 %v797, 0.7978846
      %v830 = vmul.f32 %v798, 0.7978846
      %v831 = vmul.f32 %v799, 0.7978846
      %v832 = vmul.f32 %v800, 0.7978846
      %v833 = vmul.f32 %v801, 0.7978846
      %v834 = vmul.f32 %v802, 0.7978846
      %v835 = vmul.f32 %v803, 0.7978846
      %v836 = vmul.f32 %v804, 0.7978846
      %v837 = vmul.f32 %v805, 0.7978846
      %v838 = vmul.f32 %v806, 0.7978846
      %v839 = vmul.f32 %v807, 0.7978846
      %v840 = vmul.f32 %v808, 0.7978846
      %v841 = vmul.f32 %v809, 0.7978846
      %v842 = vmul.f32 %v810, 0.7978846
      %v843 = vmul.f32 %v811, 0.7978846
      %v844 = vmul.f32 %v812, 0.7978846
      %v845 = vmul.f32 %v813, 0.7978846
      %v846 = vmul.f32 %v814, 0.7978846
      %v847 = vmul.f32 %v815, 0.7978846
      %v848 = vmul.f32 %v816, 0.7978846
      %v849 = vmul.f32 %v817, 0.7978846
      %v850 = vtanh.pop %v818
      %v851 = vtanh.pop %v819
      %v852 = vtanh.pop %v820
      %v853 = vtanh.pop %v821
      %v854 = vtanh.pop %v822
      %v855 = vtanh.pop %v823
      %v856 = vtanh.pop %v824
      %v857 = vtanh.pop %v825
      %v858 = vtanh.pop %v826
      %v859 = vtanh.pop %v827
      %v860 = vtanh.pop %v828
      %v861 = vtanh.pop %v829
      %v862 = vtanh.pop %v830
      %v863 = vtanh.pop %v831
      %v864 = vtanh.pop %v832
      %v865 = vtanh.pop %v833
      %v866 = vtanh.pop %v834
      %v867 = vtanh.pop %v835
      %v868 = vtanh.pop %v836
      %v869 = vtanh.pop %v837
      %v870 = vtanh.pop %v838
      %v871 = vtanh.pop %v839
      %v872 = vtanh.pop %v840
      %v873 = vtanh.pop %v841
      %v874 = vtanh.pop %v842
      %v875 = vtanh.pop %v843
      %v876 = vtanh.pop %v844
      %v877 = vtanh.pop %v845
      %v878 = vtanh.pop %v846
      %v879 = vtanh.pop %v847
      %v880 = vtanh.pop %v848
      %v881 = vtanh.pop %v849
      %v882 = vadd.f32 %v850, 1.0
      %v883 = vadd.f32 %v851, 1.0
      %v884 = vadd.f32 %v852, 1.0
      %v885 = vadd.f32 %v853, 1.0
      %v886 = vadd.f32 %v854, 1.0
      %v887 = vadd.f32 %v855, 1.0
      %v888 = vadd.f32 %v856, 1.0
      %v889 = vadd.f32 %v857, 1.0
      %v890 = vadd.f32 %v858, 1.0
      %v891 = vadd.f32 %v859, 1.0
      %v892 = vadd.f32 %v860, 1.0
      %v893 = vadd.f32 %v861, 1.0
      %v894 = vadd.f32 %v862, 1.0
      %v895 = vadd.f32 %v863, 1.0
      %v896 = vadd.f32 %v864, 1.0
      %v897 = vadd.f32 %v865, 1.0
      %v898 = vadd.f32 %v866, 1.0
      %v899 = vadd.f32 %v867, 1.0
      %v900 = vadd.f32 %v868, 1.0
      %v901 = vadd.f32 %v869, 1.0
      %v902 = vadd.f32 %v870, 1.0
      %v903 = vadd.f32 %v871, 1.0
      %v904 = vadd.f32 %v872, 1.0
      %v905 = vadd.f32 %v873, 1.0
      %v906 = vadd.f32 %v874, 1.0
      %v907 = vadd.f32 %v875, 1.0
      %v908 = vadd.f32 %v876, 1.0
      %v909 = vadd.f32 %v877, 1.0
      %v910 = vadd.f32 %v878, 1.0
      %v911 = vadd.f32 %v879, 1.0
      %v912 = vadd.f32 %v880, 1.0
      %v913 = vadd.f32 %v881, 1.0
      %v914 = vmul.f32 %v882, 0.5
      %v915 = vmul.f32 %v883, 0.5
      %v916 = vmul.f32 %v884, 0.5
      %v917 = vmul.f32 %v885, 0.5
      %v918 = vmul.f32 %v886, 0.5
      %v919 = vmul.f32 %v887, 0.5
      %v920 = vmul.f32 %v888, 0.5
      %v921 = vmul.f32 %v889, 0.5
      %v922 = vmul.f32 %v890, 0.5
      %v923 = vmul.f32 %v891, 0.5
      %v924 = vmul.f32 %v892, 0.5
      %v925 = vmul.f32 %v893, 0.5
      %v926 = vmul.f32 %v894, 0.5
      %v927 = vmul.f32 %v895, 0.5
      %v928 = vmul.f32 %v896, 0.5
      %v929 = vmul.f32 %v897, 0.5
      %v930 = vmul.f32 %v898, 0.5
      %v931 = vmul.f32 %v899, 0.5
      %v932 = vmul.f32 %v900, 0.5
      %v933 = vmul.f32 %v901, 0.5
      %v934 = vmul.f32 %v902, 0.5
      %v935 = vmul.f32 %v903, 0.5
      %v936 = vmul.f32 %v904, 0.5
      %v937 = vmul.f32 %v905, 0.5
      %v938 = vmul.f32 %v906, 0.5
      %v939 = vmul.f32 %v907, 0.5
      %v940 = vmul.f32 %v908, 0.5
      %v941 = vmul.f32 %v909, 0.5
      %v942 = vmul.f32 %v910, 0.5
      %v943 = vmul.f32 %v911, 0.5
      %v944 = vmul.f32 %v912, 0.5
      %v945 = vmul.f32 %v913, 0.5
      %v946 = vmul.f32 %v612, %v914
      %v947 = vmul.f32 %v614, %v915
      %v948 = vmul.f32 %v616, %v916
      %v949 = vmul.f32 %v618, %v917
      %v950 = vmul.f32 %v622, %v918
      %v951 = vmul.f32 %v624, %v919
      %v952 = vmul.f32 %v626, %v920
      %v953 = vmul.f32 %v628, %v921
      %v954 = vmul.f32 %v632, %v922
      %v955 = vmul.f32 %v634, %v923
      %v956 = vmul.f32 %v636, %v924
      %v957 = vmul.f32 %v638, %v925
      %v958 = vmul.f32 %v642, %v926
      %v959 = vmul.f32 %v644, %v927
      %v960 = vmul.f32 %v646, %v928
      %v961 = vmul.f32 %v648, %v929
      %v962 = vmul.f32 %v652, %v930
      %v963 = vmul.f32 %v654, %v931
      %v964 = vmul.f32 %v656, %v932
      %v965 = vmul.f32 %v658, %v933
      %v966 = vmul.f32 %v662, %v934
      %v967 = vmul.f32 %v664, %v935
      %v968 = vmul.f32 %v666, %v936
      %v969 = vmul.f32 %v668, %v937
      %v970 = vmul.f32 %v672, %v938
      %v971 = vmul.f32 %v674, %v939
      %v972 = vmul.f32 %v676, %v940
      %v973 = vmul.f32 %v678, %v941
      %v974 = vmul.f32 %v682, %v942
      %v975 = vmul.f32 %v684, %v943
      %v976 = vmul.f32 %v686, %v944
      %v977 = vmul.f32 %v688, %v945
      %v978 = vpack.c.bf16 %v948, %v946
      %v979 = vpack.c.bf16 %v949, %v947
      %v980 = vpack.c.bf16 %v952, %v950
      %v981 = vpack.c.bf16 %v953, %v951
      %v982 = vpack.c.bf16 %v956, %v954
      %v983 = vpack.c.bf16 %v957, %v955
      %v984 = vpack.c.bf16 %v960, %v958
      %v985 = vpack.c.bf16 %v961, %v959
      %v986 = vpack.c.bf16 %v964, %v962
      %v987 = vpack.c.bf16 %v965, %v963
      %v988 = vpack.c.bf16 %v968, %v966
      %v989 = vpack.c.bf16 %v969, %v967
      %v990 = vpack.c.bf16 %v972, %v970
      %v991 = vpack.c.bf16 %v973, %v971
      %v992 = vpack.c.bf16 %v976, %v974
      %v993 = vpack.c.bf16 %v977, %v975
      %v994 = vld [vmem:[%s3] sm:$0xff]
      %v995 = vld [vmem:[%s3 + $0x8] sm:$0xff]
      %v996 = vld [vmem:[%s3 + $0x10] sm:$0xff]
      %v997 = vld [vmem:[%s3 + $0x18] sm:$0xff]
      %v998 = vld [vmem:[%s3 + $0x20] sm:$0xff]
      %v999 = vld [vmem:[%s3 + $0x28] sm:$0xff]
      %v1000 = vld [vmem:[%s3 + $0x30] sm:$0xff]
      %v1001 = vld [vmem:[%s3 + $0x38] sm:$0xff]
      %v1002 = vld [vmem:[%s3 + $0x40] sm:$0xff]
      %v1003 = vld [vmem:[%s3 + $0x48] sm:$0xff]
      %v1004 = vld [vmem:[%s3 + $0x50] sm:$0xff]
      %v1005 = vld [vmem:[%s3 + $0x58] sm:$0xff]
      %v1006 = vld [vmem:[%s3 + $0x60] sm:$0xff]
      %v1007 = vld [vmem:[%s3 + $0x68] sm:$0xff]
      %v1008 = vld [vmem:[%s3 + $0x70] sm:$0xff]
      %v1009 = vld [vmem:[%s3 + $0x78] sm:$0xff]
      %v1010 = vld [vmem:[%s3 + $0x80] sm:$0xff]
      %v1011 = vld [vmem:[%s3 + $0x88] sm:$0xff]
      %v1012 = vld [vmem:[%s3 + $0x90] sm:$0xff]
      %v1013 = vld [vmem:[%s3 + $0x98] sm:$0xff]
      %v1014 = vld [vmem:[%s3 + $0xa0] sm:$0xff]
      %v1015 = vld [vmem:[%s3 + $0xa8] sm:$0xff]
      %v1016 = vld [vmem:[%s3 + $0xb0] sm:$0xff]
      %v1017 = vld [vmem:[%s3 + $0xb8] sm:$0xff]
      %v1018 = vld [vmem:[%s3 + $0xc0] sm:$0xff]
      %v1019 = vld [vmem:[%s3 + $0xc8] sm:$0xff]
      %v1020 = vld [vmem:[%s3 + $0xd0] sm:$0xff]
      %v1021 = vld [vmem:[%s3 + $0xd8] sm:$0xff]
      %v1022 = vld [vmem:[%s3 + $0xe0] sm:$0xff]
      %v1023 = vld [vmem:[%s3 + $0xe8] sm:$0xff]
      %v1024 = vld [vmem:[%s3 + $0xf0] sm:$0xff]
      %v1025 = vld [vmem:[%s3 + $0xf8] sm:$0xff]
      %v1026 = vld [vmem:[%s4] sm:$0x3]
      %v1028 = vlaneseq
      %v1029 = vshrl.u32 %v1028, 7
      %v1030 = vsub.s32 0, %v1029
      %v1031 = vrot.slane %v1026, %v1030
      %v1032 = vlaneseq
      %v1033 = vshrl.u32 %v1032, 7
      %v1034 = vsub.s32 1, %v1033
      %v1035 = vrot.slane %v1026, %v1034
      %v1070 = vunpack.c.l.b16 %v994
      %v1071 = vunpack.c.h.b16 %v994
      %v1072 = vunpack.c.l.b16 %v995
      %v1073 = vunpack.c.h.b16 %v995
      %v1074 = vunpack.c.l.b16 %v996
      %v1075 = vunpack.c.h.b16 %v996
      %v1076 = vunpack.c.l.b16 %v997
      %v1077 = vunpack.c.h.b16 %v997
      %v1078 = vunpack.c.l.b16 %v998
      %v1079 = vunpack.c.h.b16 %v998
      %v1080 = vunpack.c.l.b16 %v999
      %v1081 = vunpack.c.h.b16 %v999
      %v1082 = vunpack.c.l.b16 %v1000
      %v1083 = vunpack.c.h.b16 %v1000
      %v1084 = vunpack.c.l.b16 %v1001
      %v1085 = vunpack.c.h.b16 %v1001
      %v1086 = vunpack.c.l.b16 %v1002
      %v1087 = vunpack.c.h.b16 %v1002
      %v1088 = vunpack.c.l.b16 %v1003
      %v1089 = vunpack.c.h.b16 %v1003
      %v1090 = vunpack.c.l.b16 %v1004
      %v1091 = vunpack.c.h.b16 %v1004
      %v1092 = vunpack.c.l.b16 %v1005
      %v1093 = vunpack.c.h.b16 %v1005
      %v1094 = vunpack.c.l.b16 %v1006
      %v1095 = vunpack.c.h.b16 %v1006
      %v1096 = vunpack.c.l.b16 %v1007
      %v1097 = vunpack.c.h.b16 %v1007
      %v1098 = vunpack.c.l.b16 %v1008
      %v1099 = vunpack.c.h.b16 %v1008
      %v1100 = vunpack.c.l.b16 %v1009
      %v1101 = vunpack.c.h.b16 %v1009
      %v1102 = vunpack.c.l.b16 %v1010
      %v1103 = vunpack.c.h.b16 %v1010
      %v1104 = vunpack.c.l.b16 %v1011
      %v1105 = vunpack.c.h.b16 %v1011
      %v1106 = vunpack.c.l.b16 %v1012
      %v1107 = vunpack.c.h.b16 %v1012
      %v1108 = vunpack.c.l.b16 %v1013
      %v1109 = vunpack.c.h.b16 %v1013
      %v1110 = vunpack.c.l.b16 %v1014
      %v1111 = vunpack.c.h.b16 %v1014
      %v1112 = vunpack.c.l.b16 %v1015
      %v1113 = vunpack.c.h.b16 %v1015
      %v1114 = vunpack.c.l.b16 %v1016
      %v1115 = vunpack.c.h.b16 %v1016
      %v1116 = vunpack.c.l.b16 %v1017
      %v1117 = vunpack.c.h.b16 %v1017
      %v1118 = vunpack.c.l.b16 %v1018
      %v1119 = vunpack.c.h.b16 %v1018
      %v1120 = vunpack.c.l.b16 %v1019
      %v1121 = vunpack.c.h.b16 %v1019
      %v1122 = vunpack.c.l.b16 %v1020
      %v1123 = vunpack.c.h.b16 %v1020
      %v1124 = vunpack.c.l.b16 %v1021
      %v1125 = vunpack.c.h.b16 %v1021
      %v1126 = vunpack.c.l.b16 %v1022
      %v1127 = vunpack.c.h.b16 %v1022
      %v1128 = vunpack.c.l.b16 %v1023
      %v1129 = vunpack.c.h.b16 %v1023
      %v1130 = vunpack.c.l.b16 %v1024
      %v1131 = vunpack.c.h.b16 %v1024
      %v1132 = vunpack.c.l.b16 %v1025
      %v1133 = vunpack.c.h.b16 %v1025
      %v1134 = vpack.c.b16 %v1072, %v1070
      %v1135 = vpack.c.b16 %v1073, %v1071
      %v1136 = vpack.c.b16 %v1076, %v1074
      %v1137 = vpack.c.b16 %v1077, %v1075
      %v1138 = vpack.c.b16 %v1080, %v1078
      %v1139 = vpack.c.b16 %v1081, %v1079
      %v1140 = vpack.c.b16 %v1084, %v1082
      %v1141 = vpack.c.b16 %v1085, %v1083
      %v1142 = vpack.c.b16 %v1088, %v1086
      %v1143 = vpack.c.b16 %v1089, %v1087
      %v1144 = vpack.c.b16 %v1092, %v1090
      %v1145 = vpack.c.b16 %v1093, %v1091
      %v1146 = vpack.c.b16 %v1096, %v1094
      %v1147 = vpack.c.b16 %v1097, %v1095
      %v1148 = vpack.c.b16 %v1100, %v1098
      %v1149 = vpack.c.b16 %v1101, %v1099
      %v1150 = vpack.c.b16 %v1104, %v1102
      %v1151 = vpack.c.b16 %v1105, %v1103
      %v1152 = vpack.c.b16 %v1108, %v1106
      %v1153 = vpack.c.b16 %v1109, %v1107
      %v1154 = vpack.c.b16 %v1112, %v1110
      %v1155 = vpack.c.b16 %v1113, %v1111
      %v1156 = vpack.c.b16 %v1116, %v1114
      %v1157 = vpack.c.b16 %v1117, %v1115
      %v1158 = vpack.c.b16 %v1120, %v1118
      %v1159 = vpack.c.b16 %v1121, %v1119
      %v1160 = vpack.c.b16 %v1124, %v1122
      %v1161 = vpack.c.b16 %v1125, %v1123
      %v1162 = vpack.c.b16 %v1128, %v1126
      %v1163 = vpack.c.b16 %v1129, %v1127
      %v1164 = vpack.c.b16 %v1132, %v1130
      %v1165 = vpack.c.b16 %v1133, %v1131
      %1198 = vmatprep.subr.bf16.mxu0 %v1135
      %1199 = vmatpush1.bf16.msra.mxu0 %v1134
      %1200 = vmatprep.subr.bf16.mxu0 %v1137
      %1201 = vmatpush1.bf16.msra.mxu0 %v1136
      %1202 = vmatprep.subr.bf16.mxu0 %v1139
      %1203 = vmatpush1.bf16.msra.mxu0 %v1138
      %1204 = vmatprep.subr.bf16.mxu0 %v1141
      %1205 = vmatpush1.bf16.msra.mxu0 %v1140
      %1206 = vmatprep.subr.bf16.mxu0 %v1143
      %1207 = vmatpush1.bf16.msra.mxu0 %v1142
      %1208 = vmatprep.subr.bf16.mxu0 %v1145
      %1209 = vmatpush1.bf16.msra.mxu0 %v1144
      %1210 = vmatprep.subr.bf16.mxu0 %v1147
      %1211 = vmatpush1.bf16.msra.mxu0 %v1146
      %1212 = vmatprep.subr.bf16.mxu0 %v1149
      %1213 = vmatpush1.bf16.msra.mxu0 %v1148
      %1214 = vmatprep.subr.bf16.mxu0 %v1151
      %1215 = vmatpush1.bf16.msra.mxu0 %v1150
      %1216 = vmatprep.subr.bf16.mxu0 %v1153
      %1217 = vmatpush1.bf16.msra.mxu0 %v1152
      %1218 = vmatprep.subr.bf16.mxu0 %v1155
      %1219 = vmatpush1.bf16.msra.mxu0 %v1154
      %1220 = vmatprep.subr.bf16.mxu0 %v1157
      %1221 = vmatpush1.bf16.msra.mxu0 %v1156
      %1222 = vmatprep.subr.bf16.mxu0 %v1159
      %1223 = vmatpush1.bf16.msra.mxu0 %v1158
      %1224 = vmatprep.subr.bf16.mxu0 %v1161
      %1225 = vmatpush1.bf16.msra.mxu0 %v1160
      %1226 = vmatprep.subr.bf16.mxu0 %v1163
      %1227 = vmatpush1.bf16.msra.mxu0 %v1162
      %1228 = vmatprep.subr.bf16.mxu0 %v1165
      %1229 = vmatpush1.bf16.msra.mxu0 %v1164
      %1230 = vmatprep.mubr.bf16.mxu0 %v979
      %1231 = vmatmul.mubr.bf16.gmra.mrb[0].mxu0 %v978
      %v1232 = vpop.f32.mrb[0].mxu0
      %v1233 = vadd.f32 %v1031, %v1232
      %v1234 = vpop.f32.mrb[0].mxu0
      %v1235 = vadd.f32 %v1035, %v1234
      %v1236 = vpop.f32.mrb[0].mxu0
      %v1237 = vadd.f32 %v1031, %v1236
      %v1238 = vpop.f32.mrb[0].mxu0
      %v1239 = vadd.f32 %v1035, %v1238
      %1240 = vmatprep.mubr.bf16.mxu0 %v981
      %1241 = vmatmul.mubr.bf16.gmra.mrb[0].mxu0 %v980
      %v1242 = vpop.f32.mrb[0].mxu0
      %v1243 = vadd.f32 %v1031, %v1242
      %v1244 = vpop.f32.mrb[0].mxu0
      %v1245 = vadd.f32 %v1035, %v1244
      %v1246 = vpop.f32.mrb[0].mxu0
      %v1247 = vadd.f32 %v1031, %v1246
      %v1248 = vpop.f32.mrb[0].mxu0
      %v1249 = vadd.f32 %v1035, %v1248
      %1250 = vmatprep.mubr.bf16.mxu0 %v983
      %1251 = vmatmul.mubr.bf16.gmra.mrb[0].mxu0 %v982
      %v1252 = vpop.f32.mrb[0].mxu0
      %v1253 = vadd.f32 %v1031, %v1252
      %v1254 = vpop.f32.mrb[0].mxu0
      %v1255 = vadd.f32 %v1035, %v1254
      %v1256 = vpop.f32.mrb[0].mxu0
      %v1257 = vadd.f32 %v1031, %v1256
      %v1258 = vpop.f32.mrb[0].mxu0
      %v1259 = vadd.f32 %v1035, %v1258
      %1260 = vmatprep.mubr.bf16.mxu0 %v985
      %1261 = vmatmul.mubr.bf16.gmra.mrb[0].mxu0 %v984
      %v1262 = vpop.f32.mrb[0].mxu0
      %v1263 = vadd.f32 %v1031, %v1262
      %v1264 = vpop.f32.mrb[0].mxu0
      %v1265 = vadd.f32 %v1035, %v1264
      %v1266 = vpop.f32.mrb[0].mxu0
      %v1267 = vadd.f32 %v1031, %v1266
      %v1268 = vpop.f32.mrb[0].mxu0
      %v1269 = vadd.f32 %v1035, %v1268
      %1270 = vmatprep.mubr.bf16.mxu0 %v987
      %1271 = vmatmul.mubr.bf16.gmra.mrb[0].mxu0 %v986
      %v1272 = vpop.f32.mrb[0].mxu0
      %v1273 = vadd.f32 %v1031, %v1272
      %v1274 = vpop.f32.mrb[0].mxu0
      %v1275 = vadd.f32 %v1035, %v1274
      %v1276 = vpop.f32.mrb[0].mxu0
      %v1277 = vadd.f32 %v1031, %v1276
      %v1278 = vpop.f32.mrb[0].mxu0
      %v1279 = vadd.f32 %v1035, %v1278
      %1280 = vmatprep.mubr.bf16.mxu0 %v989
      %1281 = vmatmul.mubr.bf16.gmra.mrb[0].mxu0 %v988
      %v1282 = vpop.f32.mrb[0].mxu0
      %v1283 = vadd.f32 %v1031, %v1282
      %v1284 = vpop.f32.mrb[0].mxu0
      %v1285 = vadd.f32 %v1035, %v1284
      %v1286 = vpop.f32.mrb[0].mxu0
      %v1287 = vadd.f32 %v1031, %v1286
      %v1288 = vpop.f32.mrb[0].mxu0
      %v1289 = vadd.f32 %v1035, %v1288
      %1290 = vmatprep.mubr.bf16.mxu0 %v991
      %1291 = vmatmul.mubr.bf16.gmra.mrb[0].mxu0 %v990
      %v1292 = vpop.f32.mrb[0].mxu0
      %v1293 = vadd.f32 %v1031, %v1292
      %v1294 = vpop.f32.mrb[0].mxu0
      %v1295 = vadd.f32 %v1035, %v1294
      %v1296 = vpop.f32.mrb[0].mxu0
      %v1297 = vadd.f32 %v1031, %v1296
      %v1298 = vpop.f32.mrb[0].mxu0
      %v1299 = vadd.f32 %v1035, %v1298
      %1300 = vmatprep.mubr.bf16.mxu0 %v993
      %1301 = vmatmul.mubr.bf16.gmra.mrb[0].mxu0 %v992
      %v1302 = vpop.f32.mrb[0].mxu0
      %v1303 = vadd.f32 %v1031, %v1302
      %v1304 = vpop.f32.mrb[0].mxu0
      %v1305 = vadd.f32 %v1035, %v1304
      %v1306 = vpop.f32.mrb[0].mxu0
      %v1307 = vadd.f32 %v1031, %v1306
      %v1308 = vpop.f32.mrb[0].mxu0
      %v1309 = vadd.f32 %v1035, %v1308
      %1310 = vdwg.mxu0
      %v1311 = vmul.f32 %v1233, %v1233
      %v1312 = vmul.f32 %v1235, %v1235
      %v1313 = vmul.f32 %v1237, %v1237
      %v1314 = vmul.f32 %v1239, %v1239
      %v1315 = vmul.f32 %v1243, %v1243
      %v1316 = vmul.f32 %v1245, %v1245
      %v1317 = vmul.f32 %v1247, %v1247
      %v1318 = vmul.f32 %v1249, %v1249
      %v1319 = vmul.f32 %v1253, %v1253
      %v1320 = vmul.f32 %v1255, %v1255
      %v1321 = vmul.f32 %v1257, %v1257
      %v1322 = vmul.f32 %v1259, %v1259
      %v1323 = vmul.f32 %v1263, %v1263
      %v1324 = vmul.f32 %v1265, %v1265
      %v1325 = vmul.f32 %v1267, %v1267
      %v1326 = vmul.f32 %v1269, %v1269
      %v1327 = vmul.f32 %v1273, %v1273
      %v1328 = vmul.f32 %v1275, %v1275
      %v1329 = vmul.f32 %v1277, %v1277
      %v1330 = vmul.f32 %v1279, %v1279
      %v1331 = vmul.f32 %v1283, %v1283
      %v1332 = vmul.f32 %v1285, %v1285
      %v1333 = vmul.f32 %v1287, %v1287
      %v1334 = vmul.f32 %v1289, %v1289
      %v1335 = vmul.f32 %v1293, %v1293
      %v1336 = vmul.f32 %v1295, %v1295
      %v1337 = vmul.f32 %v1297, %v1297
      %v1338 = vmul.f32 %v1299, %v1299
      %v1339 = vmul.f32 %v1303, %v1303
      %v1340 = vmul.f32 %v1305, %v1305
      %v1341 = vmul.f32 %v1307, %v1307
      %v1342 = vmul.f32 %v1309, %v1309
      %v1343 = vmul.f32 %v1233, %v1311
      %v1344 = vmul.f32 %v1235, %v1312
      %v1345 = vmul.f32 %v1237, %v1313
      %v1346 = vmul.f32 %v1239, %v1314
      %v1347 = vmul.f32 %v1243, %v1315
      %v1348 = vmul.f32 %v1245, %v1316
      %v1349 = vmul.f32 %v1247, %v1317
      %v1350 = vmul.f32 %v1249, %v1318
      %v1351 = vmul.f32 %v1253, %v1319
      %v1352 = vmul.f32 %v1255, %v1320
      %v1353 = vmul.f32 %v1257, %v1321
      %v1354 = vmul.f32 %v1259, %v1322
      %v1355 = vmul.f32 %v1263, %v1323
      %v1356 = vmul.f32 %v1265, %v1324
      %v1357 = vmul.f32 %v1267, %v1325
      %v1358 = vmul.f32 %v1269, %v1326
      %v1359 = vmul.f32 %v1273, %v1327
      %v1360 = vmul.f32 %v1275, %v1328
      %v1361 = vmul.f32 %v1277, %v1329
      %v1362 = vmul.f32 %v1279, %v1330
      %v1363 = vmul.f32 %v1283, %v1331
      %v1364 = vmul.f32 %v1285, %v1332
      %v1365 = vmul.f32 %v1287, %v1333
      %v1366 = vmul.f32 %v1289, %v1334
      %v1367 = vmul.f32 %v1293, %v1335
      %v1368 = vmul.f32 %v1295, %v1336
      %v1369 = vmul.f32 %v1297, %v1337
      %v1370 = vmul.f32 %v1299, %v1338
      %v1371 = vmul.f32 %v1303, %v1339
      %v1372 = vmul.f32 %v1305, %v1340
      %v1373 = vmul.f32 %v1307, %v1341
      %v1374 = vmul.f32 %v1309, %v1342
      %v1375 = vmul.f32 %v1343, 0.044715
      %v1376 = vmul.f32 %v1344, 0.044715
      %v1377 = vmul.f32 %v1345, 0.044715
      %v1378 = vmul.f32 %v1346, 0.044715
      %v1379 = vmul.f32 %v1347, 0.044715
      %v1380 = vmul.f32 %v1348, 0.044715
      %v1381 = vmul.f32 %v1349, 0.044715
      %v1382 = vmul.f32 %v1350, 0.044715
      %v1383 = vmul.f32 %v1351, 0.044715
      %v1384 = vmul.f32 %v1352, 0.044715
      %v1385 = vmul.f32 %v1353, 0.044715
      %v1386 = vmul.f32 %v1354, 0.044715
      %v1387 = vmul.f32 %v1355, 0.044715
      %v1388 = vmul.f32 %v1356, 0.044715
      %v1389 = vmul.f32 %v1357, 0.044715
      %v1390 = vmul.f32 %v1358, 0.044715
      %v1391 = vmul.f32 %v1359, 0.044715
      %v1392 = vmul.f32 %v1360, 0.044715
      %v1393 = vmul.f32 %v1361, 0.044715
      %v1394 = vmul.f32 %v1362, 0.044715
      %v1395 = vmul.f32 %v1363, 0.044715
      %v1396 = vmul.f32 %v1364, 0.044715
      %v1397 = vmul.f32 %v1365, 0.044715
      %v1398 = vmul.f32 %v1366, 0.044715
      %v1399 = vmul.f32 %v1367, 0.044715
      %v1400 = vmul.f32 %v1368, 0.044715
      %v1401 = vmul.f32 %v1369, 0.044715
      %v1402 = vmul.f32 %v1370, 0.044715
      %v1403 = vmul.f32 %v1371, 0.044715
      %v1404 = vmul.f32 %v1372, 0.044715
      %v1405 = vmul.f32 %v1373, 0.044715
      %v1406 = vmul.f32 %v1374, 0.044715
      %v1407 = vadd.f32 %v1233, %v1375
      %v1408 = vadd.f32 %v1235, %v1376
      %v1409 = vadd.f32 %v1237, %v1377
      %v1410 = vadd.f32 %v1239, %v1378
      %v1411 = vadd.f32 %v1243, %v1379
      %v1412 = vadd.f32 %v1245, %v1380
      %v1413 = vadd.f32 %v1247, %v1381
      %v1414 = vadd.f32 %v1249, %v1382
      %v1415 = vadd.f32 %v1253, %v1383
      %v1416 = vadd.f32 %v1255, %v1384
      %v1417 = vadd.f32 %v1257, %v1385
      %v1418 = vadd.f32 %v1259, %v1386
      %v1419 = vadd.f32 %v1263, %v1387
      %v1420 = vadd.f32 %v1265, %v1388
      %v1421 = vadd.f32 %v1267, %v1389
      %v1422 = vadd.f32 %v1269, %v1390
      %v1423 = vadd.f32 %v1273, %v1391
      %v1424 = vadd.f32 %v1275, %v1392
      %v1425 = vadd.f32 %v1277, %v1393
      %v1426 = vadd.f32 %v1279, %v1394
      %v1427 = vadd.f32 %v1283, %v1395
      %v1428 = vadd.f32 %v1285, %v1396
      %v1429 = vadd.f32 %v1287, %v1397
      %v1430 = vadd.f32 %v1289, %v1398
      %v1431 = vadd.f32 %v1293, %v1399
      %v1432 = vadd.f32 %v1295, %v1400
      %v1433 = vadd.f32 %v1297, %v1401
      %v1434 = vadd.f32 %v1299, %v1402
      %v1435 = vadd.f32 %v1303, %v1403
      %v1436 = vadd.f32 %v1305, %v1404
      %v1437 = vadd.f32 %v1307, %v1405
      %v1438 = vadd.f32 %v1309, %v1406
      %v1439 = vmul.f32 %v1407, 0.7978846
      %v1440 = vmul.f32 %v1408, 0.7978846
      %v1441 = vmul.f32 %v1409, 0.7978846
      %v1442 = vmul.f32 %v1410, 0.7978846
      %v1443 = vmul.f32 %v1411, 0.7978846
      %v1444 = vmul.f32 %v1412, 0.7978846
      %v1445 = vmul.f32 %v1413, 0.7978846
      %v1446 = vmul.f32 %v1414, 0.7978846
      %v1447 = vmul.f32 %v1415, 0.7978846
      %v1448 = vmul.f32 %v1416, 0.7978846
      %v1449 = vmul.f32 %v1417, 0.7978846
      %v1450 = vmul.f32 %v1418, 0.7978846
      %v1451 = vmul.f32 %v1419, 0.7978846
      %v1452 = vmul.f32 %v1420, 0.7978846
      %v1453 = vmul.f32 %v1421, 0.7978846
      %v1454 = vmul.f32 %v1422, 0.7978846
      %v1455 = vmul.f32 %v1423, 0.7978846
      %v1456 = vmul.f32 %v1424, 0.7978846
      %v1457 = vmul.f32 %v1425, 0.7978846
      %v1458 = vmul.f32 %v1426, 0.7978846
      %v1459 = vmul.f32 %v1427, 0.7978846
      %v1460 = vmul.f32 %v1428, 0.7978846
      %v1461 = vmul.f32 %v1429, 0.7978846
      %v1462 = vmul.f32 %v1430, 0.7978846
      %v1463 = vmul.f32 %v1431, 0.7978846
      %v1464 = vmul.f32 %v1432, 0.7978846
      %v1465 = vmul.f32 %v1433, 0.7978846
      %v1466 = vmul.f32 %v1434, 0.7978846
      %v1467 = vmul.f32 %v1435, 0.7978846
      %v1468 = vmul.f32 %v1436, 0.7978846
      %v1469 = vmul.f32 %v1437, 0.7978846
      %v1470 = vmul.f32 %v1438, 0.7978846
      %v1471 = vtanh.pop %v1439
      %v1472 = vtanh.pop %v1440
      %v1473 = vtanh.pop %v1441
      %v1474 = vtanh.pop %v1442
      %v1475 = vtanh.pop %v1443
      %v1476 = vtanh.pop %v1444
      %v1477 = vtanh.pop %v1445
      %v1478 = vtanh.pop %v1446
      %v1479 = vtanh.pop %v1447
      %v1480 = vtanh.pop %v1448
      %v1481 = vtanh.pop %v1449
      %v1482 = vtanh.pop %v1450
      %v1483 = vtanh.pop %v1451
      %v1484 = vtanh.pop %v1452
      %v1485 = vtanh.pop %v1453
      %v1486 = vtanh.pop %v1454
      %v1487 = vtanh.pop %v1455
      %v1488 = vtanh.pop %v1456
      %v1489 = vtanh.pop %v1457
      %v1490 = vtanh.pop %v1458
      %v1491 = vtanh.pop %v1459
      %v1492 = vtanh.pop %v1460
      %v1493 = vtanh.pop %v1461
      %v1494 = vtanh.pop %v1462
      %v1495 = vtanh.pop %v1463
      %v1496 = vtanh.pop %v1464
      %v1497 = vtanh.pop %v1465
      %v1498 = vtanh.pop %v1466
      %v1499 = vtanh.pop %v1467
      %v1500 = vtanh.pop %v1468
      %v1501 = vtanh.pop %v1469
      %v1502 = vtanh.pop %v1470
      %v1503 = vadd.f32 %v1471, 1.0
      %v1504 = vadd.f32 %v1472, 1.0
      %v1505 = vadd.f32 %v1473, 1.0
      %v1506 = vadd.f32 %v1474, 1.0
      %v1507 = vadd.f32 %v1475, 1.0
      %v1508 = vadd.f32 %v1476, 1.0
      %v1509 = vadd.f32 %v1477, 1.0
      %v1510 = vadd.f32 %v1478, 1.0
      %v1511 = vadd.f32 %v1479, 1.0
      %v1512 = vadd.f32 %v1480, 1.0
      %v1513 = vadd.f32 %v1481, 1.0
      %v1514 = vadd.f32 %v1482, 1.0
      %v1515 = vadd.f32 %v1483, 1.0
      %v1516 = vadd.f32 %v1484, 1.0
      %v1517 = vadd.f32 %v1485, 1.0
      %v1518 = vadd.f32 %v1486, 1.0
      %v1519 = vadd.f32 %v1487, 1.0
      %v1520 = vadd.f32 %v1488, 1.0
      %v1521 = vadd.f32 %v1489, 1.0
      %v1522 = vadd.f32 %v1490, 1.0
      %v1523 = vadd.f32 %v1491, 1.0
      %v1524 = vadd.f32 %v1492, 1.0
      %v1525 = vadd.f32 %v1493, 1.0
      %v1526 = vadd.f32 %v1494, 1.0
      %v1527 = vadd.f32 %v1495, 1.0
      %v1528 = vadd.f32 %v1496, 1.0
      %v1529 = vadd.f32 %v1497, 1.0
      %v1530 = vadd.f32 %v1498, 1.0
      %v1531 = vadd.f32 %v1499, 1.0
      %v1532 = vadd.f32 %v1500, 1.0
      %v1533 = vadd.f32 %v1501, 1.0
      %v1534 = vadd.f32 %v1502, 1.0
      %v1535 = vmul.f32 %v1503, 0.5
      %v1536 = vmul.f32 %v1504, 0.5
      %v1537 = vmul.f32 %v1505, 0.5
      %v1538 = vmul.f32 %v1506, 0.5
      %v1539 = vmul.f32 %v1507, 0.5
      %v1540 = vmul.f32 %v1508, 0.5
      %v1541 = vmul.f32 %v1509, 0.5
      %v1542 = vmul.f32 %v1510, 0.5
      %v1543 = vmul.f32 %v1511, 0.5
      %v1544 = vmul.f32 %v1512, 0.5
      %v1545 = vmul.f32 %v1513, 0.5
      %v1546 = vmul.f32 %v1514, 0.5
      %v1547 = vmul.f32 %v1515, 0.5
      %v1548 = vmul.f32 %v1516, 0.5
      %v1549 = vmul.f32 %v1517, 0.5
      %v1550 = vmul.f32 %v1518, 0.5
      %v1551 = vmul.f32 %v1519, 0.5
      %v1552 = vmul.f32 %v1520, 0.5
      %v1553 = vmul.f32 %v1521, 0.5
      %v1554 = vmul.f32 %v1522, 0.5
      %v1555 = vmul.f32 %v1523, 0.5
      %v1556 = vmul.f32 %v1524, 0.5
      %v1557 = vmul.f32 %v1525, 0.5
      %v1558 = vmul.f32 %v1526, 0.5
      %v1559 = vmul.f32 %v1527, 0.5
      %v1560 = vmul.f32 %v1528, 0.5
      %v1561 = vmul.f32 %v1529, 0.5
      %v1562 = vmul.f32 %v1530, 0.5
      %v1563 = vmul.f32 %v1531, 0.5
      %v1564 = vmul.f32 %v1532, 0.5
      %v1565 = vmul.f32 %v1533, 0.5
      %v1566 = vmul.f32 %v1534, 0.5
      %v1567 = vmul.f32 %v1233, %v1535
      %v1568 = vmul.f32 %v1235, %v1536
      %v1569 = vmul.f32 %v1237, %v1537
      %v1570 = vmul.f32 %v1239, %v1538
      %v1571 = vmul.f32 %v1243, %v1539
      %v1572 = vmul.f32 %v1245, %v1540
      %v1573 = vmul.f32 %v1247, %v1541
      %v1574 = vmul.f32 %v1249, %v1542
      %v1575 = vmul.f32 %v1253, %v1543
      %v1576 = vmul.f32 %v1255, %v1544
      %v1577 = vmul.f32 %v1257, %v1545
      %v1578 = vmul.f32 %v1259, %v1546
      %v1579 = vmul.f32 %v1263, %v1547
      %v1580 = vmul.f32 %v1265, %v1548
      %v1581 = vmul.f32 %v1267, %v1549
      %v1582 = vmul.f32 %v1269, %v1550
      %v1583 = vmul.f32 %v1273, %v1551
      %v1584 = vmul.f32 %v1275, %v1552
      %v1585 = vmul.f32 %v1277, %v1553
      %v1586 = vmul.f32 %v1279, %v1554
      %v1587 = vmul.f32 %v1283, %v1555
      %v1588 = vmul.f32 %v1285, %v1556
      %v1589 = vmul.f32 %v1287, %v1557
      %v1590 = vmul.f32 %v1289, %v1558
      %v1591 = vmul.f32 %v1293, %v1559
      %v1592 = vmul.f32 %v1295, %v1560
      %v1593 = vmul.f32 %v1297, %v1561
      %v1594 = vmul.f32 %v1299, %v1562
      %v1595 = vmul.f32 %v1303, %v1563
      %v1596 = vmul.f32 %v1305, %v1564
      %v1597 = vmul.f32 %v1307, %v1565
      %v1598 = vmul.f32 %v1309, %v1566
      %v1599 = vpack.c.bf16 %v1569, %v1567
      %v1600 = vpack.c.bf16 %v1570, %v1568
      %v1601 = vpack.c.bf16 %v1573, %v1571
      %v1602 = vpack.c.bf16 %v1574, %v1572
      %v1603 = vpack.c.bf16 %v1577, %v1575
      %v1604 = vpack.c.bf16 %v1578, %v1576
      %v1605 = vpack.c.bf16 %v1581, %v1579
      %v1606 = vpack.c.bf16 %v1582, %v1580
      %v1607 = vpack.c.bf16 %v1585, %v1583
      %v1608 = vpack.c.bf16 %v1586, %v1584
      %v1609 = vpack.c.bf16 %v1589, %v1587
      %v1610 = vpack.c.bf16 %v1590, %v1588
      %v1611 = vpack.c.bf16 %v1593, %v1591
      %v1612 = vpack.c.bf16 %v1594, %v1592
      %v1613 = vpack.c.bf16 %v1597, %v1595
      %v1614 = vpack.c.bf16 %v1598, %v1596
      %v1615 = vld [vmem:[%s5] sm:$0xf]
      %v1616 = vld [vmem:[%s5 + $0x4] sm:$0xf]
      %v1617 = vld [vmem:[%s5 + $0x8] sm:$0xf]
      %v1618 = vld [vmem:[%s5 + $0xc] sm:$0xf]
      %v1619 = vld [vmem:[%s5 + $0x10] sm:$0xf]
      %v1620 = vld [vmem:[%s5 + $0x14] sm:$0xf]
      %v1621 = vld [vmem:[%s5 + $0x18] sm:$0xf]
      %v1622 = vld [vmem:[%s5 + $0x1c] sm:$0xf]
      %v1623 = vld [vmem:[%s5 + $0x20] sm:$0xf]
      %v1624 = vld [vmem:[%s5 + $0x24] sm:$0xf]
      %v1625 = vld [vmem:[%s5 + $0x28] sm:$0xf]
      %v1626 = vld [vmem:[%s5 + $0x2c] sm:$0xf]
      %v1627 = vld [vmem:[%s5 + $0x30] sm:$0xf]
      %v1628 = vld [vmem:[%s5 + $0x34] sm:$0xf]
      %v1629 = vld [vmem:[%s5 + $0x38] sm:$0xf]
      %v1630 = vld [vmem:[%s5 + $0x3c] sm:$0xf]
      %v1631 = vld [vmem:[%s5 + $0x40] sm:$0xf]
      %v1632 = vld [vmem:[%s5 + $0x44] sm:$0xf]
      %v1633 = vld [vmem:[%s5 + $0x48] sm:$0xf]
      %v1634 = vld [vmem:[%s5 + $0x4c] sm:$0xf]
      %v1635 = vld [vmem:[%s5 + $0x50] sm:$0xf]
      %v1636 = vld [vmem:[%s5 + $0x54] sm:$0xf]
      %v1637 = vld [vmem:[%s5 + $0x58] sm:$0xf]
      %v1638 = vld [vmem:[%s5 + $0x5c] sm:$0xf]
      %v1639 = vld [vmem:[%s5 + $0x60] sm:$0xf]
      %v1640 = vld [vmem:[%s5 + $0x64] sm:$0xf]
      %v1641 = vld [vmem:[%s5 + $0x68] sm:$0xf]
      %v1642 = vld [vmem:[%s5 + $0x6c] sm:$0xf]
      %v1643 = vld [vmem:[%s5 + $0x70] sm:$0xf]
      %v1644 = vld [vmem:[%s5 + $0x74] sm:$0xf]
      %v1645 = vld [vmem:[%s5 + $0x78] sm:$0xf]
      %v1646 = vld [vmem:[%s5 + $0x7c] sm:$0xf]
      %v1647 = vld [vmem:[%s6] sm:$0x1]
      %v1649 = vlaneseq
      %v1650 = vshrl.u32 %v1649, 7
      %v1651 = vsub.s32 0, %v1650
      %v1652 = vrot.slane %v1647, %v1651
      %v1686 = vunpack.c.l.b16 %v1615
      %v1687 = vunpack.c.l.b16 %v1616
      %v1688 = vunpack.c.l.b16 %v1617
      %v1689 = vunpack.c.l.b16 %v1618
      %v1690 = vunpack.c.l.b16 %v1619
      %v1691 = vunpack.c.l.b16 %v1620
      %v1692 = vunpack.c.l.b16 %v1621
      %v1693 = vunpack.c.l.b16 %v1622
      %v1694 = vunpack.c.l.b16 %v1623
      %v1695 = vunpack.c.l.b16 %v1624
      %v1696 = vunpack.c.l.b16 %v1625
      %v1697 = vunpack.c.l.b16 %v1626
      %v1698 = vunpack.c.l.b16 %v1627
      %v1699 = vunpack.c.l.b16 %v1628
      %v1700 = vunpack.c.l.b16 %v1629
      %v1701 = vunpack.c.l.b16 %v1630
      %v1702 = vunpack.c.l.b16 %v1631
      %v1703 = vunpack.c.l.b16 %v1632
      %v1704 = vunpack.c.l.b16 %v1633
      %v1705 = vunpack.c.l.b16 %v1634
      %v1706 = vunpack.c.l.b16 %v1635
      %v1707 = vunpack.c.l.b16 %v1636
      %v1708 = vunpack.c.l.b16 %v1637
      %v1709 = vunpack.c.l.b16 %v1638
      %v1710 = vunpack.c.l.b16 %v1639
      %v1711 = vunpack.c.l.b16 %v1640
      %v1712 = vunpack.c.l.b16 %v1641
      %v1713 = vunpack.c.l.b16 %v1642
      %v1714 = vunpack.c.l.b16 %v1643
      %v1715 = vunpack.c.l.b16 %v1644
      %v1716 = vunpack.c.l.b16 %v1645
      %v1717 = vunpack.c.l.b16 %v1646
      %v1718 = vpack.c.b16 %v1687, %v1686
      %v1719 = vpack.c.b16 %v1689, %v1688
      %v1720 = vpack.c.b16 %v1691, %v1690
      %v1721 = vpack.c.b16 %v1693, %v1692
      %v1722 = vpack.c.b16 %v1695, %v1694
      %v1723 = vpack.c.b16 %v1697, %v1696
      %v1724 = vpack.c.b16 %v1699, %v1698
      %v1725 = vpack.c.b16 %v1701, %v1700
      %v1726 = vpack.c.b16 %v1703, %v1702
      %v1727 = vpack.c.b16 %v1705, %v1704
      %v1728 = vpack.c.b16 %v1707, %v1706
      %v1729 = vpack.c.b16 %v1709, %v1708
      %v1730 = vpack.c.b16 %v1711, %v1710
      %v1731 = vpack.c.b16 %v1713, %v1712
      %v1732 = vpack.c.b16 %v1715, %v1714
      %v1733 = vpack.c.b16 %v1717, %v1716
      %1750 = vmatprep.subr.bf16.mxu0 0
      %1751 = vmatpush1.bf16.msra.mxu0 %v1718
      %1752 = vmatprep.subr.bf16.mxu0 0
      %1753 = vmatpush1.bf16.msra.mxu0 %v1719
      %1754 = vmatprep.subr.bf16.mxu0 0
      %1755 = vmatpush1.bf16.msra.mxu0 %v1720
      %1756 = vmatprep.subr.bf16.mxu0 0
      %1757 = vmatpush1.bf16.msra.mxu0 %v1721
      %1758 = vmatprep.subr.bf16.mxu0 0
      %1759 = vmatpush1.bf16.msra.mxu0 %v1722
      %1760 = vmatprep.subr.bf16.mxu0 0
      %1761 = vmatpush1.bf16.msra.mxu0 %v1723
      %1762 = vmatprep.subr.bf16.mxu0 0
      %1763 = vmatpush1.bf16.msra.mxu0 %v1724
      %1764 = vmatprep.subr.bf16.mxu0 0
      %1765 = vmatpush1.bf16.msra.mxu0 %v1725
      %1766 = vmatprep.subr.bf16.mxu0 0
      %1767 = vmatpush1.bf16.msra.mxu0 %v1726
      %1768 = vmatprep.subr.bf16.mxu0 0
      %1769 = vmatpush1.bf16.msra.mxu0 %v1727
      %1770 = vmatprep.subr.bf16.mxu0 0
      %1771 = vmatpush1.bf16.msra.mxu0 %v1728
      %1772 = vmatprep.subr.bf16.mxu0 0
      %1773 = vmatpush1.bf16.msra.mxu0 %v1729
      %1774 = vmatprep.subr.bf16.mxu0 0
      %1775 = vmatpush1.bf16.msra.mxu0 %v1730
      %1776 = vmatprep.subr.bf16.mxu0 0
      %1777 = vmatpush1.bf16.msra.mxu0 %v1731
      %1778 = vmatprep.subr.bf16.mxu0 0
      %1779 = vmatpush1.bf16.msra.mxu0 %v1732
      %1780 = vmatprep.subr.bf16.mxu0 0
      %1781 = vmatpush1.bf16.msra.mxu0 %v1733
      %1782 = vmatprep.mubr.bf16.mxu0 %v1600
      %1783 = vmatmul.mubr.bf16.gmra.mrb[0].mxu0 %v1599
      %v1784 = vpop.f32.mrb[0].mxu0
      %v1785 = vadd.f32 %v1652, %v1784
      %v1786 = vpop.f32.mrb[0].mxu0
      %v1787 = vpop.f32.mrb[0].mxu0
      %v1788 = vadd.f32 %v1652, %v1787
      %v1789 = vpop.f32.mrb[0].mxu0
      %1790 = vmatprep.mubr.bf16.mxu0 %v1602
      %1791 = vmatmul.mubr.bf16.gmra.mrb[0].mxu0 %v1601
      %v1792 = vpop.f32.mrb[0].mxu0
      %v1793 = vadd.f32 %v1652, %v1792
      %v1794 = vpop.f32.mrb[0].mxu0
      %v1795 = vpop.f32.mrb[0].mxu0
      %v1796 = vadd.f32 %v1652, %v1795
      %v1797 = vpop.f32.mrb[0].mxu0
      %1798 = vmatprep.mubr.bf16.mxu0 %v1604
      %1799 = vmatmul.mubr.bf16.gmra.mrb[0].mxu0 %v1603
      %v1800 = vpop.f32.mrb[0].mxu0
      %v1801 = vadd.f32 %v1652, %v1800
      %v1802 = vpop.f32.mrb[0].mxu0
      %v1803 = vpop.f32.mrb[0].mxu0
      %v1804 = vadd.f32 %v1652, %v1803
      %v1805 = vpop.f32.mrb[0].mxu0
      %1806 = vmatprep.mubr.bf16.mxu0 %v1606
      %1807 = vmatmul.mubr.bf16.gmra.mrb[0].mxu0 %v1605
      %v1808 = vpop.f32.mrb[0].mxu0
      %v1809 = vadd.f32 %v1652, %v1808
      %v1810 = vpop.f32.mrb[0].mxu0
      %v1811 = vpop.f32.mrb[0].mxu0
      %v1812 = vadd.f32 %v1652, %v1811
      %v1813 = vpop.f32.mrb[0].mxu0
      %1814 = vmatprep.mubr.bf16.mxu0 %v1608
      %1815 = vmatmul.mubr.bf16.gmra.mrb[0].mxu0 %v1607
      %v1816 = vpop.f32.mrb[0].mxu0
      %v1817 = vadd.f32 %v1652, %v1816
      %v1818 = vpop.f32.mrb[0].mxu0
      %v1819 = vpop.f32.mrb[0].mxu0
      %v1820 = vadd.f32 %v1652, %v1819
      %v1821 = vpop.f32.mrb[0].mxu0
      %1822 = vmatprep.mubr.bf16.mxu0 %v1610
      %1823 = vmatmul.mubr.bf16.gmra.mrb[0].mxu0 %v1609
      %v1824 = vpop.f32.mrb[0].mxu0
      %v1825 = vadd.f32 %v1652, %v1824
      %v1826 = vpop.f32.mrb[0].mxu0
      %v1827 = vpop.f32.mrb[0].mxu0
      %v1828 = vadd.f32 %v1652, %v1827
      %v1829 = vpop.f32.mrb[0].mxu0
      %1830 = vmatprep.mubr.bf16.mxu0 %v1612
      %1831 = vmatmul.mubr.bf16.gmra.mrb[0].mxu0 %v1611
      %v1832 = vpop.f32.mrb[0].mxu0
      %v1833 = vadd.f32 %v1652, %v1832
      %v1834 = vpop.f32.mrb[0].mxu0
      %v1835 = vpop.f32.mrb[0].mxu0
      %v1836 = vadd.f32 %v1652, %v1835
      %v1837 = vpop.f32.mrb[0].mxu0
      %1838 = vmatprep.mubr.bf16.mxu0 %v1614
      %1839 = vmatmul.mubr.bf16.gmra.mrb[0].mxu0 %v1613
      %v1840 = vpop.f32.mrb[0].mxu0
      %v1841 = vadd.f32 %v1652, %v1840
      %v1842 = vpop.f32.mrb[0].mxu0
      %v1843 = vpop.f32.mrb[0].mxu0
      %v1844 = vadd.f32 %v1652, %v1843
      %v1845 = vpop.f32.mrb[0].mxu0
      %1846 = vdwg.mxu0
      %v1847 = vmul.f32 %v1785, %v1785
      %v1848 = vmul.f32 %v1788, %v1788
      %v1849 = vmul.f32 %v1793, %v1793
      %v1850 = vmul.f32 %v1796, %v1796
      %v1851 = vmul.f32 %v1801, %v1801
      %v1852 = vmul.f32 %v1804, %v1804
      %v1853 = vmul.f32 %v1809, %v1809
      %v1854 = vmul.f32 %v1812, %v1812
      %v1855 = vmul.f32 %v1817, %v1817
      %v1856 = vmul.f32 %v1820, %v1820
      %v1857 = vmul.f32 %v1825, %v1825
      %v1858 = vmul.f32 %v1828, %v1828
      %v1859 = vmul.f32 %v1833, %v1833
      %v1860 = vmul.f32 %v1836, %v1836
      %v1861 = vmul.f32 %v1841, %v1841
      %v1862 = vmul.f32 %v1844, %v1844
      %v1863 = vmul.f32 %v1785, %v1847
      %v1864 = vmul.f32 %v1788, %v1848
      %v1865 = vmul.f32 %v1793, %v1849
      %v1866 = vmul.f32 %v1796, %v1850
      %v1867 = vmul.f32 %v1801, %v1851
      %v1868 = vmul.f32 %v1804, %v1852
      %v1869 = vmul.f32 %v1809, %v1853
      %v1870 = vmul.f32 %v1812, %v1854
      %v1871 = vmul.f32 %v1817, %v1855
      %v1872 = vmul.f32 %v1820, %v1856
      %v1873 = vmul.f32 %v1825, %v1857
      %v1874 = vmul.f32 %v1828, %v1858
      %v1875 = vmul.f32 %v1833, %v1859
      %v1876 = vmul.f32 %v1836, %v1860
      %v1877 = vmul.f32 %v1841, %v1861
      %v1878 = vmul.f32 %v1844, %v1862
      %v1879 = vmul.f32 %v1863, 0.044715
      %v1880 = vmul.f32 %v1864, 0.044715
      %v1881 = vmul.f32 %v1865, 0.044715
      %v1882 = vmul.f32 %v1866, 0.044715
      %v1883 = vmul.f32 %v1867, 0.044715
      %v1884 = vmul.f32 %v1868, 0.044715
      %v1885 = vmul.f32 %v1869, 0.044715
      %v1886 = vmul.f32 %v1870, 0.044715
      %v1887 = vmul.f32 %v1871, 0.044715
      %v1888 = vmul.f32 %v1872, 0.044715
      %v1889 = vmul.f32 %v1873, 0.044715
      %v1890 = vmul.f32 %v1874, 0.044715
      %v1891 = vmul.f32 %v1875, 0.044715
      %v1892 = vmul.f32 %v1876, 0.044715
      %v1893 = vmul.f32 %v1877, 0.044715
      %v1894 = vmul.f32 %v1878, 0.044715
      %v1895 = vadd.f32 %v1785, %v1879
      %v1896 = vadd.f32 %v1788, %v1880
      %v1897 = vadd.f32 %v1793, %v1881
      %v1898 = vadd.f32 %v1796, %v1882
      %v1899 = vadd.f32 %v1801, %v1883
      %v1900 = vadd.f32 %v1804, %v1884
      %v1901 = vadd.f32 %v1809, %v1885
      %v1902 = vadd.f32 %v1812, %v1886
      %v1903 = vadd.f32 %v1817, %v1887
      %v1904 = vadd.f32 %v1820, %v1888
      %v1905 = vadd.f32 %v1825, %v1889
      %v1906 = vadd.f32 %v1828, %v1890
      %v1907 = vadd.f32 %v1833, %v1891
      %v1908 = vadd.f32 %v1836, %v1892
      %v1909 = vadd.f32 %v1841, %v1893
      %v1910 = vadd.f32 %v1844, %v1894
      %v1911 = vmul.f32 %v1895, 0.7978846
      %v1912 = vmul.f32 %v1896, 0.7978846
      %v1913 = vmul.f32 %v1897, 0.7978846
      %v1914 = vmul.f32 %v1898, 0.7978846
      %v1915 = vmul.f32 %v1899, 0.7978846
      %v1916 = vmul.f32 %v1900, 0.7978846
      %v1917 = vmul.f32 %v1901, 0.7978846
      %v1918 = vmul.f32 %v1902, 0.7978846
      %v1919 = vmul.f32 %v1903, 0.7978846
      %v1920 = vmul.f32 %v1904, 0.7978846
      %v1921 = vmul.f32 %v1905, 0.7978846
      %v1922 = vmul.f32 %v1906, 0.7978846
      %v1923 = vmul.f32 %v1907, 0.7978846
      %v1924 = vmul.f32 %v1908, 0.7978846
      %v1925 = vmul.f32 %v1909, 0.7978846
      %v1926 = vmul.f32 %v1910, 0.7978846
      %v1927 = vtanh.pop %v1911
      %v1928 = vtanh.pop %v1912
      %v1929 = vtanh.pop %v1913
      %v1930 = vtanh.pop %v1914
      %v1931 = vtanh.pop %v1915
      %v1932 = vtanh.pop %v1916
      %v1933 = vtanh.pop %v1917
      %v1934 = vtanh.pop %v1918
      %v1935 = vtanh.pop %v1919
      %v1936 = vtanh.pop %v1920
      %v1937 = vtanh.pop %v1921
      %v1938 = vtanh.pop %v1922
      %v1939 = vtanh.pop %v1923
      %v1940 = vtanh.pop %v1924
      %v1941 = vtanh.pop %v1925
      %v1942 = vtanh.pop %v1926
      %v1943 = vadd.f32 %v1927, 1.0
      %v1944 = vadd.f32 %v1928, 1.0
      %v1945 = vadd.f32 %v1929, 1.0
      %v1946 = vadd.f32 %v1930, 1.0
      %v1947 = vadd.f32 %v1931, 1.0
      %v1948 = vadd.f32 %v1932, 1.0
      %v1949 = vadd.f32 %v1933, 1.0
      %v1950 = vadd.f32 %v1934, 1.0
      %v1951 = vadd.f32 %v1935, 1.0
      %v1952 = vadd.f32 %v1936, 1.0
      %v1953 = vadd.f32 %v1937, 1.0
      %v1954 = vadd.f32 %v1938, 1.0
      %v1955 = vadd.f32 %v1939, 1.0
      %v1956 = vadd.f32 %v1940, 1.0
      %v1957 = vadd.f32 %v1941, 1.0
      %v1958 = vadd.f32 %v1942, 1.0
      %v1959 = vmul.f32 %v1943, 0.5
      %v1960 = vmul.f32 %v1944, 0.5
      %v1961 = vmul.f32 %v1945, 0.5
      %v1962 = vmul.f32 %v1946, 0.5
      %v1963 = vmul.f32 %v1947, 0.5
      %v1964 = vmul.f32 %v1948, 0.5
      %v1965 = vmul.f32 %v1949, 0.5
      %v1966 = vmul.f32 %v1950, 0.5
      %v1967 = vmul.f32 %v1951, 0.5
      %v1968 = vmul.f32 %v1952, 0.5
      %v1969 = vmul.f32 %v1953, 0.5
      %v1970 = vmul.f32 %v1954, 0.5
      %v1971 = vmul.f32 %v1955, 0.5
      %v1972 = vmul.f32 %v1956, 0.5
      %v1973 = vmul.f32 %v1957, 0.5
      %v1974 = vmul.f32 %v1958, 0.5
      %v1975 = vmul.f32 %v1785, %v1959
      %v1976 = vmul.f32 %v1788, %v1960
      %v1977 = vmul.f32 %v1793, %v1961
      %v1978 = vmul.f32 %v1796, %v1962
      %v1979 = vmul.f32 %v1801, %v1963
      %v1980 = vmul.f32 %v1804, %v1964
      %v1981 = vmul.f32 %v1809, %v1965
      %v1982 = vmul.f32 %v1812, %v1966
      %v1983 = vmul.f32 %v1817, %v1967
      %v1984 = vmul.f32 %v1820, %v1968
      %v1985 = vmul.f32 %v1825, %v1969
      %v1986 = vmul.f32 %v1828, %v1970
      %v1987 = vmul.f32 %v1833, %v1971
      %v1988 = vmul.f32 %v1836, %v1972
      %v1989 = vmul.f32 %v1841, %v1973
      %v1990 = vmul.f32 %v1844, %v1974
      %v1991 = vpack.c.bf16 %v1976, %v1975
      %v1992 = vpack.c.bf16 %v1978, %v1977
      %v1993 = vpack.c.bf16 %v1980, %v1979
      %v1994 = vpack.c.bf16 %v1982, %v1981
      %v1995 = vpack.c.bf16 %v1984, %v1983
      %v1996 = vpack.c.bf16 %v1986, %v1985
      %v1997 = vpack.c.bf16 %v1988, %v1987
      %v1998 = vpack.c.bf16 %v1990, %v1989
      %v1999 = vld [vmem:[%s7] sm:$0xf]
      %v2000 = vld [vmem:[%s7 + $0x4] sm:$0xf]
      %v2001 = vld [vmem:[%s7 + $0x8] sm:$0xf]
      %v2002 = vld [vmem:[%s7 + $0xc] sm:$0xf]
      %v2003 = vld [vmem:[%s7 + $0x10] sm:$0xf]
      %v2004 = vld [vmem:[%s7 + $0x14] sm:$0xf]
      %v2005 = vld [vmem:[%s7 + $0x18] sm:$0xf]
      %v2006 = vld [vmem:[%s7 + $0x1c] sm:$0xf]
      %v2007 = vld [vmem:[%s7 + $0x20] sm:$0xf]
      %v2008 = vld [vmem:[%s7 + $0x24] sm:$0xf]
      %v2009 = vld [vmem:[%s7 + $0x28] sm:$0xf]
      %v2010 = vld [vmem:[%s7 + $0x2c] sm:$0xf]
      %v2011 = vld [vmem:[%s7 + $0x30] sm:$0xf]
      %v2012 = vld [vmem:[%s7 + $0x34] sm:$0xf]
      %v2013 = vld [vmem:[%s7 + $0x38] sm:$0xf]
      %v2014 = vld [vmem:[%s7 + $0x3c] sm:$0xf]
      %v2015 = vld [vmem:[%s8] sm:$0x1]
      %v2017 = vlaneseq
      %v2018 = vshrl.u32 %v2017, 7
      %v2019 = vsub.s32 0, %v2018
      %v2020 = vrot.slane %v2015, %v2019
      %v2038 = vunpack.c.l.b16 %v1999
      %v2039 = vunpack.c.l.b16 %v2000
      %v2040 = vunpack.c.l.b16 %v2001
      %v2041 = vunpack.c.l.b16 %v2002
      %v2042 = vunpack.c.l.b16 %v2003
      %v2043 = vunpack.c.l.b16 %v2004
      %v2044 = vunpack.c.l.b16 %v2005
      %v2045 = vunpack.c.l.b16 %v2006
      %v2046 = vunpack.c.l.b16 %v2007
      %v2047 = vunpack.c.l.b16 %v2008
      %v2048 = vunpack.c.l.b16 %v2009
      %v2049 = vunpack.c.l.b16 %v2010
      %v2050 = vunpack.c.l.b16 %v2011
      %v2051 = vunpack.c.l.b16 %v2012
      %v2052 = vunpack.c.l.b16 %v2013
      %v2053 = vunpack.c.l.b16 %v2014
      %v2054 = vpack.c.b16 %v2039, %v2038
      %v2055 = vpack.c.b16 %v2041, %v2040
      %v2056 = vpack.c.b16 %v2043, %v2042
      %v2057 = vpack.c.b16 %v2045, %v2044
      %v2058 = vpack.c.b16 %v2047, %v2046
      %v2059 = vpack.c.b16 %v2049, %v2048
      %v2060 = vpack.c.b16 %v2051, %v2050
      %v2061 = vpack.c.b16 %v2053, %v2052
      %2070 = vmatprep.subr.bf16.mxu0 0
      %2071 = vmatpush1.bf16.msra.mxu0 %v2054
      %2072 = vmatprep.subr.bf16.mxu0 0
      %2073 = vmatpush1.bf16.msra.mxu0 %v2055
      %2074 = vmatprep.subr.bf16.mxu0 0
      %2075 = vmatpush1.bf16.msra.mxu0 %v2056
      %2076 = vmatprep.subr.bf16.mxu0 0
      %2077 = vmatpush1.bf16.msra.mxu0 %v2057
      %2078 = vmatprep.subr.bf16.mxu0 0
      %2079 = vmatpush1.bf16.msra.mxu0 %v2058
      %2080 = vmatprep.subr.bf16.mxu0 0
      %2081 = vmatpush1.bf16.msra.mxu0 %v2059
      %2082 = vmatprep.subr.bf16.mxu0 0
      %2083 = vmatpush1.bf16.msra.mxu0 %v2060
      %2084 = vmatprep.subr.bf16.mxu0 0
      %2085 = vmatpush1.bf16.msra.mxu0 %v2061
      %2086 = vmatprep.subr.bf16.mxu0 0
      %2087 = vmatpush1.bf16.msra.mxu0 0
      %2088 = vmatprep.subr.bf16.mxu0 0
      %2089 = vmatpush1.bf16.msra.mxu0 0
      %2090 = vmatprep.subr.bf16.mxu0 0
      %2091 = vmatpush1.bf16.msra.mxu0 0
      %2092 = vmatprep.subr.bf16.mxu0 0
      %2093 = vmatpush1.bf16.msra.mxu0 0
      %2094 = vmatprep.subr.bf16.mxu0 0
      %2095 = vmatpush1.bf16.msra.mxu0 0
      %2096 = vmatprep.subr.bf16.mxu0 0
      %2097 = vmatpush1.bf16.msra.mxu0 0
      %2098 = vmatprep.subr.bf16.mxu0 0
      %2099 = vmatpush1.bf16.msra.mxu0 0
      %2100 = vmatprep.subr.bf16.mxu0 0
      %2101 = vmatpush1.bf16.msra.mxu0 0
      %2102 = vmatprep.mubr.bf16.mxu0 0
      %2103 = vmatmul.mubr.bf16.gmra.mrb[0].mxu0 %v1991
      %v2104 = vpop.f32.mrb[0].mxu0
      %v2105 = vadd.f32 %v2020, %v2104
      %v2106 = vpop.f32.mrb[0].mxu0
      %v2107 = vpop.f32.mrb[0].mxu0
      %v2108 = vadd.f32 %v2020, %v2107
      %v2109 = vpop.f32.mrb[0].mxu0
      %2110 = vmatprep.mubr.bf16.mxu0 0
      %2111 = vmatmul.mubr.bf16.gmra.mrb[0].mxu0 %v1992
      %v2112 = vpop.f32.mrb[0].mxu0
      %v2113 = vadd.f32 %v2020, %v2112
      %v2114 = vpop.f32.mrb[0].mxu0
      %v2115 = vpop.f32.mrb[0].mxu0
      %v2116 = vadd.f32 %v2020, %v2115
      %v2117 = vpop.f32.mrb[0].mxu0
      %2118 = vmatprep.mubr.bf16.mxu0 0
      %2119 = vmatmul.mubr.bf16.gmra.mrb[0].mxu0 %v1993
      %v2120 = vpop.f32.mrb[0].mxu0
      %v2121 = vadd.f32 %v2020, %v2120
      %v2122 = vpop.f32.mrb[0].mxu0
      %v2123 = vpop.f32.mrb[0].mxu0
      %v2124 = vadd.f32 %v2020, %v2123
      %v2125 = vpop.f32.mrb[0].mxu0
      %2126 = vmatprep.mubr.bf16.mxu0 0
      %2127 = vmatmul.mubr.bf16.gmra.mrb[0].mxu0 %v1994
      %v2128 = vpop.f32.mrb[0].mxu0
      %v2129 = vadd.f32 %v2020, %v2128
      %v2130 = vpop.f32.mrb[0].mxu0
      %v2131 = vpop.f32.mrb[0].mxu0
      %v2132 = vadd.f32 %v2020, %v2131
      %v2133 = vpop.f32.mrb[0].mxu0
      %2134 = vmatprep.mubr.bf16.mxu0 0
      %2135 = vmatmul.mubr.bf16.gmra.mrb[0].mxu0 %v1995
      %v2136 = vpop.f32.mrb[0].mxu0
      %v2137 = vadd.f32 %v2020, %v2136
      %v2138 = vpop.f32.mrb[0].mxu0
      %v2139 = vpop.f32.mrb[0].mxu0
      %v2140 = vadd.f32 %v2020, %v2139
      %v2141 = vpop.f32.mrb[0].mxu0
      %2142 = vmatprep.mubr.bf16.mxu0 0
      %2143 = vmatmul.mubr.bf16.gmra.mrb[0].mxu0 %v1996
      %v2144 = vpop.f32.mrb[0].mxu0
      %v2145 = vadd.f32 %v2020, %v2144
      %v2146 = vpop.f32.mrb[0].mxu0
      %v2147 = vpop.f32.mrb[0].mxu0
      %v2148 = vadd.f32 %v2020, %v2147
      %v2149 = vpop.f32.mrb[0].mxu0
      %2150 = vmatprep.mubr.bf16.mxu0 0
      %2151 = vmatmul.mubr.bf16.gmra.mrb[0].mxu0 %v1997
      %v2152 = vpop.f32.mrb[0].mxu0
      %v2153 = vadd.f32 %v2020, %v2152
      %v2154 = vpop.f32.mrb[0].mxu0
      %v2155 = vpop.f32.mrb[0].mxu0
      %v2156 = vadd.f32 %v2020, %v2155
      %v2157 = vpop.f32.mrb[0].mxu0
      %2158 = vmatprep.mubr.bf16.mxu0 0
      %2159 = vmatmul.mubr.bf16.gmra.mrb[0].mxu0 %v1998
      %v2160 = vpop.f32.mrb[0].mxu0
      %v2161 = vadd.f32 %v2020, %v2160
      %v2162 = vpop.f32.mrb[0].mxu0
      %v2163 = vpop.f32.mrb[0].mxu0
      %v2164 = vadd.f32 %v2020, %v2163
      %v2165 = vpop.f32.mrb[0].mxu0
      %2166 = vdwg.mxu0
      %2167 = vst [vmem:[%s396] sm:$0xff] %v2105
      %2168 = vst [vmem:[%s396 + $0x8] sm:$0xff] %v2108
      %2169 = vst [vmem:[%s396 + $0x10] sm:$0xff] %v2113
      %2170 = vst [vmem:[%s396 + $0x18] sm:$0xff] %v2116
      %2171 = vst [vmem:[%s396 + $0x20] sm:$0xff] %v2121
      %2172 = vst [vmem:[%s396 + $0x28] sm:$0xff] %v2124
      %2173 = vst [vmem:[%s396 + $0x30] sm:$0xff] %v2129
      %2174 = vst [vmem:[%s396 + $0x38] sm:$0xff] %v2132
      %2175 = vst [vmem:[%s396 + $0x40] sm:$0xff] %v2137
      %2176 = vst [vmem:[%s396 + $0x48] sm:$0xff] %v2140
      %2177 = vst [vmem:[%s396 + $0x50] sm:$0xff] %v2145
      %2178 = vst [vmem:[%s396 + $0x58] sm:$0xff] %v2148
      %2179 = vst [vmem:[%s396 + $0x60] sm:$0xff] %v2153
      %2180 = vst [vmem:[%s396 + $0x68] sm:$0xff] %v2156
      %2181 = vst [vmem:[%s396 + $0x70] sm:$0xff] %v2161
      %2182 = vst [vmem:[%s396 + $0x78] sm:$0xff] %v2164
      %v2183 = vmul.f32 %v2105, %v2105
      %v2184 = vmul.f32 %v2108, %v2108
      %v2185 = vmul.f32 %v2113, %v2113
      %v2186 = vmul.f32 %v2116, %v2116
      %v2187 = vmul.f32 %v2121, %v2121
      %v2188 = vmul.f32 %v2124, %v2124
      %v2189 = vmul.f32 %v2129, %v2129
      %v2190 = vmul.f32 %v2132, %v2132
      %v2191 = vmul.f32 %v2137, %v2137
      %v2192 = vmul.f32 %v2140, %v2140
      %v2193 = vmul.f32 %v2145, %v2145
      %v2194 = vmul.f32 %v2148, %v2148
      %v2195 = vmul.f32 %v2153, %v2153
      %v2196 = vmul.f32 %v2156, %v2156
      %v2197 = vmul.f32 %v2161, %v2161
      %v2198 = vmul.f32 %v2164, %v2164
      %2199 = vadd.xlane.f32.xlu0 %v2183
      %v2200 = vpop.xlane.xlu0 %2199
      %2201 = vadd.xlane.f32.xlu0 %v2184
      %v2202 = vpop.xlane.xlu0 %2201
      %2203 = vadd.xlane.f32.xlu0 %v2185
      %v2204 = vpop.xlane.xlu0 %2203
      %2205 = vadd.xlane.f32.xlu0 %v2186
      %v2206 = vpop.xlane.xlu0 %2205
      %2207 = vadd.xlane.f32.xlu0 %v2187
      %v2208 = vpop.xlane.xlu0 %2207
      %2209 = vadd.xlane.f32.xlu0 %v2188
      %v2210 = vpop.xlane.xlu0 %2209
      %2211 = vadd.xlane.f32.xlu0 %v2189
      %v2212 = vpop.xlane.xlu0 %2211
      %2213 = vadd.xlane.f32.xlu0 %v2190
      %v2214 = vpop.xlane.xlu0 %2213
      %2215 = vadd.xlane.f32.xlu0 %v2191
      %v2216 = vpop.xlane.xlu0 %2215
      %2217 = vadd.xlane.f32.xlu0 %v2192
      %v2218 = vpop.xlane.xlu0 %2217
      %2219 = vadd.xlane.f32.xlu0 %v2193
      %v2220 = vpop.xlane.xlu0 %2219
      %2221 = vadd.xlane.f32.xlu0 %v2194
      %v2222 = vpop.xlane.xlu0 %2221
      %2223 = vadd.xlane.f32.xlu0 %v2195
      %v2224 = vpop.xlane.xlu0 %2223
      %2225 = vadd.xlane.f32.xlu0 %v2196
      %v2226 = vpop.xlane.xlu0 %2225
      %2227 = vadd.xlane.f32.xlu0 %v2197
      %v2228 = vpop.xlane.xlu0 %2227
      %2229 = vadd.xlane.f32.xlu0 %v2198
      %v2230 = vpop.xlane.xlu0 %2229
      %v2231 = vmax.f32 %v2200, 1e-24
      %v2232 = vmax.f32 %v2202, 1e-24
      %v2233 = vmax.f32 %v2204, 1e-24
      %v2234 = vmax.f32 %v2206, 1e-24
      %v2235 = vmax.f32 %v2208, 1e-24
      %v2236 = vmax.f32 %v2210, 1e-24
      %v2237 = vmax.f32 %v2212, 1e-24
      %v2238 = vmax.f32 %v2214, 1e-24
      %v2239 = vmax.f32 %v2216, 1e-24
      %v2240 = vmax.f32 %v2218, 1e-24
      %v2241 = vmax.f32 %v2220, 1e-24
      %v2242 = vmax.f32 %v2222, 1e-24
      %v2243 = vmax.f32 %v2224, 1e-24
      %v2244 = vmax.f32 %v2226, 1e-24
      %v2245 = vmax.f32 %v2228, 1e-24
      %v2246 = vmax.f32 %v2230, 1e-24
      %v2247 = vrsqrt.pop %v2231
      %v2248 = vrsqrt.pop %v2232
      %v2249 = vrsqrt.pop %v2233
      %v2250 = vrsqrt.pop %v2234
      %v2251 = vrsqrt.pop %v2235
      %v2252 = vrsqrt.pop %v2236
      %v2253 = vrsqrt.pop %v2237
      %v2254 = vrsqrt.pop %v2238
      %v2255 = vrsqrt.pop %v2239
      %v2256 = vrsqrt.pop %v2240
      %v2257 = vrsqrt.pop %v2241
      %v2258 = vrsqrt.pop %v2242
      %v2259 = vrsqrt.pop %v2243
      %v2260 = vrsqrt.pop %v2244
      %v2261 = vrsqrt.pop %v2245
      %v2262 = vrsqrt.pop %v2246
      %v2263 = vmul.f32 %v2105, %v2247
      %v2264 = vmul.f32 %v2108, %v2248
      %v2265 = vmul.f32 %v2113, %v2249
      %v2266 = vmul.f32 %v2116, %v2250
      %v2267 = vmul.f32 %v2121, %v2251
      %v2268 = vmul.f32 %v2124, %v2252
      %v2269 = vmul.f32 %v2129, %v2253
      %v2270 = vmul.f32 %v2132, %v2254
      %v2271 = vmul.f32 %v2137, %v2255
      %v2272 = vmul.f32 %v2140, %v2256
      %v2273 = vmul.f32 %v2145, %v2257
      %v2274 = vmul.f32 %v2148, %v2258
      %v2275 = vmul.f32 %v2153, %v2259
      %v2276 = vmul.f32 %v2156, %v2260
      %v2277 = vmul.f32 %v2161, %v2261
      %v2278 = vmul.f32 %v2164, %v2262
      %v2279 = vld [vmem:[%s9] sm:$0xff]
      %v2280 = vld [vmem:[%s9 + $0x8] sm:$0xff]
      %v2281 = vld [vmem:[%s9 + $0x10] sm:$0xff]
      %v2282 = vld [vmem:[%s9 + $0x18] sm:$0xff]
      %v2283 = vld [vmem:[%s9 + $0x20] sm:$0xff]
      %v2284 = vld [vmem:[%s9 + $0x28] sm:$0xff]
      %v2285 = vld [vmem:[%s9 + $0x30] sm:$0xff]
      %v2286 = vld [vmem:[%s9 + $0x38] sm:$0xff]
      %v2287 = vld [vmem:[%s9 + $0x40] sm:$0xff]
      %v2288 = vld [vmem:[%s9 + $0x48] sm:$0xff]
      %v2289 = vld [vmem:[%s9 + $0x50] sm:$0xff]
      %v2290 = vld [vmem:[%s9 + $0x58] sm:$0xff]
      %v2291 = vld [vmem:[%s9 + $0x60] sm:$0xff]
      %v2292 = vld [vmem:[%s9 + $0x68] sm:$0xff]
      %v2293 = vld [vmem:[%s9 + $0x70] sm:$0xff]
      %v2294 = vld [vmem:[%s9 + $0x78] sm:$0xff]
      %2295 = vmatprep.subr.mxu0 0.0
      %2296 = vmatpush1.msra.mxu0 %v2279
      %2297 = vmatprep.subr.mxu0 0.0
      %2298 = vmatpush1.msra.mxu0 %v2280
      %2299 = vmatprep.subr.mxu0 0.0
      %2300 = vmatpush1.msra.mxu0 %v2281
      %2301 = vmatprep.subr.mxu0 0.0
      %2302 = vmatpush1.msra.mxu0 %v2282
      %2303 = vmatprep.subr.mxu0 0.0
      %2304 = vmatpush1.msra.mxu0 %v2283
      %2305 = vmatprep.subr.mxu0 0.0
      %2306 = vmatpush1.msra.mxu0 %v2284
      %2307 = vmatprep.subr.mxu0 0.0
      %2308 = vmatpush1.msra.mxu0 %v2285
      %2309 = vmatprep.subr.mxu0 0.0
      %2310 = vmatpush1.msra.mxu0 %v2286
      %2311 = vmatprep.subr.mxu0 0.0
      %2312 = vmatpush1.msra.mxu0 %v2287
      %2313 = vmatprep.subr.mxu0 0.0
      %2314 = vmatpush1.msra.mxu0 %v2288
      %2315 = vmatprep.subr.mxu0 0.0
      %2316 = vmatpush1.msra.mxu0 %v2289
      %2317 = vmatprep.subr.mxu0 0.0
      %2318 = vmatpush1.msra.mxu0 %v2290
      %2319 = vmatprep.subr.mxu0 0.0
      %2320 = vmatpush1.msra.mxu0 %v2291
      %2321 = vmatprep.subr.mxu0 0.0
      %2322 = vmatpush1.msra.mxu0 %v2292
      %2323 = vmatprep.subr.mxu0 0.0
      %2324 = vmatpush1.msra.mxu0 %v2293
      %2325 = vmatprep.subr.mxu0 0.0
      %2326 = vmatpush1.msra.mxu0 %v2294
      %2327 = vmatprep.subr.mxu0 0.0
      %2328 = vmatpush1.msra.mxu0 0.0
      %2329 = vmatprep.subr.mxu0 0.0
      %2330 = vmatpush1.msra.mxu0 0.0
      %2331 = vmatprep.subr.mxu0 0.0
      %2332 = vmatpush1.msra.mxu0 0.0
      %2333 = vmatprep.subr.mxu0 0.0
      %2334 = vmatpush1.msra.mxu0 0.0
      %2335 = vmatprep.subr.mxu0 0.0
      %2336 = vmatpush1.msra.mxu0 0.0
      %2337 = vmatprep.subr.mxu0 0.0
      %2338 = vmatpush1.msra.mxu0 0.0
      %2339 = vmatprep.subr.mxu0 0.0
      %2340 = vmatpush1.msra.mxu0 0.0
      %2341 = vmatprep.subr.mxu0 0.0
      %2342 = vmatpush1.msra.mxu0 0.0
      %2343 = vmatprep.subr.mxu0 0.0
      %2344 = vmatpush1.msra.mxu0 0.0
      %2345 = vmatprep.subr.mxu0 0.0
      %2346 = vmatpush1.msra.mxu0 0.0
      %2347 = vmatprep.subr.mxu0 0.0
      %2348 = vmatpush1.msra.mxu0 0.0
      %2349 = vmatprep.subr.mxu0 0.0
      %2350 = vmatpush1.msra.mxu0 0.0
      %2351 = vmatprep.subr.mxu0 0.0
      %2352 = vmatpush1.msra.mxu0 0.0
      %2353 = vmatprep.subr.mxu0 0.0
      %2354 = vmatpush1.msra.mxu0 0.0
      %2355 = vmatprep.subr.mxu0 0.0
      %2356 = vmatpush1.msra.mxu0 0.0
      %2357 = vmatprep.subr.mxu0 0.0
      %2358 = vmatpush1.msra.mxu0 0.0
      %2359 = vmatprep.mubr.f32.mxu0 0.0
      %2360 = vmatmul.mubr.f32.gmra.mrb[0].mxu0 %v2263
      %v2361 = vpop.f32.mrb[0].mxu0
      %v2362 = vadd.f32 0.0, %v2361
      %v2363 = vpop.f32.mrb[0].mxu0
      %2364 = vmatprep.mubr.f32.mxu0 0.0
      %2365 = vmatmul.mubr.f32.gmra.mrb[0].mxu0 %v2264
      %v2366 = vpop.f32.mrb[0].mxu0
      %v2367 = vadd.f32 0.0, %v2366
      %v2368 = vpop.f32.mrb[0].mxu0
      %2369 = vmatprep.mubr.f32.mxu0 0.0
      %2370 = vmatmul.mubr.f32.gmra.mrb[0].mxu0 %v2265
      %v2371 = vpop.f32.mrb[0].mxu0
      %v2372 = vadd.f32 0.0, %v2371
      %v2373 = vpop.f32.mrb[0].mxu0
      %2374 = vmatprep.mubr.f32.mxu0 0.0
      %2375 = vmatmul.mubr.f32.gmra.mrb[0].mxu0 %v2266
      %v2376 = vpop.f32.mrb[0].mxu0
      %v2377 = vadd.f32 0.0, %v2376
      %v2378 = vpop.f32.mrb[0].mxu0
      %2379 = vmatprep.mubr.f32.mxu0 0.0
      %2380 = vmatmul.mubr.f32.gmra.mrb[0].mxu0 %v2267
      %v2381 = vpop.f32.mrb[0].mxu0
      %v2382 = vadd.f32 0.0, %v2381
      %v2383 = vpop.f32.mrb[0].mxu0
      %2384 = vmatprep.mubr.f32.mxu0 0.0
      %2385 = vmatmul.mubr.f32.gmra.mrb[0].mxu0 %v2268
      %v2386 = vpop.f32.mrb[0].mxu0
      %v2387 = vadd.f32 0.0, %v2386
      %v2388 = vpop.f32.mrb[0].mxu0
      %2389 = vmatprep.mubr.f32.mxu0 0.0
      %2390 = vmatmul.mubr.f32.gmra.mrb[0].mxu0 %v2269
      %v2391 = vpop.f32.mrb[0].mxu0
      %v2392 = vadd.f32 0.0, %v2391
      %v2393 = vpop.f32.mrb[0].mxu0
      %2394 = vmatprep.mubr.f32.mxu0 0.0
      %2395 = vmatmul.mubr.f32.gmra.mrb[0].mxu0 %v2270
      %v2396 = vpop.f32.mrb[0].mxu0
      %v2397 = vadd.f32 0.0, %v2396
      %v2398 = vpop.f32.mrb[0].mxu0
      %2399 = vmatprep.mubr.f32.mxu0 0.0
      %2400 = vmatmul.mubr.f32.gmra.mrb[0].mxu0 %v2271
      %v2401 = vpop.f32.mrb[0].mxu0
      %v2402 = vadd.f32 0.0, %v2401
      %v2403 = vpop.f32.mrb[0].mxu0
      %2404 = vmatprep.mubr.f32.mxu0 0.0
      %2405 = vmatmul.mubr.f32.gmra.mrb[0].mxu0 %v2272
      %v2406 = vpop.f32.mrb[0].mxu0
      %v2407 = vadd.f32 0.0, %v2406
      %v2408 = vpop.f32.mrb[0].mxu0
      %2409 = vmatprep.mubr.f32.mxu0 0.0
      %2410 = vmatmul.mubr.f32.gmra.mrb[0].mxu0 %v2273
      %v2411 = vpop.f32.mrb[0].mxu0
      %v2412 = vadd.f32 0.0, %v2411
      %v2413 = vpop.f32.mrb[0].mxu0
      %2414 = vmatprep.mubr.f32.mxu0 0.0
      %2415 = vmatmul.mubr.f32.gmra.mrb[0].mxu0 %v2274
      %v2416 = vpop.f32.mrb[0].mxu0
      %v2417 = vadd.f32 0.0, %v2416
      %v2418 = vpop.f32.mrb[0].mxu0
      %2419 = vmatprep.mubr.f32.mxu0 0.0
      %2420 = vmatmul.mubr.f32.gmra.mrb[0].mxu0 %v2275
      %v2421 = vpop.f32.mrb[0].mxu0
      %v2422 = vadd.f32 0.0, %v2421
      %v2423 = vpop.f32.mrb[0].mxu0
      %2424 = vmatprep.mubr.f32.mxu0 0.0
      %2425 = vmatmul.mubr.f32.gmra.mrb[0].mxu0 %v2276
      %v2426 = vpop.f32.mrb[0].mxu0
      %v2427 = vadd.f32 0.0, %v2426
      %v2428 = vpop.f32.mrb[0].mxu0
      %2429 = vmatprep.mubr.f32.mxu0 0.0
      %2430 = vmatmul.mubr.f32.gmra.mrb[0].mxu0 %v2277
      %v2431 = vpop.f32.mrb[0].mxu0
      %v2432 = vadd.f32 0.0, %v2431
      %v2433 = vpop.f32.mrb[0].mxu0
      %2434 = vmatprep.mubr.f32.mxu0 0.0
      %2435 = vmatmul.mubr.f32.gmra.mrb[0].mxu0 %v2278
      %v2436 = vpop.f32.mrb[0].mxu0
      %v2437 = vadd.f32 0.0, %v2436
      %v2438 = vpop.f32.mrb[0].mxu0
      %2439 = vdwg.mxu0
      %vm2440 = vcmask 130048
      %2441 = vst.msk [vmem:[%s402] sm:$0xff] %vm2440, %v2362
      %2442 = vst.msk [vmem:[%s402 + $0x8] sm:$0xff] %vm2440, %v2367
      %2443 = vst.msk [vmem:[%s402 + $0x10] sm:$0xff] %vm2440, %v2372
      %2444 = vst.msk [vmem:[%s402 + $0x18] sm:$0xff] %vm2440, %v2377
      %2445 = vst.msk [vmem:[%s402 + $0x20] sm:$0xff] %vm2440, %v2382
      %2446 = vst.msk [vmem:[%s402 + $0x28] sm:$0xff] %vm2440, %v2387
      %2447 = vst.msk [vmem:[%s402 + $0x30] sm:$0xff] %vm2440, %v2392
      %2448 = vst.msk [vmem:[%s402 + $0x38] sm:$0xff] %vm2440, %v2397
      %2449 = vst.msk [vmem:[%s402 + $0x40] sm:$0xff] %vm2440, %v2402
      %2450 = vst.msk [vmem:[%s402 + $0x48] sm:$0xff] %vm2440, %v2407
      %2451 = vst.msk [vmem:[%s402 + $0x50] sm:$0xff] %vm2440, %v2412
      %2452 = vst.msk [vmem:[%s402 + $0x58] sm:$0xff] %vm2440, %v2417
      %2453 = vst.msk [vmem:[%s402 + $0x60] sm:$0xff] %vm2440, %v2422
      %2454 = vst.msk [vmem:[%s402 + $0x68] sm:$0xff] %vm2440, %v2427
      %2455 = vst.msk [vmem:[%s402 + $0x70] sm:$0xff] %vm2440, %v2432
      %2456 = vst.msk [vmem:[%s402 + $0x78] sm:$0xff] %vm2440, %v2437
      %s2457 = smul.u32 16, %s23
      %p2458 = scmp.lt.s32.totalorder %s2457, 31
      %s2459 = scalar_select %p2458, %s2457, 31
      %s2460 = smul.addr %s2459, 8
      %s2461 = scalar_lea.vmem %s10, %s2460
      %s2462 = smul.u32 16, %s23
      %p2463 = scmp.lt.s32.totalorder %s2462, 31
      %s2464 = scalar_select %p2463, %s2462, 31
      %s2465 = smul.addr %s2464, 8
      %s2466 = scalar_lea.vmem %s11, %s2465
      // Predicated region
      $region61: #{_forward_impl.3} parent=59 // pred_check
        %p2467 = pneg %p256
      $region62: #{_forward_impl.3} parent=59 // pred_check_branch
        %2469 = sbr.rel (%p2467) target = $region64
      $region63: #{_forward_impl.3} parent=59 // pred_region
        %s2470 = smul.u32 16, %s23
      $region64: #{_forward_impl.3} parent=59 // pred_fallthru
        _
      // Predicated region
      $region65: #{_forward_impl.3} parent=59 // pred_check
        %p2471 = pneg %p282
      $region66: #{_forward_impl.3} parent=59 // pred_check_branch
        %2473 = sbr.rel (%p2471) target = $region68
      $region67: #{_forward_impl.3} parent=59 // pred_region
        %s2474 = smul.u32 16, %s23
      $region68: #{_forward_impl.3} parent=59 // pred_fallthru
        _
    $region60: #{_forward_impl.3} parent=5 // pred_fallthru
      _
    %p2475 = scmp.le.s32.totalorder 2, %s18
    // Predicated region
    $region69: #{_forward_impl.3} parent=5 // pred_check
      %p2476 = pneg %p2475
    $region70: #{_forward_impl.3} parent=5 // pred_check_branch
      %2478 = sbr.rel (%p2476) target = $region72
    $region71: #{_forward_impl.3} parent=5 // pred_region
      %s2479 = ssub.s32 %s18, 2
      // Predicated region
      $region73: #{_forward_impl.3} parent=71 // pred_check
        %p2480 = pneg %p262
      $region74: #{_forward_impl.3} parent=71 // pred_check_branch
        %2482 = sbr.rel (%p2480) target = $region76
      $region75: #{_forward_impl.3} parent=71 // pred_region
        %s2483 = smul.u32 16, %s24
        %p2484 = scmp.lt.s32.totalorder %s2483, 31
        %s2485 = scalar_select %p2484, %s2483, 31
        %s2486 = smul.addr %s2485, 8
        %s2487 = scalar_lea.vmem %s10, %s2486
      $region76: #{_forward_impl.3} parent=71 // pred_fallthru
        _
      // Predicated region
      $region77: #{_forward_impl.3} parent=71 // pred_check
        %p2488 = pneg %p288
      $region78: #{_forward_impl.3} parent=71 // pred_check_branch
        %2490 = sbr.rel (%p2488) target = $region80
      $region79: #{_forward_impl.3} parent=71 // pred_region
        %s2491 = smul.u32 16, %s24
        %p2492 = scmp.lt.s32.totalorder %s2491, 31
        %s2493 = scalar_select %p2492, %s2491, 31
        %s2494 = smul.addr %s2493, 8
        %s2495 = scalar_lea.vmem %s11, %s2494
      $region80: #{_forward_impl.3} parent=71 // pred_fallthru
        _
    $region72: #{_forward_impl.3} parent=5 // pred_fallthru
      _
  $region6: #{_forward_impl.3} parent=0 // loop_footer
    %s22 = sadd.s32 1, %s18
  $region7: #{_forward_impl.3} parent=0 // loop_footer_branch
    %17 = sbr.rel target = $region3
  $region8: #{_forward_impl.3} parent=0 // loop_exit
    _

// kernel: _forward_impl.5
$region0: #{_forward_impl.5}
  #allocation0 [shape = 'u32[]', space=smem, size = 0x4, offset = 0x4, fixed_abs, tag = 'smem constant byte address 0x4 - core index']
  #allocation1 [shape = 'u32[144,128]{1,0:T(1,128)}', space=vmem, size = 0x12000, scoped, tag = 'internal scratch']
  #allocation2 [shape = 'f32[36,16]{1,0:T(8,128)}', space=vmem, size = 0x5000, scoped, tag = 'scratch operand']
  #allocation3 [shape = 'f32[36,36]{1,0:T(8,128)}', space=vmem, size = 0x5000, scoped, tag = 'scratch operand']
  %s0 = inlined_call_operand.vmem [shape: f32[4,36,128], index: 0, kind: input, shape index: {}]
  %s1 = inlined_call_operand.vmem [shape: f32[576,36], index: 1, kind: input, shape index: {}]
  %s2 = inlined_call_operand.vmem [shape: f32[128,16], index: 2, kind: input, shape index: {}]
  %s3 = inlined_call_operand.vmem [shape: s32[4,576,1], index: 3, kind: input, shape index: {}]
  %s4 = inlined_call_operand.vmem [shape: f32[4,1,128], index: 4, kind: output, shape index: {}]
  %s5 = sld [smem:[#allocation0]]
  $region53: #{_forward_impl.5} parent=0
    _
  %s7 = ssub.s32 1, %s5
  %s8 = scalar_select 0, %s7, %s5
  loop: start=0, step=1, limit=10
  $region2: #{_forward_impl.5} parent=0 // loop_pre_header
    _
  $region3: #{_forward_impl.5} parent=0 // loop_header
    %s10 = sphi 0, %s14
    %p11 = scmp.ge.s32.totalorder %s10, 10
    %s17 = sphi 0, %s29
    %s18 = sphi 0, %s25
    %s19 = sphi 0, %s17
    %s20 = sphi 0, %s18
    %s21 = sphi 0, %s19
    %s22 = sphi 0, %s20
    %s32 = sphi 0, %s34
    %s35 = sphi 0, %s32
    %s36 = sphi 0, %s35
    %s52 = sphi 0, %s36
    %s58 = sphi 0, %s60
    %s61 = sphi 0, %s58
    %s62 = sphi 0, %s61
    %s78 = sphi 0, %s62
    %s82 = sphi 0, %s82
    %s84 = sphi 0, %s82
    %s85 = sphi 0, %s84
    %s99 = sphi 0, %s85
    %s107 = sphi 0, %s109
    %s110 = sphi 0, %s107
    %s111 = sphi 0, %s110
    %s127 = sphi 0, %s111
    %s133 = sphi 0, %s135
    %s136 = sphi 0, %s133
    %s137 = sphi 0, %s136
    %s153 = sphi 0, %s137
  $region4: #{_forward_impl.5} parent=0 // loop_header_branch
    %13 = sbr.rel (%p11) target = $region8
  $region5: #{_forward_impl.5} parent=0 // loop_body
    %s15 = ssub.s32 %s10, 1
    %s16 = ssub.s32 %s10, 2
    %s23 = sadd.s32 1, %s18
    %p24 = scmp.ge.s32.totalorder %s23, 2
    %s25 = scalar_select %p24, 0, %s23
    %s26 = sadd.s32 1, %s17
    %s27 = scalar_select %p24, %s26, %s17
    %p28 = scmp.ge.s32.totalorder %s27, 4
    %s29 = scalar_select %p28, 0, %s27
    %s30 = ssub.s32 %s17, %s29
    %p31 = scmp.eq.s32.totalorder %s30, 0
    %s33 = sadd.s32 %s32, 1
    %s34 = scalar_select %p31, %s32, %s33
    %p37 = pneg %p31
    %p38 = scmp.eq.s32.totalorder %s10, 7
    %p39 = por %p37, %p38
    %p40 = scmp.ne.s32.totalorder %s32, %s35
    %p41 = scmp.eq.s32.totalorder %s10, 0
    %p42 = por %p40, %p41
    %p43 = scmp.ne.s32.totalorder %s32, %s35
    %p44 = scmp.eq.s32.totalorder %s15, 7
    %p45 = por %p43, %p44
    %p46 = scmp.ne.s32.totalorder %s35, %s36
    %p47 = scmp.eq.s32.totalorder %s15, 0
    %p48 = por %p46, %p47
    %p49 = scmp.ne.s32.totalorder %s35, %s36
    %p50 = scmp.eq.s32.totalorder %s16, 7
    %p51 = por %p49, %p50
    %p53 = scmp.ne.s32.totalorder %s36, %s52
    %p54 = scmp.eq.s32.totalorder %s16, 0
    %p55 = por %p53, %p54
    %s56 = ssub.s32 %s18, %s25
    %p57 = scmp.eq.s32.totalorder %s56, 0
    %s59 = sadd.s32 %s58, 1
    %s60 = scalar_select %p57, %s58, %s59
    %p63 = pneg %p57
    %p64 = scmp.eq.s32.totalorder %s10, 7
    %p65 = por %p63, %p64
    %p66 = scmp.ne.s32.totalorder %s58, %s61
    %p67 = scmp.eq.s32.totalorder %s10, 0
    %p68 = por %p66, %p67
    %p69 = scmp.ne.s32.totalorder %s58, %s61
    %p70 = scmp.eq.s32.totalorder %s15, 7
    %p71 = por %p69, %p70
    %p72 = scmp.ne.s32.totalorder %s61, %s62
    %p73 = scmp.eq.s32.totalorder %s15, 0
    %p74 = por %p72, %p73
    %p75 = scmp.ne.s32.totalorder %s61, %s62
    %p76 = scmp.eq.s32.totalorder %s16, 7
    %p77 = por %p75, %p76
    %p79 = scmp.ne.s32.totalorder %s62, %s78
    %p80 = scmp.eq.s32.totalorder %s16, 0
    %p81 = por %p79, %p80
    %s83 = sadd.s32 %s82, 1
    %p86 = scmp.eq.s32.totalorder %s10, 7
    %p87 = scmp.ne.s32.totalorder %s82, %s84
    %p88 = scmp.eq.s32.totalorder %s10, 0
    %p89 = por %p87, %p88
    %p90 = scmp.ne.s32.totalorder %s82, %s84
    %p91 = scmp.eq.s32.totalorder %s15, 7
    %p92 = por %p90, %p91
    %p93 = scmp.ne.s32.totalorder %s84, %s85
    %p94 = scmp.eq.s32.totalorder %s15, 0
    %p95 = por %p93, %p94
    %p96 = scmp.ne.s32.totalorder %s84, %s85
    %p97 = scmp.eq.s32.totalorder %s16, 7
    %p98 = por %p96, %p97
    %p100 = scmp.ne.s32.totalorder %s85, %s99
    %p101 = scmp.eq.s32.totalorder %s16, 0
    %p102 = por %p100, %p101
    %s103 = ssub.s32 %s17, %s29
    %s104 = ssub.s32 %s18, %s25
    %s105 = sor.u32 %s103, %s104
    %p106 = scmp.eq.s32.totalorder %s105, 0
    %s108 = sadd.s32 %s107, 1
    %s109 = scalar_select %p106, %s107, %s108
    %p112 = pneg %p106
    %p113 = scmp.eq.s32.totalorder %s10, 7
    %p114 = por %p112, %p113
    %p115 = scmp.ne.s32.totalorder %s107, %s110
    %p116 = scmp.eq.s32.totalorder %s10, 0
    %p117 = por %p115, %p116
    %p118 = scmp.ne.s32.totalorder %s107, %s110
    %p119 = scmp.eq.s32.totalorder %s15, 7
    %p120 = por %p118, %p119
    %p121 = scmp.ne.s32.totalorder %s110, %s111
    %p122 = scmp.eq.s32.totalorder %s15, 0
    %p123 = por %p121, %p122
    %p124 = scmp.ne.s32.totalorder %s110, %s111
    %p125 = scmp.eq.s32.totalorder %s16, 7
    %p126 = por %p124, %p125
    %p128 = scmp.ne.s32.totalorder %s111, %s127
    %p129 = scmp.eq.s32.totalorder %s16, 0
    %p130 = por %p128, %p129
    %s131 = ssub.s32 %s17, %s29
    %p132 = scmp.eq.s32.totalorder %s131, 0
    %s134 = sadd.s32 %s133, 1
    %s135 = scalar_select %p132, %s133, %s134
    %p138 = pneg %p132
    %p139 = scmp.eq.s32.totalorder %s10, 7
    %p140 = por %p138, %p139
    %p141 = scmp.ne.s32.totalorder %s133, %s136
    %p142 = scmp.eq.s32.totalorder %s10, 0
    %p143 = por %p141, %p142
    %p144 = scmp.ne.s32.totalorder %s133, %s136
    %p145 = scmp.eq.s32.totalorder %s15, 7
    %p146 = por %p144, %p145
    %p147 = scmp.ne.s32.totalorder %s136, %s137
    %p148 = scmp.eq.s32.totalorder %s15, 0
    %p149 = por %p147, %p148
    %p150 = scmp.ne.s32.totalorder %s136, %s137
    %p151 = scmp.eq.s32.totalorder %s16, 7
    %p152 = por %p150, %p151
    %p154 = scmp.ne.s32.totalorder %s137, %s153
    %p155 = scmp.eq.s32.totalorder %s16, 0
    %p156 = por %p154, %p155
    %p157 = scmp.le.s32.totalorder 1, %s10
    %p158 = scmp.lt.s32.totalorder %s10, 9
    %p159 = pnand %p157, %p158
    %p160 = pneg %p159
    // Predicated region
    $region9: #{_forward_impl.5} parent=5 // pred_check
      _
    $region10: #{_forward_impl.5} parent=5 // pred_check_branch
      %162 = sbr.rel (%p159) target = $region12
    $region11: #{_forward_impl.5} parent=5 // pred_region
      %s163 = ssub.s32 %s10, 1
      // Predicated region
      $region13: #{_forward_impl.5} parent=11 // pred_check
        %p164 = pneg %p95
      $region14: #{_forward_impl.5} parent=11 // pred_check_branch
        %166 = sbr.rel (%p164) target = $region16
      $region15: #{_forward_impl.5} parent=11 // pred_region
        _
      $region16: #{_forward_impl.5} parent=11 // pred_fallthru
        _
    $region12: #{_forward_impl.5} parent=5 // pred_fallthru
      _
    %p167 = scmp.lt.s32.totalorder %s10, 8
    // Predicated region
    $region17: #{_forward_impl.5} parent=5 // pred_check
      %p168 = pneg %p167
    $region18: #{_forward_impl.5} parent=5 // pred_check_branch
      %170 = sbr.rel (%p168) target = $region20
    $region19: #{_forward_impl.5} parent=5 // pred_region
      // Predicated region
      $region21: #{_forward_impl.5} parent=19 // pred_check
        %p171 = pneg %p42
      $region22: #{_forward_impl.5} parent=19 // pred_check_branch
        %173 = sbr.rel (%p171) target = $region24
      $region23: #{_forward_impl.5} parent=19 // pred_region
        %p174 = scmp.lt.s32.totalorder %s17, 3
        %s175 = scalar_select %p174, %s17, 3
        %s176 = smul.addr %s175, 5
        %s177 = smul.addr %s176, 8
        %s178 = scalar_lea.vmem %s0, %s177
      $region24: #{_forward_impl.5} parent=19 // pred_fallthru
        _
      // Predicated region
      $region25: #{_forward_impl.5} parent=19 // pred_check
        %p179 = pneg %p68
      $region26: #{_forward_impl.5} parent=19 // pred_check_branch
        %181 = sbr.rel (%p179) target = $region28
      $region27: #{_forward_impl.5} parent=19 // pred_region
        %s182 = smul.u32 36, %s18
        %p183 = scmp.lt.s32.totalorder %s182, 71
        %s184 = scalar_select %p183, %s182, 71
        %s185 = smul.addr %s184, 8
        %s186 = scalar_lea.vmem %s1, %s185
        %s187 = smul.u32 36, %s18
      $region28: #{_forward_impl.5} parent=19 // pred_fallthru
        _
      // Predicated region
      $region29: #{_forward_impl.5} parent=19 // pred_check
        %p188 = pneg %p117
      $region30: #{_forward_impl.5} parent=19 // pred_check_branch
        %190 = sbr.rel (%p188) target = $region32
      $region31: #{_forward_impl.5} parent=19 // pred_region
        %s191 = smul.u32 36, %s18
        %p192 = scmp.lt.s32.totalorder %s17, 3
        %s193 = scalar_select %p192, %s17, 3
        %p194 = scmp.lt.s32.totalorder %s191, 71
        %s195 = scalar_select %p194, %s191, 71
        %s196 = smul.addr %s193, 72
        %s197 = sadd.s32 %s195, %s196
        %s198 = smul.addr %s197, 8
        %s199 = scalar_lea.vmem %s3, %s198
        %s200 = smul.u32 36, %s18
      $region32: #{_forward_impl.5} parent=19 // pred_fallthru
        _
    $region20: #{_forward_impl.5} parent=5 // pred_fallthru
      _
    %p201 = scmp.le.s32.totalorder 1, %s10
    %p202 = scmp.lt.s32.totalorder %s10, 9
    %p203 = pnand %p201, %p202
    %p204 = pneg %p203
    // Predicated region
    $region33: #{_forward_impl.5} parent=5 // pred_check
      _
    $region34: #{_forward_impl.5} parent=5 // pred_check_branch
      %206 = sbr.rel (%p203) target = $region36
    $region35: #{_forward_impl.5} parent=5 // pred_region
      %s207 = ssub.s32 %s10, 1
      %p208 = scmp.lt.s32.totalorder %s19, 3
      %s209 = scalar_select %p208, %s19, 3
      %s210 = smul.addr %s209, 5
      %s211 = smul.addr %s210, 8
      %s212 = scalar_lea.vmem %s0, %s211
      %p213 = pneg %p48
      %p214 = pneg %p45
      %s215 = smul.u32 36, %s20
      %p216 = scmp.lt.s32.totalorder %s215, 71
      %s217 = scalar_select %p216, %s215, 71
      %s218 = smul.addr %s217, 8
      %s219 = scalar_lea.vmem %s1, %s218
      %p220 = pneg %p74
      %p221 = pneg %p71
      %p222 = pneg %p95
      %p223 = pneg %p92
      %s224 = smul.u32 36, %s20
      %p225 = scmp.lt.s32.totalorder %s19, 3
      %s226 = scalar_select %p225, %s19, 3
      %p227 = scmp.lt.s32.totalorder %s224, 71
      %s228 = scalar_select %p227, %s224, 71
      %s229 = smul.addr %s226, 72
      %s230 = sadd.s32 %s228, %s229
      %s231 = smul.addr %s230, 8
      %s232 = scalar_lea.vmem %s3, %s231
      %p233 = pneg %p123
      %p234 = pneg %p120
      %p235 = pneg %p149
      %p236 = pneg %p146
      %p237 = scmp.lt.s32.totalorder %s19, 3
      %s238 = scalar_select %p237, %s19, 3
      %s239 = scalar_lea.vmem %s4, %s238
      %p240 = scmp.lt.s32.totalorder %s19, 3
      %s241 = scalar_select %p240, %s19, 3
      %s242 = smul.addr %s241, 5
      %s243 = smul.addr %s242, 8
      %s244 = scalar_lea.vmem %s0, %s243
      %s245 = smul.u32 36, %s20
      %p246 = scmp.lt.s32.totalorder %s245, 71
      %s247 = scalar_select %p246, %s245, 71
      %s248 = smul.addr %s247, 8
      %s249 = scalar_lea.vmem %s1, %s248
      %s250 = smul.u32 36, %s20
      %s251 = smul.u32 36, %s20
      %p252 = scmp.lt.s32.totalorder %s19, 3
      %s253 = scalar_select %p252, %s19, 3
      %p254 = scmp.lt.s32.totalorder %s251, 71
      %s255 = scalar_select %p254, %s251, 71
      %s256 = smul.addr %s253, 72
      %s257 = sadd.s32 %s255, %s256
      %s258 = smul.addr %s257, 8
      %s259 = scalar_lea.vmem %s3, %s258
      %s260 = smul.u32 36, %s20
      %p261 = scmp.lt.s32.totalorder %s19, 3
      %s262 = scalar_select %p261, %s19, 3
      %s263 = scalar_lea.vmem %s4, %s262
      %p264 = scmp.eq.s32.totalorder %s20, 0
      // Predicated region
      $region37: #{_forward_impl.5} parent=35 // pred_check
        %p265 = pneg %p264
      $region38: #{_forward_impl.5} parent=35 // pred_check_branch
        %267 = sbr.rel (%p265) target = $region40
      $region39: #{_forward_impl.5} parent=35 // pred_region
        %v268 = vld [vmem:[%s244] sm:$0xff]
        %v269 = vld [vmem:[%s244 + $0x8] sm:$0xff]
        %v270 = vld [vmem:[%s244 + $0x10] sm:$0xff]
        %v271 = vld [vmem:[%s244 + $0x18] sm:$0xff]
        %v272 = vld [vmem:[%s244 + $0x20] sm:$0xf]
        %v273 = vld [vmem:[%s2] sm:$0xff]
        %v274 = vld [vmem:[%s2 + $0x8] sm:$0xff]
        %v275 = vld [vmem:[%s2 + $0x10] sm:$0xff]
        %v276 = vld [vmem:[%s2 + $0x18] sm:$0xff]
        %v277 = vld [vmem:[%s2 + $0x20] sm:$0xff]
        %v278 = vld [vmem:[%s2 + $0x28] sm:$0xff]
        %v279 = vld [vmem:[%s2 + $0x30] sm:$0xff]
        %v280 = vld [vmem:[%s2 + $0x38] sm:$0xff]
        %v281 = vld [vmem:[%s2 + $0x40] sm:$0xff]
        %v282 = vld [vmem:[%s2 + $0x48] sm:$0xff]
        %v283 = vld [vmem:[%s2 + $0x50] sm:$0xff]
        %v284 = vld [vmem:[%s2 + $0x58] sm:$0xff]
        %v285 = vld [vmem:[%s2 + $0x60] sm:$0xff]
        %v286 = vld [vmem:[%s2 + $0x68] sm:$0xff]
        %v287 = vld [vmem:[%s2 + $0x70] sm:$0xff]
        %v288 = vld [vmem:[%s2 + $0x78] sm:$0xff]
        %289 = vmatprep.subr.mxu0 0.0
        %290 = vmatpush1.msra.mxu0 %v273
        %291 = vmatprep.subr.mxu0 0.0
        %292 = vmatpush1.msra.mxu0 %v274
        %293 = vmatprep.subr.mxu0 0.0
        %294 = vmatpush1.msra.mxu0 %v275
        %295 = vmatprep.subr.mxu0 0.0
        %296 = vmatpush1.msra.mxu0 %v276
        %297 = vmatprep.subr.mxu0 0.0
        %298 = vmatpush1.msra.mxu0 %v277
        %299 = vmatprep.subr.mxu0 0.0
        %300 = vmatpush1.msra.mxu0 %v278
        %301 = vmatprep.subr.mxu0 0.0
        %302 = vmatpush1.msra.mxu0 %v279
        %303 = vmatprep.subr.mxu0 0.0
        %304 = vmatpush1.msra.mxu0 %v280
        %305 = vmatprep.subr.mxu0 0.0
        %306 = vmatpush1.msra.mxu0 %v281
        %307 = vmatprep.subr.mxu0 0.0
        %308 = vmatpush1.msra.mxu0 %v282
        %309 = vmatprep.subr.mxu0 0.0
        %310 = vmatpush1.msra.mxu0 %v283
        %311 = vmatprep.subr.mxu0 0.0
        %312 = vmatpush1.msra.mxu0 %v284
        %313 = vmatprep.subr.mxu0 0.0
        %314 = vmatpush1.msra.mxu0 %v285
        %315 = vmatprep.subr.mxu0 0.0
        %316 = vmatpush1.msra.mxu0 %v286
        %317 = vmatprep.subr.mxu0 0.0
        %318 = vmatpush1.msra.mxu0 %v287
        %319 = vmatprep.subr.mxu0 0.0
        %320 = vmatpush1.msra.mxu0 %v288
        %321 = vmatprep.subr.mxu0 0.0
        %322 = vmatpush1.msra.mxu0 0.0
        %323 = vmatprep.subr.mxu0 0.0
        %324 = vmatpush1.msra.mxu0 0.0
        %325 = vmatprep.subr.mxu0 0.0
        %326 = vmatpush1.msra.mxu0 0.0
        %327 = vmatprep.subr.mxu0 0.0
        %328 = vmatpush1.msra.mxu0 0.0
        %329 = vmatprep.subr.mxu0 0.0
        %330 = vmatpush1.msra.mxu0 0.0
        %331 = vmatprep.subr.mxu0 0.0
        %332 = vmatpush1.msra.mxu0 0.0
        %333 = vmatprep.subr.mxu0 0.0
        %334 = vmatpush1.msra.mxu0 0.0
        %335 = vmatprep.subr.mxu0 0.0
        %336 = vmatpush1.msra.mxu0 0.0
        %337 = vmatprep.subr.mxu0 0.0
        %338 = vmatpush1.msra.mxu0 0.0
        %339 = vmatprep.subr.mxu0 0.0
        %340 = vmatpush1.msra.mxu0 0.0
        %341 = vmatprep.subr.mxu0 0.0
        %342 = vmatpush1.msra.mxu0 0.0
        %343 = vmatprep.subr.mxu0 0.0
        %344 = vmatpush1.msra.mxu0 0.0
        %345 = vmatprep.subr.mxu0 0.0
        %346 = vmatpush1.msra.mxu0 0.0
        %347 = vmatprep.subr.mxu0 0.0
        %348 = vmatpush1.msra.mxu0 0.0
        %349 = vmatprep.subr.mxu0 0.0
        %350 = vmatpush1.msra.mxu0 0.0
        %351 = vmatprep.subr.mxu0 0.0
        %352 = vmatpush1.msra.mxu0 0.0
        %353 = vmatprep.mubr.f32.mxu0 0.0
        %354 = vmatmul.mubr.f32.gmra.mrb[0].mxu0 %v268
        %v355 = vpop.f32.mrb[0].mxu0
        %v356 = vadd.f32 0.0, %v355
        %v357 = vpop.f32.mrb[0].mxu0
        %358 = vmatprep.mubr.f32.mxu0 0.0
        %359 = vmatmul.mubr.f32.gmra.mrb[0].mxu0 %v269
        %v360 = vpop.f32.mrb[0].mxu0
        %v361 = vadd.f32 0.0, %v360
        %v362 = vpop.f32.mrb[0].mxu0
        %363 = vmatprep.mubr.f32.mxu0 0.0
        %364 = vmatmul.mubr.f32.gmra.mrb[0].mxu0 %v270
        %v365 = vpop.f32.mrb[0].mxu0
        %v366 = vadd.f32 0.0, %v365
        %v367 = vpop.f32.mrb[0].mxu0
        %368 = vmatprep.mubr.f32.mxu0 0.0
        %369 = vmatmul.mubr.f32.gmra.mrb[0].mxu0 %v271
        %v370 = vpop.f32.mrb[0].mxu0
        %v371 = vadd.f32 0.0, %v370
        %v372 = vpop.f32.mrb[0].mxu0
        %373 = vmatprep.mubr.f32.mxu0 0.0
        %374 = vmatmul.mubr.f32.gmra.mrb[0].mxu0 %v272
        %v375 = vpop.f32.mrb[0].mxu0
        %v376 = vadd.f32 0.0, %v375
        %v377 = vpop.f32.mrb[0].mxu0
        %378 = vdwg.mxu0
        %vm379 = vcmask 130048
        %380 = vst.msk [vmem:[#allocation2] sm:$0xff] %vm379, %v356
        %381 = vst.msk [vmem:[#allocation2 + $0x8] sm:$0xff] %vm379, %v361
        %382 = vst.msk [vmem:[#allocation2 + $0x10] sm:$0xff] %vm379, %v366
        %383 = vst.msk [vmem:[#allocation2 + $0x18] sm:$0xff] %vm379, %v371
        %vm384 = vcmask 125952
        %385 = vst.msk [vmem:[#allocation2 + $0x20] sm:$0xf] %vm384, %v376
        %386 = vmatprep.subr.mxu0 0.0
        %387 = vmatpush1.xpose.msra.mxu0 %v268
        %388 = vmatprep.subr.mxu0 0.0
        %389 = vmatpush1.xpose.msra.mxu0 %v269
        %390 = vmatprep.subr.mxu0 0.0
        %391 = vmatpush1.xpose.msra.mxu0 %v270
        %392 = vmatprep.subr.mxu0 0.0
        %393 = vmatpush1.xpose.msra.mxu0 %v271
        %394 = vmatprep.subr.mxu0 0.0
        %395 = vmatpush1.xpose.msra.mxu0 %v272
        %396 = vmatprep.subr.mxu0 0.0
        %397 = vmatpush1.xpose.msra.mxu0 0.0
        %398 = vmatprep.subr.mxu0 0.0
        %399 = vmatpush1.xpose.msra.mxu0 0.0
        %400 = vmatprep.subr.mxu0 0.0
        %401 = vmatpush1.xpose.msra.mxu0 0.0
        %402 = vmatprep.subr.mxu0 0.0
        %403 = vmatpush1.xpose.msra.mxu0 0.0
        %404 = vmatprep.subr.mxu0 0.0
        %405 = vmatpush1.xpose.msra.mxu0 0.0
        %406 = vmatprep.subr.mxu0 0.0
        %407 = vmatpush1.xpose.msra.mxu0 0.0
        %408 = vmatprep.subr.mxu0 0.0
        %409 = vmatpush1.xpose.msra.mxu0 0.0
        %410 = vmatprep.subr.mxu0 0.0
        %411 = vmatpush1.xpose.msra.mxu0 0.0
        %412 = vmatprep.subr.mxu0 0.0
        %413 = vmatpush1.xpose.msra.mxu0 0.0
        %414 = vmatprep.subr.mxu0 0.0
        %415 = vmatpush1.xpose.msra.mxu0 0.0
        %416 = vmatprep.subr.mxu0 0.0
        %417 = vmatpush1.xpose.msra.mxu0 0.0
        %418 = vmatprep.subr.mxu0 0.0
        %419 = vmatpush1.xpose.msra.mxu0 0.0
        %420 = vmatprep.subr.mxu0 0.0
        %421 = vmatpush1.xpose.msra.mxu0 0.0
        %422 = vmatprep.subr.mxu0 0.0
        %423 = vmatpush1.xpose.msra.mxu0 0.0
        %424 = vmatprep.subr.mxu0 0.0
        %425 = vmatpush1.xpose.msra.mxu0 0.0
        %426 = vmatprep.subr.mxu0 0.0
        %427 = vmatpush1.xpose.msra.mxu0 0.0
        %428 = vmatprep.subr.mxu0 0.0
        %429 = vmatpush1.xpose.msra.mxu0 0.0
        %430 = vmatprep.subr.mxu0 0.0
        %431 = vmatpush1.xpose.msra.mxu0 0.0
        %432 = vmatprep.subr.mxu0 0.0
        %433 = vmatpush1.xpose.msra.mxu0 0.0
        %434 = vmatprep.subr.mxu0 0.0
        %435 = vmatpush1.xpose.msra.mxu0 0.0
        %436 = vmatprep.subr.mxu0 0.0
        %437 = vmatpush1.xpose.msra.mxu0 0.0
        %438 = vmatprep.subr.mxu0 0.0
        %439 = vmatpush1.xpose.msra.mxu0 0.0
        %440 = vmatprep.subr.mxu0 0.0
        %441 = vmatpush1.xpose.msra.mxu0 0.0
        %442 = vmatprep.subr.mxu0 0.0
        %443 = vmatpush1.xpose.msra.mxu0 0.0
        %444 = vmatprep.subr.mxu0 0.0
        %445 = vmatpush1.xpose.msra.mxu0 0.0
        %446 = vmatprep.subr.mxu0 0.0
        %447 = vmatpush1.xpose.msra.mxu0 0.0
        %448 = vmatprep.subr.mxu0 0.0
        %449 = vmatpush1.xpose.msra.mxu0 0.0
        %450 = vmatprep.mubr.f32.mxu0 0.0
        %451 = vmatmul.mubr.f32.gmra.mrb[0].mxu0 %v268
        %v452 = vpop.f32.mrb[0].mxu0
        %v453 = vadd.f32 0.0, %v452
        %v454 = vpop.f32.mrb[0].mxu0
        %455 = vmatprep.mubr.f32.mxu0 0.0
        %456 = vmatmul.mubr.f32.gmra.mrb[0].mxu0 %v269
        %v457 = vpop.f32.mrb[0].mxu0
        %v458 = vadd.f32 0.0, %v457
        %v459 = vpop.f32.mrb[0].mxu0
        %460 = vmatprep.mubr.f32.mxu0 0.0
        %461 = vmatmul.mubr.f32.gmra.mrb[0].mxu0 %v270
        %v462 = vpop.f32.mrb[0].mxu0
        %v463 = vadd.f32 0.0, %v462
        %v464 = vpop.f32.mrb[0].mxu0
        %465 = vmatprep.mubr.f32.mxu0 0.0
        %466 = vmatmul.mubr.f32.gmra.mrb[0].mxu0 %v271
        %v467 = vpop.f32.mrb[0].mxu0
        %v468 = vadd.f32 0.0, %v467
        %v469 = vpop.f32.mrb[0].mxu0
        %470 = vmatprep.mubr.f32.mxu0 0.0
        %471 = vmatmul.mubr.f32.gmra.mrb[0].mxu0 %v272
        %v472 = vpop.f32.mrb[0].mxu0
        %v473 = vadd.f32 0.0, %v472
        %v474 = vpop.f32.mrb[0].mxu0
        %475 = vdwg.mxu0
        %vm476 = vcmask 293888
        %477 = vst.msk [vmem:[#allocation3] sm:$0xff] %vm476, %v453
        %478 = vst.msk [vmem:[#allocation3 + $0x8] sm:$0xff] %vm476, %v458
        %479 = vst.msk [vmem:[#allocation3 + $0x10] sm:$0xff] %vm476, %v463
        %480 = vst.msk [vmem:[#allocation3 + $0x18] sm:$0xff] %vm476, %v468
        %vm481 = vcmask 289792
        %482 = vst.msk [vmem:[#allocation3 + $0x20] sm:$0xf] %vm481, %v473
        %483 = vst [vmem:[%s263] sm:$0x1] 0.0
      $region40: #{_forward_impl.5} parent=35 // pred_fallthru
        _
      %v484 = vld [vmem:[%s249] sm:$0xff]
      %v485 = vld [vmem:[%s249 + $0x8] sm:$0xff]
      %v486 = vld [vmem:[%s249 + $0x10] sm:$0xff]
      %v487 = vld [vmem:[%s249 + $0x18] sm:$0xff]
      %v488 = vld [vmem:[%s249 + $0x20] sm:$0xff]
      %v489 = vld [vmem:[%s249 + $0x28] sm:$0xff]
      %v490 = vld [vmem:[%s249 + $0x30] sm:$0xff]
      %v491 = vld [vmem:[%s249 + $0x38] sm:$0xff]
      %v492 = vld [vmem:[%s249 + $0x40] sm:$0xff]
      %v493 = vld [vmem:[%s249 + $0x48] sm:$0xff]
      %v494 = vld [vmem:[%s249 + $0x50] sm:$0xff]
      %v495 = vld [vmem:[%s249 + $0x58] sm:$0xff]
      %v496 = vld [vmem:[%s249 + $0x60] sm:$0xff]
      %v497 = vld [vmem:[%s249 + $0x68] sm:$0xff]
      %v498 = vld [vmem:[%s249 + $0x70] sm:$0xff]
      %v499 = vld [vmem:[%s249 + $0x78] sm:$0xff]
      %v500 = vld [vmem:[%s249 + $0x80] sm:$0xff]
      %v501 = vld [vmem:[%s249 + $0x88] sm:$0xff]
      %v502 = vld [vmem:[%s249 + $0x90] sm:$0xff]
      %v503 = vld [vmem:[%s249 + $0x98] sm:$0xff]
      %v504 = vld [vmem:[%s249 + $0xa0] sm:$0xff]
      %v505 = vld [vmem:[%s249 + $0xa8] sm:$0xff]
      %v506 = vld [vmem:[%s249 + $0xb0] sm:$0xff]
      %v507 = vld [vmem:[%s249 + $0xb8] sm:$0xff]
      %v508 = vld [vmem:[%s249 + $0xc0] sm:$0xff]
      %v509 = vld [vmem:[%s249 + $0xc8] sm:$0xff]
      %v510 = vld [vmem:[%s249 + $0xd0] sm:$0xff]
      %v511 = vld [vmem:[%s249 + $0xd8] sm:$0xff]
      %v512 = vld [vmem:[%s249 + $0xe0] sm:$0xff]
      %v513 = vld [vmem:[%s249 + $0xe8] sm:$0xff]
      %v514 = vld [vmem:[%s249 + $0xf0] sm:$0xff]
      %v515 = vld [vmem:[%s249 + $0xf8] sm:$0xff]
      %v516 = vld [vmem:[%s249 + $0x100] sm:$0xff]
      %v517 = vld [vmem:[%s249 + $0x108] sm:$0xff]
      %v518 = vld [vmem:[%s249 + $0x110] sm:$0xff]
      %v519 = vld [vmem:[%s249 + $0x118] sm:$0xff]
      %v520 = vld [vmem:[#allocation2] sm:$0xff]
      %v521 = vld [vmem:[#allocation2 + $0x8] sm:$0xff]
      %v522 = vld [vmem:[#allocation2 + $0x10] sm:$0xff]
      %v523 = vld [vmem:[#allocation2 + $0x18] sm:$0xff]
      %v524 = vld [vmem:[#allocation2 + $0x20] sm:$0xf]
      %vm525 = vcmask 293888
      %v527 = vsel %vm525, %v484, 0
      %v530 = vsel %vm525, %v485, 0
      %v533 = vsel %vm525, %v486, 0
      %v536 = vsel %vm525, %v487, 0
      %v539 = vsel %vm525, %v488, 0
      %v542 = vsel %vm525, %v489, 0
      %v545 = vsel %vm525, %v490, 0
      %v548 = vsel %vm525, %v491, 0
      %v551 = vsel %vm525, %v492, 0
      %v554 = vsel %vm525, %v493, 0
      %v557 = vsel %vm525, %v494, 0
      %v560 = vsel %vm525, %v495, 0
      %v563 = vsel %vm525, %v496, 0
      %v566 = vsel %vm525, %v497, 0
      %v569 = vsel %vm525, %v498, 0
      %v572 = vsel %vm525, %v499, 0
      %v575 = vsel %vm525, %v500, 0
      %v578 = vsel %vm525, %v501, 0
      %v581 = vsel %vm525, %v502, 0
      %v584 = vsel %vm525, %v503, 0
      %v587 = vsel %vm525, %v504, 0
      %v590 = vsel %vm525, %v505, 0
      %v593 = vsel %vm525, %v506, 0
      %v596 = vsel %vm525, %v507, 0
      %v599 = vsel %vm525, %v508, 0
      %v602 = vsel %vm525, %v509, 0
      %v605 = vsel %vm525, %v510, 0
      %v608 = vsel %vm525, %v511, 0
      %v611 = vsel %vm525, %v512, 0
      %v614 = vsel %vm525, %v513, 0
      %v617 = vsel %vm525, %v514, 0
      %v620 = vsel %vm525, %v515, 0
      %v623 = vsel %vm525, %v516, 0
      %v626 = vsel %vm525, %v517, 0
      %v629 = vsel %vm525, %v518, 0
      %v632 = vsel %vm525, %v519, 0
      %vm634 = vcmask 1043456
      %v636 = vsel %vm634, %v524, 0
      %638 = vmatprep.subr.mxu0 0.0
      %639 = vmatpush1.msra.mxu0 %v520
      %640 = vmatprep.subr.mxu0 0.0
      %641 = vmatpush1.msra.mxu0 %v521
      %642 = vmatprep.subr.mxu0 0.0
      %643 = vmatpush1.msra.mxu0 %v522
      %644 = vmatprep.subr.mxu0 0.0
      %645 = vmatpush1.msra.mxu0 %v523
      %646 = vmatprep.subr.mxu0 0.0
      %647 = vmatpush1.msra.mxu0 %v636
      %648 = vmatprep.subr.mxu0 0.0
      %649 = vmatpush1.msra.mxu0 0.0
      %650 = vmatprep.subr.mxu0 0.0
      %651 = vmatpush1.msra.mxu0 0.0
      %652 = vmatprep.subr.mxu0 0.0
      %653 = vmatpush1.msra.mxu0 0.0
      %654 = vmatprep.subr.mxu0 0.0
      %655 = vmatpush1.msra.mxu0 0.0
      %656 = vmatprep.subr.mxu0 0.0
      %657 = vmatpush1.msra.mxu0 0.0
      %658 = vmatprep.subr.mxu0 0.0
      %659 = vmatpush1.msra.mxu0 0.0
      %660 = vmatprep.subr.mxu0 0.0
      %661 = vmatpush1.msra.mxu0 0.0
      %662 = vmatprep.subr.mxu0 0.0
      %663 = vmatpush1.msra.mxu0 0.0
      %664 = vmatprep.subr.mxu0 0.0
      %665 = vmatpush1.msra.mxu0 0.0
      %666 = vmatprep.subr.mxu0 0.0
      %667 = vmatpush1.msra.mxu0 0.0
      %668 = vmatprep.subr.mxu0 0.0
      %669 = vmatpush1.msra.mxu0 0.0
      %670 = vmatprep.subr.mxu0 0.0
      %671 = vmatpush1.msra.mxu0 0.0
      %672 = vmatprep.subr.mxu0 0.0
      %673 = vmatpush1.msra.mxu0 0.0
      %674 = vmatprep.subr.mxu0 0.0
      %675 = vmatpush1.msra.mxu0 0.0
      %676 = vmatprep.subr.mxu0 0.0
      %677 = vmatpush1.msra.mxu0 0.0
      %678 = vmatprep.subr.mxu0 0.0
      %679 = vmatpush1.msra.mxu0 0.0
      %680 = vmatprep.subr.mxu0 0.0
      %681 = vmatpush1.msra.mxu0 0.0
      %682 = vmatprep.subr.mxu0 0.0
      %683 = vmatpush1.msra.mxu0 0.0
      %684 = vmatprep.subr.mxu0 0.0
      %685 = vmatpush1.msra.mxu0 0.0
      %686 = vmatprep.subr.mxu0 0.0
      %687 = vmatpush1.msra.mxu0 0.0
      %688 = vmatprep.subr.mxu0 0.0
      %689 = vmatpush1.msra.mxu0 0.0
      %690 = vmatprep.subr.mxu0 0.0
      %691 = vmatpush1.msra.mxu0 0.0
      %692 = vmatprep.subr.mxu0 0.0
      %693 = vmatpush1.msra.mxu0 0.0
      %694 = vmatprep.subr.mxu0 0.0
      %695 = vmatpush1.msra.mxu0 0.0
      %696 = vmatprep.subr.mxu0 0.0
      %697 = vmatpush1.msra.mxu0 0.0
      %698 = vmatprep.subr.mxu0 0.0
      %699 = vmatpush1.msra.mxu0 0.0
      %700 = vmatprep.subr.mxu0 0.0
      %701 = vmatpush1.msra.mxu0 0.0
      %702 = vmatprep.mubr.f32.mxu0 0.0
      %703 = vmatmul.mubr.f32.gmra.mrb[0].mxu0 %v527
      %v704 = vpop.f32.mrb[0].mxu0
      %v705 = vadd.f32 0.0, %v704
      %v706 = vpop.f32.mrb[0].mxu0
      %707 = vmatprep.mubr.f32.mxu0 0.0
      %708 = vmatmul.mubr.f32.gmra.mrb[0].mxu0 %v530
      %v709 = vpop.f32.mrb[0].mxu0
      %v710 = vadd.f32 0.0, %v709
      %v711 = vpop.f32.mrb[0].mxu0
      %712 = vmatprep.mubr.f32.mxu0 0.0
      %713 = vmatmul.mubr.f32.gmra.mrb[0].mxu0 %v533
      %v714 = vpop.f32.mrb[0].mxu0
      %v715 = vadd.f32 0.0, %v714
      %v716 = vpop.f32.mrb[0].mxu0
      %717 = vmatprep.mubr.f32.mxu0 0.0
      %718 = vmatmul.mubr.f32.gmra.mrb[0].mxu0 %v536
      %v719 = vpop.f32.mrb[0].mxu0
      %v720 = vadd.f32 0.0, %v719
      %v721 = vpop.f32.mrb[0].mxu0
      %722 = vmatprep.mubr.f32.mxu0 0.0
      %723 = vmatmul.mubr.f32.gmra.mrb[0].mxu0 %v539
      %v724 = vpop.f32.mrb[0].mxu0
      %v725 = vadd.f32 0.0, %v724
      %v726 = vpop.f32.mrb[0].mxu0
      %727 = vmatprep.mubr.f32.mxu0 0.0
      %728 = vmatmul.mubr.f32.gmra.mrb[0].mxu0 %v542
      %v729 = vpop.f32.mrb[0].mxu0
      %v730 = vadd.f32 0.0, %v729
      %v731 = vpop.f32.mrb[0].mxu0
      %732 = vmatprep.mubr.f32.mxu0 0.0
      %733 = vmatmul.mubr.f32.gmra.mrb[0].mxu0 %v545
      %v734 = vpop.f32.mrb[0].mxu0
      %v735 = vadd.f32 0.0, %v734
      %v736 = vpop.f32.mrb[0].mxu0
      %737 = vmatprep.mubr.f32.mxu0 0.0
      %738 = vmatmul.mubr.f32.gmra.mrb[0].mxu0 %v548
      %v739 = vpop.f32.mrb[0].mxu0
      %v740 = vadd.f32 0.0, %v739
      %v741 = vpop.f32.mrb[0].mxu0
      %742 = vmatprep.mubr.f32.mxu0 0.0
      %743 = vmatmul.mubr.f32.gmra.mrb[0].mxu0 %v551
      %v744 = vpop.f32.mrb[0].mxu0
      %v745 = vadd.f32 0.0, %v744
      %v746 = vpop.f32.mrb[0].mxu0
      %747 = vmatprep.mubr.f32.mxu0 0.0
      %748 = vmatmul.mubr.f32.gmra.mrb[0].mxu0 %v554
      %v749 = vpop.f32.mrb[0].mxu0
      %v750 = vadd.f32 0.0, %v749
      %v751 = vpop.f32.mrb[0].mxu0
      %752 = vmatprep.mubr.f32.mxu0 0.0
      %753 = vmatmul.mubr.f32.gmra.mrb[0].mxu0 %v557
      %v754 = vpop.f32.mrb[0].mxu0
      %v755 = vadd.f32 0.0, %v754
      %v756 = vpop.f32.mrb[0].mxu0
      %757 = vmatprep.mubr.f32.mxu0 0.0
      %758 = vmatmul.mubr.f32.gmra.mrb[0].mxu0 %v560
      %v759 = vpop.f32.mrb[0].mxu0
      %v760 = vadd.f32 0.0, %v759
      %v761 = vpop.f32.mrb[0].mxu0
      %762 = vmatprep.mubr.f32.mxu0 0.0
      %763 = vmatmul.mubr.f32.gmra.mrb[0].mxu0 %v563
      %v764 = vpop.f32.mrb[0].mxu0
      %v765 = vadd.f32 0.0, %v764
      %v766 = vpop.f32.mrb[0].mxu0
      %767 = vmatprep.mubr.f32.mxu0 0.0
      %768 = vmatmul.mubr.f32.gmra.mrb[0].mxu0 %v566
      %v769 = vpop.f32.mrb[0].mxu0
      %v770 = vadd.f32 0.0, %v769
      %v771 = vpop.f32.mrb[0].mxu0
      %772 = vmatprep.mubr.f32.mxu0 0.0
      %773 = vmatmul.mubr.f32.gmra.mrb[0].mxu0 %v569
      %v774 = vpop.f32.mrb[0].mxu0
      %v775 = vadd.f32 0.0, %v774
      %v776 = vpop.f32.mrb[0].mxu0
      %777 = vmatprep.mubr.f32.mxu0 0.0
      %778 = vmatmul.mubr.f32.gmra.mrb[0].mxu0 %v572
      %v779 = vpop.f32.mrb[0].mxu0
      %v780 = vadd.f32 0.0, %v779
      %v781 = vpop.f32.mrb[0].mxu0
      %782 = vmatprep.mubr.f32.mxu0 0.0
      %783 = vmatmul.mubr.f32.gmra.mrb[0].mxu0 %v575
      %v784 = vpop.f32.mrb[0].mxu0
      %v785 = vadd.f32 0.0, %v784
      %v786 = vpop.f32.mrb[0].mxu0
      %787 = vmatprep.mubr.f32.mxu0 0.0
      %788 = vmatmul.mubr.f32.gmra.mrb[0].mxu0 %v578
      %v789 = vpop.f32.mrb[0].mxu0
      %v790 = vadd.f32 0.0, %v789
      %v791 = vpop.f32.mrb[0].mxu0
      %792 = vmatprep.mubr.f32.mxu0 0.0
      %793 = vmatmul.mubr.f32.gmra.mrb[0].mxu0 %v581
      %v794 = vpop.f32.mrb[0].mxu0
      %v795 = vadd.f32 0.0, %v794
      %v796 = vpop.f32.mrb[0].mxu0
      %797 = vmatprep.mubr.f32.mxu0 0.0
      %798 = vmatmul.mubr.f32.gmra.mrb[0].mxu0 %v584
      %v799 = vpop.f32.mrb[0].mxu0
      %v800 = vadd.f32 0.0, %v799
      %v801 = vpop.f32.mrb[0].mxu0
      %802 = vmatprep.mubr.f32.mxu0 0.0
      %803 = vmatmul.mubr.f32.gmra.mrb[0].mxu0 %v587
      %v804 = vpop.f32.mrb[0].mxu0
      %v805 = vadd.f32 0.0, %v804
      %v806 = vpop.f32.mrb[0].mxu0
      %807 = vmatprep.mubr.f32.mxu0 0.0
      %808 = vmatmul.mubr.f32.gmra.mrb[0].mxu0 %v590
      %v809 = vpop.f32.mrb[0].mxu0
      %v810 = vadd.f32 0.0, %v809
      %v811 = vpop.f32.mrb[0].mxu0
      %812 = vmatprep.mubr.f32.mxu0 0.0
      %813 = vmatmul.mubr.f32.gmra.mrb[0].mxu0 %v593
      %v814 = vpop.f32.mrb[0].mxu0
      %v815 = vadd.f32 0.0, %v814
      %v816 = vpop.f32.mrb[0].mxu0
      %817 = vmatprep.mubr.f32.mxu0 0.0
      %818 = vmatmul.mubr.f32.gmra.mrb[0].mxu0 %v596
      %v819 = vpop.f32.mrb[0].mxu0
      %v820 = vadd.f32 0.0, %v819
      %v821 = vpop.f32.mrb[0].mxu0
      %822 = vmatprep.mubr.f32.mxu0 0.0
      %823 = vmatmul.mubr.f32.gmra.mrb[0].mxu0 %v599
      %v824 = vpop.f32.mrb[0].mxu0
      %v825 = vadd.f32 0.0, %v824
      %v826 = vpop.f32.mrb[0].mxu0
      %827 = vmatprep.mubr.f32.mxu0 0.0
      %828 = vmatmul.mubr.f32.gmra.mrb[0].mxu0 %v602
      %v829 = vpop.f32.mrb[0].mxu0
      %v830 = vadd.f32 0.0, %v829
      %v831 = vpop.f32.mrb[0].mxu0
      %832 = vmatprep.mubr.f32.mxu0 0.0
      %833 = vmatmul.mubr.f32.gmra.mrb[0].mxu0 %v605
      %v834 = vpop.f32.mrb[0].mxu0
      %v835 = vadd.f32 0.0, %v834
      %v836 = vpop.f32.mrb[0].mxu0
      %837 = vmatprep.mubr.f32.mxu0 0.0
      %838 = vmatmul.mubr.f32.gmra.mrb[0].mxu0 %v608
      %v839 = vpop.f32.mrb[0].mxu0
      %v840 = vadd.f32 0.0, %v839
      %v841 = vpop.f32.mrb[0].mxu0
      %842 = vmatprep.mubr.f32.mxu0 0.0
      %843 = vmatmul.mubr.f32.gmra.mrb[0].mxu0 %v611
      %v844 = vpop.f32.mrb[0].mxu0
      %v845 = vadd.f32 0.0, %v844
      %v846 = vpop.f32.mrb[0].mxu0
      %847 = vmatprep.mubr.f32.mxu0 0.0
      %848 = vmatmul.mubr.f32.gmra.mrb[0].mxu0 %v614
      %v849 = vpop.f32.mrb[0].mxu0
      %v850 = vadd.f32 0.0, %v849
      %v851 = vpop.f32.mrb[0].mxu0
      %852 = vmatprep.mubr.f32.mxu0 0.0
      %853 = vmatmul.mubr.f32.gmra.mrb[0].mxu0 %v617
      %v854 = vpop.f32.mrb[0].mxu0
      %v855 = vadd.f32 0.0, %v854
      %v856 = vpop.f32.mrb[0].mxu0
      %857 = vmatprep.mubr.f32.mxu0 0.0
      %858 = vmatmul.mubr.f32.gmra.mrb[0].mxu0 %v620
      %v859 = vpop.f32.mrb[0].mxu0
      %v860 = vadd.f32 0.0, %v859
      %v861 = vpop.f32.mrb[0].mxu0
      %862 = vmatprep.mubr.f32.mxu0 0.0
      %863 = vmatmul.mubr.f32.gmra.mrb[0].mxu0 %v623
      %v864 = vpop.f32.mrb[0].mxu0
      %v865 = vadd.f32 0.0, %v864
      %v866 = vpop.f32.mrb[0].mxu0
      %867 = vmatprep.mubr.f32.mxu0 0.0
      %868 = vmatmul.mubr.f32.gmra.mrb[0].mxu0 %v626
      %v869 = vpop.f32.mrb[0].mxu0
      %v870 = vadd.f32 0.0, %v869
      %v871 = vpop.f32.mrb[0].mxu0
      %872 = vmatprep.mubr.f32.mxu0 0.0
      %873 = vmatmul.mubr.f32.gmra.mrb[0].mxu0 %v629
      %v874 = vpop.f32.mrb[0].mxu0
      %v875 = vadd.f32 0.0, %v874
      %v876 = vpop.f32.mrb[0].mxu0
      %877 = vmatprep.mubr.f32.mxu0 0.0
      %878 = vmatmul.mubr.f32.gmra.mrb[0].mxu0 %v632
      %v879 = vpop.f32.mrb[0].mxu0
      %v880 = vadd.f32 0.0, %v879
      %v881 = vpop.f32.mrb[0].mxu0
      %882 = vdwg.mxu0
      %v883 = vld [vmem:[#allocation3] sm:$0xff]
      %v884 = vld [vmem:[#allocation3 + $0x8] sm:$0xff]
      %v885 = vld [vmem:[#allocation3 + $0x10] sm:$0xff]
      %v886 = vld [vmem:[#allocation3 + $0x18] sm:$0xff]
      %v887 = vld [vmem:[#allocation3 + $0x20] sm:$0xf]
      %v889 = vsel %vm634, %v887, 0
      %891 = vmatprep.subr.mxu0 0.0
      %892 = vmatpush1.msra.mxu0 %v883
      %893 = vmatprep.subr.mxu0 0.0
      %894 = vmatpush1.msra.mxu0 %v884
      %895 = vmatprep.subr.mxu0 0.0
      %896 = vmatpush1.msra.mxu0 %v885
      %897 = vmatprep.subr.mxu0 0.0
      %898 = vmatpush1.msra.mxu0 %v886
      %899 = vmatprep.subr.mxu0 0.0
      %900 = vmatpush1.msra.mxu0 %v889
      %901 = vmatprep.subr.mxu0 0.0
      %902 = vmatpush1.msra.mxu0 0.0
      %903 = vmatprep.subr.mxu0 0.0
      %904 = vmatpush1.msra.mxu0 0.0
      %905 = vmatprep.subr.mxu0 0.0
      %906 = vmatpush1.msra.mxu0 0.0
      %907 = vmatprep.subr.mxu0 0.0
      %908 = vmatpush1.msra.mxu0 0.0
      %909 = vmatprep.subr.mxu0 0.0
      %910 = vmatpush1.msra.mxu0 0.0
      %911 = vmatprep.subr.mxu0 0.0
      %912 = vmatpush1.msra.mxu0 0.0
      %913 = vmatprep.subr.mxu0 0.0
      %914 = vmatpush1.msra.mxu0 0.0
      %915 = vmatprep.subr.mxu0 0.0
      %916 = vmatpush1.msra.mxu0 0.0
      %917 = vmatprep.subr.mxu0 0.0
      %918 = vmatpush1.msra.mxu0 0.0
      %919 = vmatprep.subr.mxu0 0.0
      %920 = vmatpush1.msra.mxu0 0.0
      %921 = vmatprep.subr.mxu0 0.0
      %922 = vmatpush1.msra.mxu0 0.0
      %923 = vmatprep.subr.mxu0 0.0
      %924 = vmatpush1.msra.mxu0 0.0
      %925 = vmatprep.subr.mxu0 0.0
      %926 = vmatpush1.msra.mxu0 0.0
      %927 = vmatprep.subr.mxu0 0.0
      %928 = vmatpush1.msra.mxu0 0.0
      %929 = vmatprep.subr.mxu0 0.0
      %930 = vmatpush1.msra.mxu0 0.0
      %931 = vmatprep.subr.mxu0 0.0
      %932 = vmatpush1.msra.mxu0 0.0
      %933 = vmatprep.subr.mxu0 0.0
      %934 = vmatpush1.msra.mxu0 0.0
      %935 = vmatprep.subr.mxu0 0.0
      %936 = vmatpush1.msra.mxu0 0.0
      %937 = vmatprep.subr.mxu0 0.0
      %938 = vmatpush1.msra.mxu0 0.0
      %939 = vmatprep.subr.mxu0 0.0
      %940 = vmatpush1.msra.mxu0 0.0
      %941 = vmatprep.subr.mxu0 0.0
      %942 = vmatpush1.msra.mxu0 0.0
      %943 = vmatprep.subr.mxu0 0.0
      %944 = vmatpush1.msra.mxu0 0.0
      %945 = vmatprep.subr.mxu0 0.0
      %946 = vmatpush1.msra.mxu0 0.0
      %947 = vmatprep.subr.mxu0 0.0
      %948 = vmatpush1.msra.mxu0 0.0
      %949 = vmatprep.subr.mxu0 0.0
      %950 = vmatpush1.msra.mxu0 0.0
      %951 = vmatprep.subr.mxu0 0.0
      %952 = vmatpush1.msra.mxu0 0.0
      %953 = vmatprep.subr.mxu0 0.0
      %954 = vmatpush1.msra.mxu0 0.0
      %955 = vmatprep.mubr.f32.mxu0 0.0
      %956 = vmatmul.mubr.f32.gmra.mrb[0].mxu0 %v527
      %v957 = vpop.f32.mrb[0].mxu0
      %v958 = vadd.f32 0.0, %v957
      %v959 = vpop.f32.mrb[0].mxu0
      %960 = vmatprep.mubr.f32.mxu0 0.0
      %961 = vmatmul.mubr.f32.gmra.mrb[0].mxu0 %v530
      %v962 = vpop.f32.mrb[0].mxu0
      %v963 = vadd.f32 0.0, %v962
      %v964 = vpop.f32.mrb[0].mxu0
      %965 = vmatprep.mubr.f32.mxu0 0.0
      %966 = vmatmul.mubr.f32.gmra.mrb[0].mxu0 %v533
      %v967 = vpop.f32.mrb[0].mxu0
      %v968 = vadd.f32 0.0, %v967
      %v969 = vpop.f32.mrb[0].mxu0
      %970 = vmatprep.mubr.f32.mxu0 0.0
      %971 = vmatmul.mubr.f32.gmra.mrb[0].mxu0 %v536
      %v972 = vpop.f32.mrb[0].mxu0
      %v973 = vadd.f32 0.0, %v972
      %v974 = vpop.f32.mrb[0].mxu0
      %975 = vmatprep.mubr.f32.mxu0 0.0
      %976 = vmatmul.mubr.f32.gmra.mrb[0].mxu0 %v539
      %v977 = vpop.f32.mrb[0].mxu0
      %v978 = vadd.f32 0.0, %v977
      %v979 = vpop.f32.mrb[0].mxu0
      %980 = vmatprep.mubr.f32.mxu0 0.0
      %981 = vmatmul.mubr.f32.gmra.mrb[0].mxu0 %v542
      %v982 = vpop.f32.mrb[0].mxu0
      %v983 = vadd.f32 0.0, %v982
      %v984 = vpop.f32.mrb[0].mxu0
      %985 = vmatprep.mubr.f32.mxu0 0.0
      %986 = vmatmul.mubr.f32.gmra.mrb[0].mxu0 %v545
      %v987 = vpop.f32.mrb[0].mxu0
      %v988 = vadd.f32 0.0, %v987
      %v989 = vpop.f32.mrb[0].mxu0
      %990 = vmatprep.mubr.f32.mxu0 0.0
      %991 = vmatmul.mubr.f32.gmra.mrb[0].mxu0 %v548
      %v992 = vpop.f32.mrb[0].mxu0
      %v993 = vadd.f32 0.0, %v992
      %v994 = vpop.f32.mrb[0].mxu0
      %995 = vmatprep.mubr.f32.mxu0 0.0
      %996 = vmatmul.mubr.f32.gmra.mrb[0].mxu0 %v551
      %v997 = vpop.f32.mrb[0].mxu0
      %v998 = vadd.f32 0.0, %v997
      %v999 = vpop.f32.mrb[0].mxu0
      %1000 = vmatprep.mubr.f32.mxu0 0.0
      %1001 = vmatmul.mubr.f32.gmra.mrb[0].mxu0 %v554
      %v1002 = vpop.f32.mrb[0].mxu0
      %v1003 = vadd.f32 0.0, %v1002
      %v1004 = vpop.f32.mrb[0].mxu0
      %1005 = vmatprep.mubr.f32.mxu0 0.0
      %1006 = vmatmul.mubr.f32.gmra.mrb[0].mxu0 %v557
      %v1007 = vpop.f32.mrb[0].mxu0
      %v1008 = vadd.f32 0.0, %v1007
      %v1009 = vpop.f32.mrb[0].mxu0
      %1010 = vmatprep.mubr.f32.mxu0 0.0
      %1011 = vmatmul.mubr.f32.gmra.mrb[0].mxu0 %v560
      %v1012 = vpop.f32.mrb[0].mxu0
      %v1013 = vadd.f32 0.0, %v1012
      %v1014 = vpop.f32.mrb[0].mxu0
      %1015 = vmatprep.mubr.f32.mxu0 0.0
      %1016 = vmatmul.mubr.f32.gmra.mrb[0].mxu0 %v563
      %v1017 = vpop.f32.mrb[0].mxu0
      %v1018 = vadd.f32 0.0, %v1017
      %v1019 = vpop.f32.mrb[0].mxu0
      %1020 = vmatprep.mubr.f32.mxu0 0.0
      %1021 = vmatmul.mubr.f32.gmra.mrb[0].mxu0 %v566
      %v1022 = vpop.f32.mrb[0].mxu0
      %v1023 = vadd.f32 0.0, %v1022
      %v1024 = vpop.f32.mrb[0].mxu0
      %1025 = vmatprep.mubr.f32.mxu0 0.0
      %1026 = vmatmul.mubr.f32.gmra.mrb[0].mxu0 %v569
      %v1027 = vpop.f32.mrb[0].mxu0
      %v1028 = vadd.f32 0.0, %v1027
      %v1029 = vpop.f32.mrb[0].mxu0
      %1030 = vmatprep.mubr.f32.mxu0 0.0
      %1031 = vmatmul.mubr.f32.gmra.mrb[0].mxu0 %v572
      %v1032 = vpop.f32.mrb[0].mxu0
      %v1033 = vadd.f32 0.0, %v1032
      %v1034 = vpop.f32.mrb[0].mxu0
      %1035 = vmatprep.mubr.f32.mxu0 0.0
      %1036 = vmatmul.mubr.f32.gmra.mrb[0].mxu0 %v575
      %v1037 = vpop.f32.mrb[0].mxu0
      %v1038 = vadd.f32 0.0, %v1037
      %v1039 = vpop.f32.mrb[0].mxu0
      %1040 = vmatprep.mubr.f32.mxu0 0.0
      %1041 = vmatmul.mubr.f32.gmra.mrb[0].mxu0 %v578
      %v1042 = vpop.f32.mrb[0].mxu0
      %v1043 = vadd.f32 0.0, %v1042
      %v1044 = vpop.f32.mrb[0].mxu0
      %1045 = vmatprep.mubr.f32.mxu0 0.0
      %1046 = vmatmul.mubr.f32.gmra.mrb[0].mxu0 %v581
      %v1047 = vpop.f32.mrb[0].mxu0
      %v1048 = vadd.f32 0.0, %v1047
      %v1049 = vpop.f32.mrb[0].mxu0
      %1050 = vmatprep.mubr.f32.mxu0 0.0
      %1051 = vmatmul.mubr.f32.gmra.mrb[0].mxu0 %v584
      %v1052 = vpop.f32.mrb[0].mxu0
      %v1053 = vadd.f32 0.0, %v1052
      %v1054 = vpop.f32.mrb[0].mxu0
      %1055 = vmatprep.mubr.f32.mxu0 0.0
      %1056 = vmatmul.mubr.f32.gmra.mrb[0].mxu0 %v587
      %v1057 = vpop.f32.mrb[0].mxu0
      %v1058 = vadd.f32 0.0, %v1057
      %v1059 = vpop.f32.mrb[0].mxu0
      %1060 = vmatprep.mubr.f32.mxu0 0.0
      %1061 = vmatmul.mubr.f32.gmra.mrb[0].mxu0 %v590
      %v1062 = vpop.f32.mrb[0].mxu0
      %v1063 = vadd.f32 0.0, %v1062
      %v1064 = vpop.f32.mrb[0].mxu0
      %1065 = vmatprep.mubr.f32.mxu0 0.0
      %1066 = vmatmul.mubr.f32.gmra.mrb[0].mxu0 %v593
      %v1067 = vpop.f32.mrb[0].mxu0
      %v1068 = vadd.f32 0.0, %v1067
      %v1069 = vpop.f32.mrb[0].mxu0
      %1070 = vmatprep.mubr.f32.mxu0 0.0
      %1071 = vmatmul.mubr.f32.gmra.mrb[0].mxu0 %v596
      %v1072 = vpop.f32.mrb[0].mxu0
      %v1073 = vadd.f32 0.0, %v1072
      %v1074 = vpop.f32.mrb[0].mxu0
      %1075 = vmatprep.mubr.f32.mxu0 0.0
      %1076 = vmatmul.mubr.f32.gmra.mrb[0].mxu0 %v599
      %v1077 = vpop.f32.mrb[0].mxu0
      %v1078 = vadd.f32 0.0, %v1077
      %v1079 = vpop.f32.mrb[0].mxu0
      %1080 = vmatprep.mubr.f32.mxu0 0.0
      %1081 = vmatmul.mubr.f32.gmra.mrb[0].mxu0 %v602
      %v1082 = vpop.f32.mrb[0].mxu0
      %v1083 = vadd.f32 0.0, %v1082
      %v1084 = vpop.f32.mrb[0].mxu0
      %1085 = vmatprep.mubr.f32.mxu0 0.0
      %1086 = vmatmul.mubr.f32.gmra.mrb[0].mxu0 %v605
      %v1087 = vpop.f32.mrb[0].mxu0
      %v1088 = vadd.f32 0.0, %v1087
      %v1089 = vpop.f32.mrb[0].mxu0
      %1090 = vmatprep.mubr.f32.mxu0 0.0
      %1091 = vmatmul.mubr.f32.gmra.mrb[0].mxu0 %v608
      %v1092 = vpop.f32.mrb[0].mxu0
      %v1093 = vadd.f32 0.0, %v1092
      %v1094 = vpop.f32.mrb[0].mxu0
      %1095 = vmatprep.mubr.f32.mxu0 0.0
      %1096 = vmatmul.mubr.f32.gmra.mrb[0].mxu0 %v611
      %v1097 = vpop.f32.mrb[0].mxu0
      %v1098 = vadd.f32 0.0, %v1097
      %v1099 = vpop.f32.mrb[0].mxu0
      %1100 = vmatprep.mubr.f32.mxu0 0.0
      %1101 = vmatmul.mubr.f32.gmra.mrb[0].mxu0 %v614
      %v1102 = vpop.f32.mrb[0].mxu0
      %v1103 = vadd.f32 0.0, %v1102
      %v1104 = vpop.f32.mrb[0].mxu0
      %1105 = vmatprep.mubr.f32.mxu0 0.0
      %1106 = vmatmul.mubr.f32.gmra.mrb[0].mxu0 %v617
      %v1107 = vpop.f32.mrb[0].mxu0
      %v1108 = vadd.f32 0.0, %v1107
      %v1109 = vpop.f32.mrb[0].mxu0
      %1110 = vmatprep.mubr.f32.mxu0 0.0
      %1111 = vmatmul.mubr.f32.gmra.mrb[0].mxu0 %v620
      %v1112 = vpop.f32.mrb[0].mxu0
      %v1113 = vadd.f32 0.0, %v1112
      %v1114 = vpop.f32.mrb[0].mxu0
      %1115 = vmatprep.mubr.f32.mxu0 0.0
      %1116 = vmatmul.mubr.f32.gmra.mrb[0].mxu0 %v623
      %v1117 = vpop.f32.mrb[0].mxu0
      %v1118 = vadd.f32 0.0, %v1117
      %v1119 = vpop.f32.mrb[0].mxu0
      %1120 = vmatprep.mubr.f32.mxu0 0.0
      %1121 = vmatmul.mubr.f32.gmra.mrb[0].mxu0 %v626
      %v1122 = vpop.f32.mrb[0].mxu0
      %v1123 = vadd.f32 0.0, %v1122
      %v1124 = vpop.f32.mrb[0].mxu0
      %1125 = vmatprep.mubr.f32.mxu0 0.0
      %1126 = vmatmul.mubr.f32.gmra.mrb[0].mxu0 %v629
      %v1127 = vpop.f32.mrb[0].mxu0
      %v1128 = vadd.f32 0.0, %v1127
      %v1129 = vpop.f32.mrb[0].mxu0
      %1130 = vmatprep.mubr.f32.mxu0 0.0
      %1131 = vmatmul.mubr.f32.gmra.mrb[0].mxu0 %v632
      %v1132 = vpop.f32.mrb[0].mxu0
      %v1133 = vadd.f32 0.0, %v1132
      %v1134 = vpop.f32.mrb[0].mxu0
      %1135 = vdwg.mxu0
      %v1136 = vmul.f32 %v958, %v484
      %v1137 = vmul.f32 %v963, %v485
      %v1138 = vmul.f32 %v968, %v486
      %v1139 = vmul.f32 %v973, %v487
      %v1140 = vmul.f32 %v978, %v488
      %v1141 = vmul.f32 %v983, %v489
      %v1142 = vmul.f32 %v988, %v490
      %v1143 = vmul.f32 %v993, %v491
      %v1144 = vmul.f32 %v998, %v492
      %v1145 = vmul.f32 %v1003, %v493
      %v1146 = vmul.f32 %v1008, %v494
      %v1147 = vmul.f32 %v1013, %v495
      %v1148 = vmul.f32 %v1018, %v496
      %v1149 = vmul.f32 %v1023, %v497
      %v1150 = vmul.f32 %v1028, %v498
      %v1151 = vmul.f32 %v1033, %v499
      %v1152 = vmul.f32 %v1038, %v500
      %v1153 = vmul.f32 %v1043, %v501
      %v1154 = vmul.f32 %v1048, %v502
      %v1155 = vmul.f32 %v1053, %v503
      %v1156 = vmul.f32 %v1058, %v504
      %v1157 = vmul.f32 %v1063, %v505
      %v1158 = vmul.f32 %v1068, %v506
      %v1159 = vmul.f32 %v1073, %v507
      %v1160 = vmul.f32 %v1078, %v508
      %v1161 = vmul.f32 %v1083, %v509
      %v1162 = vmul.f32 %v1088, %v510
      %v1163 = vmul.f32 %v1093, %v511
      %v1164 = vmul.f32 %v1098, %v512
      %v1165 = vmul.f32 %v1103, %v513
      %v1166 = vmul.f32 %v1108, %v514
      %v1167 = vmul.f32 %v1113, %v515
      %v1168 = vmul.f32 %v1118, %v516
      %v1169 = vmul.f32 %v1123, %v517
      %v1170 = vmul.f32 %v1128, %v518
      %v1171 = vmul.f32 %v1133, %v519
      %v1172 = vsel %vm525, %v1136, 0.0
      %1173 = vadd.xlane.f32.xlu0 %v1172
      %v1174 = vpop.xlane.xlu0 %1173
      %v1175 = vsel %vm525, %v1137, 0.0
      %1176 = vadd.xlane.f32.xlu0 %v1175
      %v1177 = vpop.xlane.xlu0 %1176
      %v1178 = vsel %vm525, %v1138, 0.0
      %1179 = vadd.xlane.f32.xlu0 %v1178
      %v1180 = vpop.xlane.xlu0 %1179
      %v1181 = vsel %vm525, %v1139, 0.0
      %1182 = vadd.xlane.f32.xlu0 %v1181
      %v1183 = vpop.xlane.xlu0 %1182
      %v1184 = vsel %vm525, %v1140, 0.0
      %1185 = vadd.xlane.f32.xlu0 %v1184
      %v1186 = vpop.xlane.xlu0 %1185
      %v1187 = vsel %vm525, %v1141, 0.0
      %1188 = vadd.xlane.f32.xlu0 %v1187
      %v1189 = vpop.xlane.xlu0 %1188
      %v1190 = vsel %vm525, %v1142, 0.0
      %1191 = vadd.xlane.f32.xlu0 %v1190
      %v1192 = vpop.xlane.xlu0 %1191
      %v1193 = vsel %vm525, %v1143, 0.0
      %1194 = vadd.xlane.f32.xlu0 %v1193
      %v1195 = vpop.xlane.xlu0 %1194
      %v1196 = vsel %vm525, %v1144, 0.0
      %1197 = vadd.xlane.f32.xlu0 %v1196
      %v1198 = vpop.xlane.xlu0 %1197
      %v1199 = vsel %vm525, %v1145, 0.0
      %1200 = vadd.xlane.f32.xlu0 %v1199
      %v1201 = vpop.xlane.xlu0 %1200
      %v1202 = vsel %vm525, %v1146, 0.0
      %1203 = vadd.xlane.f32.xlu0 %v1202
      %v1204 = vpop.xlane.xlu0 %1203
      %v1205 = vsel %vm525, %v1147, 0.0
      %1206 = vadd.xlane.f32.xlu0 %v1205
      %v1207 = vpop.xlane.xlu0 %1206
      %v1208 = vsel %vm525, %v1148, 0.0
      %1209 = vadd.xlane.f32.xlu0 %v1208
      %v1210 = vpop.xlane.xlu0 %1209
      %v1211 = vsel %vm525, %v1149, 0.0
      %1212 = vadd.xlane.f32.xlu0 %v1211
      %v1213 = vpop.xlane.xlu0 %1212
      %v1214 = vsel %vm525, %v1150, 0.0
      %1215 = vadd.xlane.f32.xlu0 %v1214
      %v1216 = vpop.xlane.xlu0 %1215
      %v1217 = vsel %vm525, %v1151, 0.0
      %1218 = vadd.xlane.f32.xlu0 %v1217
      %v1219 = vpop.xlane.xlu0 %1218
      %v1220 = vsel %vm525, %v1152, 0.0
      %1221 = vadd.xlane.f32.xlu0 %v1220
      %v1222 = vpop.xlane.xlu0 %1221
      %v1223 = vsel %vm525, %v1153, 0.0
      %1224 = vadd.xlane.f32.xlu0 %v1223
      %v1225 = vpop.xlane.xlu0 %1224
      %v1226 = vsel %vm525, %v1154, 0.0
      %1227 = vadd.xlane.f32.xlu0 %v1226
      %v1228 = vpop.xlane.xlu0 %1227
      %v1229 = vsel %vm525, %v1155, 0.0
      %1230 = vadd.xlane.f32.xlu0 %v1229
      %v1231 = vpop.xlane.xlu0 %1230
      %v1232 = vsel %vm525, %v1156, 0.0
      %1233 = vadd.xlane.f32.xlu0 %v1232
      %v1234 = vpop.xlane.xlu0 %1233
      %v1235 = vsel %vm525, %v1157, 0.0
      %1236 = vadd.xlane.f32.xlu0 %v1235
      %v1237 = vpop.xlane.xlu0 %1236
      %v1238 = vsel %vm525, %v1158, 0.0
      %1239 = vadd.xlane.f32.xlu0 %v1238
      %v1240 = vpop.xlane.xlu0 %1239
      %v1241 = vsel %vm525, %v1159, 0.0
      %1242 = vadd.xlane.f32.xlu0 %v1241
      %v1243 = vpop.xlane.xlu0 %1242
      %v1244 = vsel %vm525, %v1160, 0.0
      %1245 = vadd.xlane.f32.xlu0 %v1244
      %v1246 = vpop.xlane.xlu0 %1245
      %v1247 = vsel %vm525, %v1161, 0.0
      %1248 = vadd.xlane.f32.xlu0 %v1247
      %v1249 = vpop.xlane.xlu0 %1248
      %v1250 = vsel %vm525, %v1162, 0.0
      %1251 = vadd.xlane.f32.xlu0 %v1250
      %v1252 = vpop.xlane.xlu0 %1251
      %v1253 = vsel %vm525, %v1163, 0.0
      %1254 = vadd.xlane.f32.xlu0 %v1253
      %v1255 = vpop.xlane.xlu0 %1254
      %v1256 = vsel %vm525, %v1164, 0.0
      %1257 = vadd.xlane.f32.xlu0 %v1256
      %v1258 = vpop.xlane.xlu0 %1257
      %v1259 = vsel %vm525, %v1165, 0.0
      %1260 = vadd.xlane.f32.xlu0 %v1259
      %v1261 = vpop.xlane.xlu0 %1260
      %v1262 = vsel %vm525, %v1166, 0.0
      %1263 = vadd.xlane.f32.xlu0 %v1262
      %v1264 = vpop.xlane.xlu0 %1263
      %v1265 = vsel %vm525, %v1167, 0.0
      %1266 = vadd.xlane.f32.xlu0 %v1265
      %v1267 = vpop.xlane.xlu0 %1266
      %v1268 = vsel %vm525, %v1168, 0.0
      %1269 = vadd.xlane.f32.xlu0 %v1268
      %v1270 = vpop.xlane.xlu0 %1269
      %v1271 = vsel %vm525, %v1169, 0.0
      %1272 = vadd.xlane.f32.xlu0 %v1271
      %v1273 = vpop.xlane.xlu0 %1272
      %v1274 = vsel %vm525, %v1170, 0.0
      %1275 = vadd.xlane.f32.xlu0 %v1274
      %v1276 = vpop.xlane.xlu0 %1275
      %v1277 = vsel %vm525, %v1171, 0.0
      %1278 = vadd.xlane.f32.xlu0 %v1277
      %v1279 = vpop.xlane.xlu0 %1278
      %v1280 = vmax.f32 %v1174, 1e-24
      %v1281 = vmax.f32 %v1177, 1e-24
      %v1282 = vmax.f32 %v1180, 1e-24
      %v1283 = vmax.f32 %v1183, 1e-24
      %v1284 = vmax.f32 %v1186, 1e-24
      %v1285 = vmax.f32 %v1189, 1e-24
      %v1286 = vmax.f32 %v1192, 1e-24
      %v1287 = vmax.f32 %v1195, 1e-24
      %v1288 = vmax.f32 %v1198, 1e-24
      %v1289 = vmax.f32 %v1201, 1e-24
      %v1290 = vmax.f32 %v1204, 1e-24
      %v1291 = vmax.f32 %v1207, 1e-24
      %v1292 = vmax.f32 %v1210, 1e-24
      %v1293 = vmax.f32 %v1213, 1e-24
      %v1294 = vmax.f32 %v1216, 1e-24
      %v1295 = vmax.f32 %v1219, 1e-24
      %v1296 = vmax.f32 %v1222, 1e-24
      %v1297 = vmax.f32 %v1225, 1e-24
      %v1298 = vmax.f32 %v1228, 1e-24
      %v1299 = vmax.f32 %v1231, 1e-24
      %v1300 = vmax.f32 %v1234, 1e-24
      %v1301 = vmax.f32 %v1237, 1e-24
      %v1302 = vmax.f32 %v1240, 1e-24
      %v1303 = vmax.f32 %v1243, 1e-24
      %v1304 = vmax.f32 %v1246, 1e-24
      %v1305 = vmax.f32 %v1249, 1e-24
      %v1306 = vmax.f32 %v1252, 1e-24
      %v1307 = vmax.f32 %v1255, 1e-24
      %v1308 = vmax.f32 %v1258, 1e-24
      %v1309 = vmax.f32 %v1261, 1e-24
      %v1310 = vmax.f32 %v1264, 1e-24
      %v1311 = vmax.f32 %v1267, 1e-24
      %v1312 = vmax.f32 %v1270, 1e-24
      %v1313 = vmax.f32 %v1273, 1e-24
      %v1314 = vmax.f32 %v1276, 1e-24
      %v1315 = vmax.f32 %v1279, 1e-24
      %v1316 = vrsqrt.pop %v1280
      %v1317 = vrsqrt.pop %v1281
      %v1318 = vrsqrt.pop %v1282
      %v1319 = vrsqrt.pop %v1283
      %v1320 = vrsqrt.pop %v1284
      %v1321 = vrsqrt.pop %v1285
      %v1322 = vrsqrt.pop %v1286
      %v1323 = vrsqrt.pop %v1287
      %v1324 = vrsqrt.pop %v1288
      %v1325 = vrsqrt.pop %v1289
      %v1326 = vrsqrt.pop %v1290
      %v1327 = vrsqrt.pop %v1291
      %v1328 = vrsqrt.pop %v1292
      %v1329 = vrsqrt.pop %v1293
      %v1330 = vrsqrt.pop %v1294
      %v1331 = vrsqrt.pop %v1295
      %v1332 = vrsqrt.pop %v1296
      %v1333 = vrsqrt.pop %v1297
      %v1334 = vrsqrt.pop %v1298
      %v1335 = vrsqrt.pop %v1299
      %v1336 = vrsqrt.pop %v1300
      %v1337 = vrsqrt.pop %v1301
      %v1338 = vrsqrt.pop %v1302
      %v1339 = vrsqrt.pop %v1303
      %v1340 = vrsqrt.pop %v1304
      %v1341 = vrsqrt.pop %v1305
      %v1342 = vrsqrt.pop %v1306
      %v1343 = vrsqrt.pop %v1307
      %v1344 = vrsqrt.pop %v1308
      %v1345 = vrsqrt.pop %v1309
      %v1346 = vrsqrt.pop %v1310
      %v1347 = vrsqrt.pop %v1311
      %v1348 = vrsqrt.pop %v1312
      %v1349 = vrsqrt.pop %v1313
      %v1350 = vrsqrt.pop %v1314
      %v1351 = vrsqrt.pop %v1315
      %v1352 = vmul.f32 %v1316, 10.0
      %v1353 = vmul.f32 %v1317, 10.0
      %v1354 = vmul.f32 %v1318, 10.0
      %v1355 = vmul.f32 %v1319, 10.0
      %v1356 = vmul.f32 %v1320, 10.0
      %v1357 = vmul.f32 %v1321, 10.0
      %v1358 = vmul.f32 %v1322, 10.0
      %v1359 = vmul.f32 %v1323, 10.0
      %v1360 = vmul.f32 %v1324, 10.0
      %v1361 = vmul.f32 %v1325, 10.0
      %v1362 = vmul.f32 %v1326, 10.0
      %v1363 = vmul.f32 %v1327, 10.0
      %v1364 = vmul.f32 %v1328, 10.0
      %v1365 = vmul.f32 %v1329, 10.0
      %v1366 = vmul.f32 %v1330, 10.0
      %v1367 = vmul.f32 %v1331, 10.0
      %v1368 = vmul.f32 %v1332, 10.0
      %v1369 = vmul.f32 %v1333, 10.0
      %v1370 = vmul.f32 %v1334, 10.0
      %v1371 = vmul.f32 %v1335, 10.0
      %v1372 = vmul.f32 %v1336, 10.0
      %v1373 = vmul.f32 %v1337, 10.0
      %v1374 = vmul.f32 %v1338, 10.0
      %v1375 = vmul.f32 %v1339, 10.0
      %v1376 = vmul.f32 %v1340, 10.0
      %v1377 = vmul.f32 %v1341, 10.0
      %v1378 = vmul.f32 %v1342, 10.0
      %v1379 = vmul.f32 %v1343, 10.0
      %v1380 = vmul.f32 %v1344, 10.0
      %v1381 = vmul.f32 %v1345, 10.0
      %v1382 = vmul.f32 %v1346, 10.0
      %v1383 = vmul.f32 %v1347, 10.0
      %v1384 = vmul.f32 %v1348, 10.0
      %v1385 = vmul.f32 %v1349, 10.0
      %v1386 = vmul.f32 %v1350, 10.0
      %v1387 = vmul.f32 %v1351, 10.0
      %v1388 = vmul.f32 %v705, %v1352
      %v1389 = vmul.f32 %v710, %v1353
      %v1390 = vmul.f32 %v715, %v1354
      %v1391 = vmul.f32 %v720, %v1355
      %v1392 = vmul.f32 %v725, %v1356
      %v1393 = vmul.f32 %v730, %v1357
      %v1394 = vmul.f32 %v735, %v1358
      %v1395 = vmul.f32 %v740, %v1359
      %v1396 = vmul.f32 %v745, %v1360
      %v1397 = vmul.f32 %v750, %v1361
      %v1398 = vmul.f32 %v755, %v1362
      %v1399 = vmul.f32 %v760, %v1363
      %v1400 = vmul.f32 %v765, %v1364
      %v1401 = vmul.f32 %v770, %v1365
      %v1402 = vmul.f32 %v775, %v1366
      %v1403 = vmul.f32 %v780, %v1367
      %v1404 = vmul.f32 %v785, %v1368
      %v1405 = vmul.f32 %v790, %v1369
      %v1406 = vmul.f32 %v795, %v1370
      %v1407 = vmul.f32 %v800, %v1371
      %v1408 = vmul.f32 %v805, %v1372
      %v1409 = vmul.f32 %v810, %v1373
      %v1410 = vmul.f32 %v815, %v1374
      %v1411 = vmul.f32 %v820, %v1375
      %v1412 = vmul.f32 %v825, %v1376
      %v1413 = vmul.f32 %v830, %v1377
      %v1414 = vmul.f32 %v835, %v1378
      %v1415 = vmul.f32 %v840, %v1379
      %v1416 = vmul.f32 %v845, %v1380
      %v1417 = vmul.f32 %v850, %v1381
      %v1418 = vmul.f32 %v855, %v1382
      %v1419 = vmul.f32 %v860, %v1383
      %v1420 = vmul.f32 %v865, %v1384
      %v1421 = vmul.f32 %v870, %v1385
      %v1422 = vmul.f32 %v875, %v1386
      %v1423 = vmul.f32 %v880, %v1387
      %v1424 = vld [vmem:[%s259] sm:$0xff]
      %v1425 = vld [vmem:[%s259 + $0x8] sm:$0xff]
      %v1426 = vld [vmem:[%s259 + $0x10] sm:$0xff]
      %v1427 = vld [vmem:[%s259 + $0x18] sm:$0xff]
      %v1428 = vld [vmem:[%s259 + $0x20] sm:$0xff]
      %v1429 = vld [vmem:[%s259 + $0x28] sm:$0xff]
      %v1430 = vld [vmem:[%s259 + $0x30] sm:$0xff]
      %v1431 = vld [vmem:[%s259 + $0x38] sm:$0xff]
      %v1432 = vld [vmem:[%s259 + $0x40] sm:$0xff]
      %v1433 = vld [vmem:[%s259 + $0x48] sm:$0xff]
      %v1434 = vld [vmem:[%s259 + $0x50] sm:$0xff]
      %v1435 = vld [vmem:[%s259 + $0x58] sm:$0xff]
      %v1436 = vld [vmem:[%s259 + $0x60] sm:$0xff]
      %v1437 = vld [vmem:[%s259 + $0x68] sm:$0xff]
      %v1438 = vld [vmem:[%s259 + $0x70] sm:$0xff]
      %v1439 = vld [vmem:[%s259 + $0x78] sm:$0xff]
      %v1440 = vld [vmem:[%s259 + $0x80] sm:$0xff]
      %v1441 = vld [vmem:[%s259 + $0x88] sm:$0xff]
      %v1442 = vld [vmem:[%s259 + $0x90] sm:$0xff]
      %v1443 = vld [vmem:[%s259 + $0x98] sm:$0xff]
      %v1444 = vld [vmem:[%s259 + $0xa0] sm:$0xff]
      %v1445 = vld [vmem:[%s259 + $0xa8] sm:$0xff]
      %v1446 = vld [vmem:[%s259 + $0xb0] sm:$0xff]
      %v1447 = vld [vmem:[%s259 + $0xb8] sm:$0xff]
      %v1448 = vld [vmem:[%s259 + $0xc0] sm:$0xff]
      %v1449 = vld [vmem:[%s259 + $0xc8] sm:$0xff]
      %v1450 = vld [vmem:[%s259 + $0xd0] sm:$0xff]
      %v1451 = vld [vmem:[%s259 + $0xd8] sm:$0xff]
      %v1452 = vld [vmem:[%s259 + $0xe0] sm:$0xff]
      %v1453 = vld [vmem:[%s259 + $0xe8] sm:$0xff]
      %v1454 = vld [vmem:[%s259 + $0xf0] sm:$0xff]
      %v1455 = vld [vmem:[%s259 + $0xf8] sm:$0xff]
      %v1456 = vld [vmem:[%s259 + $0x100] sm:$0xff]
      %v1457 = vld [vmem:[%s259 + $0x108] sm:$0xff]
      %v1458 = vld [vmem:[%s259 + $0x110] sm:$0xff]
      %v1459 = vld [vmem:[%s259 + $0x118] sm:$0xff]
      %vm1460 = vcmask 130048
      %v1461 = vsel %vm1460, %v1388, -inf
      %1462 = vmax.xlane.f32.xlu0 %v1461
      %v1463 = vpop.xlane.xlu0 %1462
      %v1464 = vsel %vm1460, %v1389, -inf
      %1465 = vmax.xlane.f32.xlu0 %v1464
      %v1466 = vpop.xlane.xlu0 %1465
      %v1467 = vsel %vm1460, %v1390, -inf
      %1468 = vmax.xlane.f32.xlu0 %v1467
      %v1469 = vpop.xlane.xlu0 %1468
      %v1470 = vsel %vm1460, %v1391, -inf
      %1471 = vmax.xlane.f32.xlu0 %v1470
      %v1472 = vpop.xlane.xlu0 %1471
      %v1473 = vsel %vm1460, %v1392, -inf
      %1474 = vmax.xlane.f32.xlu0 %v1473
      %v1475 = vpop.xlane.xlu0 %1474
      %v1476 = vsel %vm1460, %v1393, -inf
      %1477 = vmax.xlane.f32.xlu0 %v1476
      %v1478 = vpop.xlane.xlu0 %1477
      %v1479 = vsel %vm1460, %v1394, -inf
      %1480 = vmax.xlane.f32.xlu0 %v1479
      %v1481 = vpop.xlane.xlu0 %1480
      %v1482 = vsel %vm1460, %v1395, -inf
      %1483 = vmax.xlane.f32.xlu0 %v1482
      %v1484 = vpop.xlane.xlu0 %1483
      %v1485 = vsel %vm1460, %v1396, -inf
      %1486 = vmax.xlane.f32.xlu0 %v1485
      %v1487 = vpop.xlane.xlu0 %1486
      %v1488 = vsel %vm1460, %v1397, -inf
      %1489 = vmax.xlane.f32.xlu0 %v1488
      %v1490 = vpop.xlane.xlu0 %1489
      %v1491 = vsel %vm1460, %v1398, -inf
      %1492 = vmax.xlane.f32.xlu0 %v1491
      %v1493 = vpop.xlane.xlu0 %1492
      %v1494 = vsel %vm1460, %v1399, -inf
      %1495 = vmax.xlane.f32.xlu0 %v1494
      %v1496 = vpop.xlane.xlu0 %1495
      %v1497 = vsel %vm1460, %v1400, -inf
      %1498 = vmax.xlane.f32.xlu0 %v1497
      %v1499 = vpop.xlane.xlu0 %1498
      %v1500 = vsel %vm1460, %v1401, -inf
      %1501 = vmax.xlane.f32.xlu0 %v1500
      %v1502 = vpop.xlane.xlu0 %1501
      %v1503 = vsel %vm1460, %v1402, -inf
      %1504 = vmax.xlane.f32.xlu0 %v1503
      %v1505 = vpop.xlane.xlu0 %1504
      %v1506 = vsel %vm1460, %v1403, -inf
      %1507 = vmax.xlane.f32.xlu0 %v1506
      %v1508 = vpop.xlane.xlu0 %1507
      %v1509 = vsel %vm1460, %v1404, -inf
      %1510 = vmax.xlane.f32.xlu0 %v1509
      %v1511 = vpop.xlane.xlu0 %1510
      %v1512 = vsel %vm1460, %v1405, -inf
      %1513 = vmax.xlane.f32.xlu0 %v1512
      %v1514 = vpop.xlane.xlu0 %1513
      %v1515 = vsel %vm1460, %v1406, -inf
      %1516 = vmax.xlane.f32.xlu0 %v1515
      %v1517 = vpop.xlane.xlu0 %1516
      %v1518 = vsel %vm1460, %v1407, -inf
      %1519 = vmax.xlane.f32.xlu0 %v1518
      %v1520 = vpop.xlane.xlu0 %1519
      %v1521 = vsel %vm1460, %v1408, -inf
      %1522 = vmax.xlane.f32.xlu0 %v1521
      %v1523 = vpop.xlane.xlu0 %1522
      %v1524 = vsel %vm1460, %v1409, -inf
      %1525 = vmax.xlane.f32.xlu0 %v1524
      %v1526 = vpop.xlane.xlu0 %1525
      %v1527 = vsel %vm1460, %v1410, -inf
      %1528 = vmax.xlane.f32.xlu0 %v1527
      %v1529 = vpop.xlane.xlu0 %1528
      %v1530 = vsel %vm1460, %v1411, -inf
      %1531 = vmax.xlane.f32.xlu0 %v1530
      %v1532 = vpop.xlane.xlu0 %1531
      %v1533 = vsel %vm1460, %v1412, -inf
      %1534 = vmax.xlane.f32.xlu0 %v1533
      %v1535 = vpop.xlane.xlu0 %1534
      %v1536 = vsel %vm1460, %v1413, -inf
      %1537 = vmax.xlane.f32.xlu0 %v1536
      %v1538 = vpop.xlane.xlu0 %1537
      %v1539 = vsel %vm1460, %v1414, -inf
      %1540 = vmax.xlane.f32.xlu0 %v1539
      %v1541 = vpop.xlane.xlu0 %1540
      %v1542 = vsel %vm1460, %v1415, -inf
      %1543 = vmax.xlane.f32.xlu0 %v1542
      %v1544 = vpop.xlane.xlu0 %1543
      %v1545 = vsel %vm1460, %v1416, -inf
      %1546 = vmax.xlane.f32.xlu0 %v1545
      %v1547 = vpop.xlane.xlu0 %1546
      %v1548 = vsel %vm1460, %v1417, -inf
      %1549 = vmax.xlane.f32.xlu0 %v1548
      %v1550 = vpop.xlane.xlu0 %1549
      %v1551 = vsel %vm1460, %v1418, -inf
      %1552 = vmax.xlane.f32.xlu0 %v1551
      %v1553 = vpop.xlane.xlu0 %1552
      %v1554 = vsel %vm1460, %v1419, -inf
      %1555 = vmax.xlane.f32.xlu0 %v1554
      %v1556 = vpop.xlane.xlu0 %1555
      %v1557 = vsel %vm1460, %v1420, -inf
      %1558 = vmax.xlane.f32.xlu0 %v1557
      %v1559 = vpop.xlane.xlu0 %1558
      %v1560 = vsel %vm1460, %v1421, -inf
      %1561 = vmax.xlane.f32.xlu0 %v1560
      %v1562 = vpop.xlane.xlu0 %1561
      %v1563 = vsel %vm1460, %v1422, -inf
      %1564 = vmax.xlane.f32.xlu0 %v1563
      %v1565 = vpop.xlane.xlu0 %1564
      %v1566 = vsel %vm1460, %v1423, -inf
      %1567 = vmax.xlane.f32.xlu0 %v1566
      %v1568 = vpop.xlane.xlu0 %1567
      %v1569 = vsub.f32 %v1388, %v1463
      %v1570 = vsub.f32 %v1389, %v1466
      %v1571 = vsub.f32 %v1390, %v1469
      %v1572 = vsub.f32 %v1391, %v1472
      %v1573 = vsub.f32 %v1392, %v1475
      %v1574 = vsub.f32 %v1393, %v1478
      %v1575 = vsub.f32 %v1394, %v1481
      %v1576 = vsub.f32 %v1395, %v1484
      %v1577 = vsub.f32 %v1396, %v1487
      %v1578 = vsub.f32 %v1397, %v1490
      %v1579 = vsub.f32 %v1398, %v1493
      %v1580 = vsub.f32 %v1399, %v1496
      %v1581 = vsub.f32 %v1400, %v1499
      %v1582 = vsub.f32 %v1401, %v1502
      %v1583 = vsub.f32 %v1402, %v1505
      %v1584 = vsub.f32 %v1403, %v1508
      %v1585 = vsub.f32 %v1404, %v1511
      %v1586 = vsub.f32 %v1405, %v1514
      %v1587 = vsub.f32 %v1406, %v1517
      %v1588 = vsub.f32 %v1407, %v1520
      %v1589 = vsub.f32 %v1408, %v1523
      %v1590 = vsub.f32 %v1409, %v1526
      %v1591 = vsub.f32 %v1410, %v1529
      %v1592 = vsub.f32 %v1411, %v1532
      %v1593 = vsub.f32 %v1412, %v1535
      %v1594 = vsub.f32 %v1413, %v1538
      %v1595 = vsub.f32 %v1414, %v1541
      %v1596 = vsub.f32 %v1415, %v1544
      %v1597 = vsub.f32 %v1416, %v1547
      %v1598 = vsub.f32 %v1417, %v1550
      %v1599 = vsub.f32 %v1418, %v1553
      %v1600 = vsub.f32 %v1419, %v1556
      %v1601 = vsub.f32 %v1420, %v1559
      %v1602 = vsub.f32 %v1421, %v1562
      %v1603 = vsub.f32 %v1422, %v1565
      %v1604 = vsub.f32 %v1423, %v1568
      %v1605 = vmul.f32 %v1569, 1.442695
      %v1606 = vpow.pop %v1605
      %v1607 = vmul.f32 %v1570, 1.442695
      %v1608 = vpow.pop %v1607
      %v1609 = vmul.f32 %v1571, 1.442695
      %v1610 = vpow.pop %v1609
      %v1611 = vmul.f32 %v1572, 1.442695
      %v1612 = vpow.pop %v1611
      %v1613 = vmul.f32 %v1573, 1.442695
      %v1614 = vpow.pop %v1613
      %v1615 = vmul.f32 %v1574, 1.442695
      %v1616 = vpow.pop %v1615
      %v1617 = vmul.f32 %v1575, 1.442695
      %v1618 = vpow.pop %v1617
      %v1619 = vmul.f32 %v1576, 1.442695
      %v1620 = vpow.pop %v1619
      %v1621 = vmul.f32 %v1577, 1.442695
      %v1622 = vpow.pop %v1621
      %v1623 = vmul.f32 %v1578, 1.442695
      %v1624 = vpow.pop %v1623
      %v1625 = vmul.f32 %v1579, 1.442695
      %v1626 = vpow.pop %v1625
      %v1627 = vmul.f32 %v1580, 1.442695
      %v1628 = vpow.pop %v1627
      %v1629 = vmul.f32 %v1581, 1.442695
      %v1630 = vpow.pop %v1629
      %v1631 = vmul.f32 %v1582, 1.442695
      %v1632 = vpow.pop %v1631
      %v1633 = vmul.f32 %v1583, 1.442695
      %v1634 = vpow.pop %v1633
      %v1635 = vmul.f32 %v1584, 1.442695
      %v1636 = vpow.pop %v1635
      %v1637 = vmul.f32 %v1585, 1.442695
      %v1638 = vpow.pop %v1637
      %v1639 = vmul.f32 %v1586, 1.442695
      %v1640 = vpow.pop %v1639
      %v1641 = vmul.f32 %v1587, 1.442695
      %v1642 = vpow.pop %v1641
      %v1643 = vmul.f32 %v1588, 1.442695
      %v1644 = vpow.pop %v1643
      %v1645 = vmul.f32 %v1589, 1.442695
      %v1646 = vpow.pop %v1645
      %v1647 = vmul.f32 %v1590, 1.442695
      %v1648 = vpow.pop %v1647
      %v1649 = vmul.f32 %v1591, 1.442695
      %v1650 = vpow.pop %v1649
      %v1651 = vmul.f32 %v1592, 1.442695
      %v1652 = vpow.pop %v1651
      %v1653 = vmul.f32 %v1593, 1.442695
      %v1654 = vpow.pop %v1653
      %v1655 = vmul.f32 %v1594, 1.442695
      %v1656 = vpow.pop %v1655
      %v1657 = vmul.f32 %v1595, 1.442695
      %v1658 = vpow.pop %v1657
      %v1659 = vmul.f32 %v1596, 1.442695
      %v1660 = vpow.pop %v1659
      %v1661 = vmul.f32 %v1597, 1.442695
      %v1662 = vpow.pop %v1661
      %v1663 = vmul.f32 %v1598, 1.442695
      %v1664 = vpow.pop %v1663
      %v1665 = vmul.f32 %v1599, 1.442695
      %v1666 = vpow.pop %v1665
      %v1667 = vmul.f32 %v1600, 1.442695
      %v1668 = vpow.pop %v1667
      %v1669 = vmul.f32 %v1601, 1.442695
      %v1670 = vpow.pop %v1669
      %v1671 = vmul.f32 %v1602, 1.442695
      %v1672 = vpow.pop %v1671
      %v1673 = vmul.f32 %v1603, 1.442695
      %v1674 = vpow.pop %v1673
      %v1675 = vmul.f32 %v1604, 1.442695
      %v1676 = vpow.pop %v1675
      %v1677 = vsel %vm1460, %v1606, 0.0
      %1678 = vadd.xlane.f32.xlu0 %v1677
      %v1679 = vpop.xlane.xlu0 %1678
      %v1680 = vsel %vm1460, %v1608, 0.0
      %1681 = vadd.xlane.f32.xlu0 %v1680
      %v1682 = vpop.xlane.xlu0 %1681
      %v1683 = vsel %vm1460, %v1610, 0.0
      %1684 = vadd.xlane.f32.xlu0 %v1683
      %v1685 = vpop.xlane.xlu0 %1684
      %v1686 = vsel %vm1460, %v1612, 0.0
      %1687 = vadd.xlane.f32.xlu0 %v1686
      %v1688 = vpop.xlane.xlu0 %1687
      %v1689 = vsel %vm1460, %v1614, 0.0
      %1690 = vadd.xlane.f32.xlu0 %v1689
      %v1691 = vpop.xlane.xlu0 %1690
      %v1692 = vsel %vm1460, %v1616, 0.0
      %1693 = vadd.xlane.f32.xlu0 %v1692
      %v1694 = vpop.xlane.xlu0 %1693
      %v1695 = vsel %vm1460, %v1618, 0.0
      %1696 = vadd.xlane.f32.xlu0 %v1695
      %v1697 = vpop.xlane.xlu0 %1696
      %v1698 = vsel %vm1460, %v1620, 0.0
      %1699 = vadd.xlane.f32.xlu0 %v1698
      %v1700 = vpop.xlane.xlu0 %1699
      %v1701 = vsel %vm1460, %v1622, 0.0
      %1702 = vadd.xlane.f32.xlu0 %v1701
      %v1703 = vpop.xlane.xlu0 %1702
      %v1704 = vsel %vm1460, %v1624, 0.0
      %1705 = vadd.xlane.f32.xlu0 %v1704
      %v1706 = vpop.xlane.xlu0 %1705
      %v1707 = vsel %vm1460, %v1626, 0.0
      %1708 = vadd.xlane.f32.xlu0 %v1707
      %v1709 = vpop.xlane.xlu0 %1708
      %v1710 = vsel %vm1460, %v1628, 0.0
      %1711 = vadd.xlane.f32.xlu0 %v1710
      %v1712 = vpop.xlane.xlu0 %1711
      %v1713 = vsel %vm1460, %v1630, 0.0
      %1714 = vadd.xlane.f32.xlu0 %v1713
      %v1715 = vpop.xlane.xlu0 %1714
      %v1716 = vsel %vm1460, %v1632, 0.0
      %1717 = vadd.xlane.f32.xlu0 %v1716
      %v1718 = vpop.xlane.xlu0 %1717
      %v1719 = vsel %vm1460, %v1634, 0.0
      %1720 = vadd.xlane.f32.xlu0 %v1719
      %v1721 = vpop.xlane.xlu0 %1720
      %v1722 = vsel %vm1460, %v1636, 0.0
      %1723 = vadd.xlane.f32.xlu0 %v1722
      %v1724 = vpop.xlane.xlu0 %1723
      %v1725 = vsel %vm1460, %v1638, 0.0
      %1726 = vadd.xlane.f32.xlu0 %v1725
      %v1727 = vpop.xlane.xlu0 %1726
      %v1728 = vsel %vm1460, %v1640, 0.0
      %1729 = vadd.xlane.f32.xlu0 %v1728
      %v1730 = vpop.xlane.xlu0 %1729
      %v1731 = vsel %vm1460, %v1642, 0.0
      %1732 = vadd.xlane.f32.xlu0 %v1731
      %v1733 = vpop.xlane.xlu0 %1732
      %v1734 = vsel %vm1460, %v1644, 0.0
      %1735 = vadd.xlane.f32.xlu0 %v1734
      %v1736 = vpop.xlane.xlu0 %1735
      %v1737 = vsel %vm1460, %v1646, 0.0
      %1738 = vadd.xlane.f32.xlu0 %v1737
      %v1739 = vpop.xlane.xlu0 %1738
      %v1740 = vsel %vm1460, %v1648, 0.0
      %1741 = vadd.xlane.f32.xlu0 %v1740
      %v1742 = vpop.xlane.xlu0 %1741
      %v1743 = vsel %vm1460, %v1650, 0.0
      %1744 = vadd.xlane.f32.xlu0 %v1743
      %v1745 = vpop.xlane.xlu0 %1744
      %v1746 = vsel %vm1460, %v1652, 0.0
      %1747 = vadd.xlane.f32.xlu0 %v1746
      %v1748 = vpop.xlane.xlu0 %1747
      %v1749 = vsel %vm1460, %v1654, 0.0
      %1750 = vadd.xlane.f32.xlu0 %v1749
      %v1751 = vpop.xlane.xlu0 %1750
      %v1752 = vsel %vm1460, %v1656, 0.0
      %1753 = vadd.xlane.f32.xlu0 %v1752
      %v1754 = vpop.xlane.xlu0 %1753
      %v1755 = vsel %vm1460, %v1658, 0.0
      %1756 = vadd.xlane.f32.xlu0 %v1755
      %v1757 = vpop.xlane.xlu0 %1756
      %v1758 = vsel %vm1460, %v1660, 0.0
      %1759 = vadd.xlane.f32.xlu0 %v1758
      %v1760 = vpop.xlane.xlu0 %1759
      %v1761 = vsel %vm1460, %v1662, 0.0
      %1762 = vadd.xlane.f32.xlu0 %v1761
      %v1763 = vpop.xlane.xlu0 %1762
      %v1764 = vsel %vm1460, %v1664, 0.0
      %1765 = vadd.xlane.f32.xlu0 %v1764
      %v1766 = vpop.xlane.xlu0 %1765
      %v1767 = vsel %vm1460, %v1666, 0.0
      %1768 = vadd.xlane.f32.xlu0 %v1767
      %v1769 = vpop.xlane.xlu0 %1768
      %v1770 = vsel %vm1460, %v1668, 0.0
      %1771 = vadd.xlane.f32.xlu0 %v1770
      %v1772 = vpop.xlane.xlu0 %1771
      %v1773 = vsel %vm1460, %v1670, 0.0
      %1774 = vadd.xlane.f32.xlu0 %v1773
      %v1775 = vpop.xlane.xlu0 %1774
      %v1776 = vsel %vm1460, %v1672, 0.0
      %1777 = vadd.xlane.f32.xlu0 %v1776
      %v1778 = vpop.xlane.xlu0 %1777
      %v1779 = vsel %vm1460, %v1674, 0.0
      %1780 = vadd.xlane.f32.xlu0 %v1779
      %v1781 = vpop.xlane.xlu0 %1780
      %v1782 = vsel %vm1460, %v1676, 0.0
      %1783 = vadd.xlane.f32.xlu0 %v1782
      %v1784 = vpop.xlane.xlu0 %1783
      %v1785 = vlog2.pop %v1679
      %v1786 = vmul.f32 %v1785, 0.6931472
      %v1787 = vlog2.pop %v1682
      %v1788 = vmul.f32 %v1787, 0.6931472
      %v1789 = vlog2.pop %v1685
      %v1790 = vmul.f32 %v1789, 0.6931472
      %v1791 = vlog2.pop %v1688
      %v1792 = vmul.f32 %v1791, 0.6931472
      %v1793 = vlog2.pop %v1691
      %v1794 = vmul.f32 %v1793, 0.6931472
      %v1795 = vlog2.pop %v1694
      %v1796 = vmul.f32 %v1795, 0.6931472
      %v1797 = vlog2.pop %v1697
      %v1798 = vmul.f32 %v1797, 0.6931472
      %v1799 = vlog2.pop %v1700
      %v1800 = vmul.f32 %v1799, 0.6931472
      %v1801 = vlog2.pop %v1703
      %v1802 = vmul.f32 %v1801, 0.6931472
      %v1803 = vlog2.pop %v1706
      %v1804 = vmul.f32 %v1803, 0.6931472
      %v1805 = vlog2.pop %v1709
      %v1806 = vmul.f32 %v1805, 0.6931472
      %v1807 = vlog2.pop %v1712
      %v1808 = vmul.f32 %v1807, 0.6931472
      %v1809 = vlog2.pop %v1715
      %v1810 = vmul.f32 %v1809, 0.6931472
      %v1811 = vlog2.pop %v1718
      %v1812 = vmul.f32 %v1811, 0.6931472
      %v1813 = vlog2.pop %v1721
      %v1814 = vmul.f32 %v1813, 0.6931472
      %v1815 = vlog2.pop %v1724
      %v1816 = vmul.f32 %v1815, 0.6931472
      %v1817 = vlog2.pop %v1727
      %v1818 = vmul.f32 %v1817, 0.6931472
      %v1819 = vlog2.pop %v1730
      %v1820 = vmul.f32 %v1819, 0.6931472
      %v1821 = vlog2.pop %v1733
      %v1822 = vmul.f32 %v1821, 0.6931472
      %v1823 = vlog2.pop %v1736
      %v1824 = vmul.f32 %v1823, 0.6931472
      %v1825 = vlog2.pop %v1739
      %v1826 = vmul.f32 %v1825, 0.6931472
      %v1827 = vlog2.pop %v1742
      %v1828 = vmul.f32 %v1827, 0.6931472
      %v1829 = vlog2.pop %v1745
      %v1830 = vmul.f32 %v1829, 0.6931472
      %v1831 = vlog2.pop %v1748
      %v1832 = vmul.f32 %v1831, 0.6931472
      %v1833 = vlog2.pop %v1751
      %v1834 = vmul.f32 %v1833, 0.6931472
      %v1835 = vlog2.pop %v1754
      %v1836 = vmul.f32 %v1835, 0.6931472
      %v1837 = vlog2.pop %v1757
      %v1838 = vmul.f32 %v1837, 0.6931472
      %v1839 = vlog2.pop %v1760
      %v1840 = vmul.f32 %v1839, 0.6931472
      %v1841 = vlog2.pop %v1763
      %v1842 = vmul.f32 %v1841, 0.6931472
      %v1843 = vlog2.pop %v1766
      %v1844 = vmul.f32 %v1843, 0.6931472
      %v1845 = vlog2.pop %v1769
      %v1846 = vmul.f32 %v1845, 0.6931472
      %v1847 = vlog2.pop %v1772
      %v1848 = vmul.f32 %v1847, 0.6931472
      %v1849 = vlog2.pop %v1775
      %v1850 = vmul.f32 %v1849, 0.6931472
      %v1851 = vlog2.pop %v1778
      %v1852 = vmul.f32 %v1851, 0.6931472
      %v1853 = vlog2.pop %v1781
      %v1854 = vmul.f32 %v1853, 0.6931472
      %v1855 = vlog2.pop %v1784
      %v1856 = vmul.f32 %v1855, 0.6931472
      %v1857 = vadd.f32 %v1463, %v1786
      %v1858 = vadd.f32 %v1466, %v1788
      %v1859 = vadd.f32 %v1469, %v1790
      %v1860 = vadd.f32 %v1472, %v1792
      %v1861 = vadd.f32 %v1475, %v1794
      %v1862 = vadd.f32 %v1478, %v1796
      %v1863 = vadd.f32 %v1481, %v1798
      %v1864 = vadd.f32 %v1484, %v1800
      %v1865 = vadd.f32 %v1487, %v1802
      %v1866 = vadd.f32 %v1490, %v1804
      %v1867 = vadd.f32 %v1493, %v1806
      %v1868 = vadd.f32 %v1496, %v1808
      %v1869 = vadd.f32 %v1499, %v1810
      %v1870 = vadd.f32 %v1502, %v1812
      %v1871 = vadd.f32 %v1505, %v1814
      %v1872 = vadd.f32 %v1508, %v1816
      %v1873 = vadd.f32 %v1511, %v1818
      %v1874 = vadd.f32 %v1514, %v1820
      %v1875 = vadd.f32 %v1517, %v1822
      %v1876 = vadd.f32 %v1520, %v1824
      %v1877 = vadd.f32 %v1523, %v1826
      %v1878 = vadd.f32 %v1526, %v1828
      %v1879 = vadd.f32 %v1529, %v1830
      %v1880 = vadd.f32 %v1532, %v1832
      %v1881 = vadd.f32 %v1535, %v1834
      %v1882 = vadd.f32 %v1538, %v1836
      %v1883 = vadd.f32 %v1541, %v1838
      %v1884 = vadd.f32 %v1544, %v1840
      %v1885 = vadd.f32 %v1547, %v1842
      %v1886 = vadd.f32 %v1550, %v1844
      %v1887 = vadd.f32 %v1553, %v1846
      %v1888 = vadd.f32 %v1556, %v1848
      %v1889 = vadd.f32 %v1559, %v1850
      %v1890 = vadd.f32 %v1562, %v1852
      %v1891 = vadd.f32 %v1565, %v1854
      %v1892 = vadd.f32 %v1568, %v1856
      %v1893 = vlaneseq
      %v1894 = vand.u32 %v1893, 127
      %1895 = vset.pattern.permute.xlu0 0
      %1896 = vperm.xlu0 %1895, %v1424
      %v1897 = vpop.permute.xlu0 %1896
      %1898 = vset.pattern.permute.xlu0 0
      %1899 = vperm.xlu0 %1898, %v1425
      %v1900 = vpop.permute.xlu0 %1899
      %1901 = vset.pattern.permute.xlu0 0
      %1902 = vperm.xlu0 %1901, %v1426
      %v1903 = vpop.permute.xlu0 %1902
      %1904 = vset.pattern.permute.xlu0 0
      %1905 = vperm.xlu0 %1904, %v1427
      %v1906 = vpop.permute.xlu0 %1905
      %1907 = vset.pattern.permute.xlu0 0
      %1908 = vperm.xlu0 %1907, %v1428
      %v1909 = vpop.permute.xlu0 %1908
      %1910 = vset.pattern.permute.xlu0 0
      %1911 = vperm.xlu0 %1910, %v1429
      %v1912 = vpop.permute.xlu0 %1911
      %1913 = vset.pattern.permute.xlu0 0
      %1914 = vperm.xlu0 %1913, %v1430
      %v1915 = vpop.permute.xlu0 %1914
      %1916 = vset.pattern.permute.xlu0 0
      %1917 = vperm.xlu0 %1916, %v1431
      %v1918 = vpop.permute.xlu0 %1917
      %1919 = vset.pattern.permute.xlu0 0
      %1920 = vperm.xlu0 %1919, %v1432
      %v1921 = vpop.permute.xlu0 %1920
      %1922 = vset.pattern.permute.xlu0 0
      %1923 = vperm.xlu0 %1922, %v1433
      %v1924 = vpop.permute.xlu0 %1923
      %1925 = vset.pattern.permute.xlu0 0
      %1926 = vperm.xlu0 %1925, %v1434
      %v1927 = vpop.permute.xlu0 %1926
      %1928 = vset.pattern.permute.xlu0 0
      %1929 = vperm.xlu0 %1928, %v1435
      %v1930 = vpop.permute.xlu0 %1929
      %1931 = vset.pattern.permute.xlu0 0
      %1932 = vperm.xlu0 %1931, %v1436
      %v1933 = vpop.permute.xlu0 %1932
      %1934 = vset.pattern.permute.xlu0 0
      %1935 = vperm.xlu0 %1934, %v1437
      %v1936 = vpop.permute.xlu0 %1935
      %1937 = vset.pattern.permute.xlu0 0
      %1938 = vperm.xlu0 %1937, %v1438
      %v1939 = vpop.permute.xlu0 %1938
      %1940 = vset.pattern.permute.xlu0 0
      %1941 = vperm.xlu0 %1940, %v1439
      %v1942 = vpop.permute.xlu0 %1941
      %1943 = vset.pattern.permute.xlu0 0
      %1944 = vperm.xlu0 %1943, %v1440
      %v1945 = vpop.permute.xlu0 %1944
      %1946 = vset.pattern.permute.xlu0 0
      %1947 = vperm.xlu0 %1946, %v1441
      %v1948 = vpop.permute.xlu0 %1947
      %1949 = vset.pattern.permute.xlu0 0
      %1950 = vperm.xlu0 %1949, %v1442
      %v1951 = vpop.permute.xlu0 %1950
      %1952 = vset.pattern.permute.xlu0 0
      %1953 = vperm.xlu0 %1952, %v1443
      %v1954 = vpop.permute.xlu0 %1953
      %1955 = vset.pattern.permute.xlu0 0
      %1956 = vperm.xlu0 %1955, %v1444
      %v1957 = vpop.permute.xlu0 %1956
      %1958 = vset.pattern.permute.xlu0 0
      %1959 = vperm.xlu0 %1958, %v1445
      %v1960 = vpop.permute.xlu0 %1959
      %1961 = vset.pattern.permute.xlu0 0
      %1962 = vperm.xlu0 %1961, %v1446
      %v1963 = vpop.permute.xlu0 %1962
      %1964 = vset.pattern.permute.xlu0 0
      %1965 = vperm.xlu0 %1964, %v1447
      %v1966 = vpop.permute.xlu0 %1965
      %1967 = vset.pattern.permute.xlu0 0
      %1968 = vperm.xlu0 %1967, %v1448
      %v1969 = vpop.permute.xlu0 %1968
      %1970 = vset.pattern.permute.xlu0 0
      %1971 = vperm.xlu0 %1970, %v1449
      %v1972 = vpop.permute.xlu0 %1971
      %1973 = vset.pattern.permute.xlu0 0
      %1974 = vperm.xlu0 %1973, %v1450
      %v1975 = vpop.permute.xlu0 %1974
      %1976 = vset.pattern.permute.xlu0 0
      %1977 = vperm.xlu0 %1976, %v1451
      %v1978 = vpop.permute.xlu0 %1977
      %1979 = vset.pattern.permute.xlu0 0
      %1980 = vperm.xlu0 %1979, %v1452
      %v1981 = vpop.permute.xlu0 %1980
      %1982 = vset.pattern.permute.xlu0 0
      %1983 = vperm.xlu0 %1982, %v1453
      %v1984 = vpop.permute.xlu0 %1983
      %1985 = vset.pattern.permute.xlu0 0
      %1986 = vperm.xlu0 %1985, %v1454
      %v1987 = vpop.permute.xlu0 %1986
      %1988 = vset.pattern.permute.xlu0 0
      %1989 = vperm.xlu0 %1988, %v1455
      %v1990 = vpop.permute.xlu0 %1989
      %1991 = vset.pattern.permute.xlu0 0
      %1992 = vperm.xlu0 %1991, %v1456
      %v1993 = vpop.permute.xlu0 %1992
      %1994 = vset.pattern.permute.xlu0 0
      %1995 = vperm.xlu0 %1994, %v1457
      %v1996 = vpop.permute.xlu0 %1995
      %1997 = vset.pattern.permute.xlu0 0
      %1998 = vperm.xlu0 %1997, %v1458
      %v1999 = vpop.permute.xlu0 %1998
      %2000 = vset.pattern.permute.xlu0 0
      %2001 = vperm.xlu0 %2000, %v1459
      %v2002 = vpop.permute.xlu0 %2001
      %vm2003 = vcmp.eq.s32.totalorder %v1894, %v1897
      %vm2004 = vcmp.eq.s32.totalorder %v1894, %v1900
      %vm2005 = vcmp.eq.s32.totalorder %v1894, %v1903
      %vm2006 = vcmp.eq.s32.totalorder %v1894, %v1906
      %vm2007 = vcmp.eq.s32.totalorder %v1894, %v1909
      %vm2008 = vcmp.eq.s32.totalorder %v1894, %v1912
      %vm2009 = vcmp.eq.s32.totalorder %v1894, %v1915
      %vm2010 = vcmp.eq.s32.totalorder %v1894, %v1918
      %vm2011 = vcmp.eq.s32.totalorder %v1894, %v1921
      %vm2012 = vcmp.eq.s32.totalorder %v1894, %v1924
      %vm2013 = vcmp.eq.s32.totalorder %v1894, %v1927
      %vm2014 = vcmp.eq.s32.totalorder %v1894, %v1930
      %vm2015 = vcmp.eq.s32.totalorder %v1894, %v1933
      %vm2016 = vcmp.eq.s32.totalorder %v1894, %v1936
      %vm2017 = vcmp.eq.s32.totalorder %v1894, %v1939
      %vm2018 = vcmp.eq.s32.totalorder %v1894, %v1942
      %vm2019 = vcmp.eq.s32.totalorder %v1894, %v1945
      %vm2020 = vcmp.eq.s32.totalorder %v1894, %v1948
      %vm2021 = vcmp.eq.s32.totalorder %v1894, %v1951
      %vm2022 = vcmp.eq.s32.totalorder %v1894, %v1954
      %vm2023 = vcmp.eq.s32.totalorder %v1894, %v1957
      %vm2024 = vcmp.eq.s32.totalorder %v1894, %v1960
      %vm2025 = vcmp.eq.s32.totalorder %v1894, %v1963
      %vm2026 = vcmp.eq.s32.totalorder %v1894, %v1966
      %vm2027 = vcmp.eq.s32.totalorder %v1894, %v1969
      %vm2028 = vcmp.eq.s32.totalorder %v1894, %v1972
      %vm2029 = vcmp.eq.s32.totalorder %v1894, %v1975
      %vm2030 = vcmp.eq.s32.totalorder %v1894, %v1978
      %vm2031 = vcmp.eq.s32.totalorder %v1894, %v1981
      %vm2032 = vcmp.eq.s32.totalorder %v1894, %v1984
      %vm2033 = vcmp.eq.s32.totalorder %v1894, %v1987
      %vm2034 = vcmp.eq.s32.totalorder %v1894, %v1990
      %vm2035 = vcmp.eq.s32.totalorder %v1894, %v1993
      %vm2036 = vcmp.eq.s32.totalorder %v1894, %v1996
      %vm2037 = vcmp.eq.s32.totalorder %v1894, %v1999
      %vm2038 = vcmp.eq.s32.totalorder %v1894, %v2002
      %v2039 = vsel %vm2003, %v1388, 0.0
      %v2040 = vsel %vm2004, %v1389, 0.0
      %v2041 = vsel %vm2005, %v1390, 0.0
      %v2042 = vsel %vm2006, %v1391, 0.0
      %v2043 = vsel %vm2007, %v1392, 0.0
      %v2044 = vsel %vm2008, %v1393, 0.0
      %v2045 = vsel %vm2009, %v1394, 0.0
      %v2046 = vsel %vm2010, %v1395, 0.0
      %v2047 = vsel %vm2011, %v1396, 0.0
      %v2048 = vsel %vm2012, %v1397, 0.0
      %v2049 = vsel %vm2013, %v1398, 0.0
      %v2050 = vsel %vm2014, %v1399, 0.0
      %v2051 = vsel %vm2015, %v1400, 0.0
      %v2052 = vsel %vm2016, %v1401, 0.0
      %v2053 = vsel %vm2017, %v1402, 0.0
      %v2054 = vsel %vm2018, %v1403, 0.0
      %v2055 = vsel %vm2019, %v1404, 0.0
      %v2056 = vsel %vm2020, %v1405, 0.0
      %v2057 = vsel %vm2021, %v1406, 0.0
      %v2058 = vsel %vm2022, %v1407, 0.0
      %v2059 = vsel %vm2023, %v1408, 0.0
      %v2060 = vsel %vm2024, %v1409, 0.0
      %v2061 = vsel %vm2025, %v1410, 0.0
      %v2062 = vsel %vm2026, %v1411, 0.0
      %v2063 = vsel %vm2027, %v1412, 0.0
      %v2064 = vsel %vm2028, %v1413, 0.0
      %v2065 = vsel %vm2029, %v1414, 0.0
      %v2066 = vsel %vm2030, %v1415, 0.0
      %v2067 = vsel %vm2031, %v1416, 0.0
      %v2068 = vsel %vm2032, %v1417, 0.0
      %v2069 = vsel %vm2033, %v1418, 0.0
      %v2070 = vsel %vm2034, %v1419, 0.0
      %v2071 = vsel %vm2035, %v1420, 0.0
      %v2072 = vsel %vm2036, %v1421, 0.0
      %v2073 = vsel %vm2037, %v1422, 0.0
      %v2074 = vsel %vm2038, %v1423, 0.0
      %v2075 = vsel %vm1460, %v2039, 0.0
      %2076 = vadd.xlane.f32.xlu0 %v2075
      %v2077 = vpop.xlane.xlu0 %2076
      %v2078 = vsel %vm1460, %v2040, 0.0
      %2079 = vadd.xlane.f32.xlu0 %v2078
      %v2080 = vpop.xlane.xlu0 %2079
      %v2081 = vsel %vm1460, %v2041, 0.0
      %2082 = vadd.xlane.f32.xlu0 %v2081
      %v2083 = vpop.xlane.xlu0 %2082
      %v2084 = vsel %vm1460, %v2042, 0.0
      %2085 = vadd.xlane.f32.xlu0 %v2084
      %v2086 = vpop.xlane.xlu0 %2085
      %v2087 = vsel %vm1460, %v2043, 0.0
      %2088 = vadd.xlane.f32.xlu0 %v2087
      %v2089 = vpop.xlane.xlu0 %2088
      %v2090 = vsel %vm1460, %v2044, 0.0
      %2091 = vadd.xlane.f32.xlu0 %v2090
      %v2092 = vpop.xlane.xlu0 %2091
      %v2093 = vsel %vm1460, %v2045, 0.0
      %2094 = vadd.xlane.f32.xlu0 %v2093
      %v2095 = vpop.xlane.xlu0 %2094
      %v2096 = vsel %vm1460, %v2046, 0.0
      %2097 = vadd.xlane.f32.xlu0 %v2096
      %v2098 = vpop.xlane.xlu0 %2097
      %v2099 = vsel %vm1460, %v2047, 0.0
      %2100 = vadd.xlane.f32.xlu0 %v2099
      %v2101 = vpop.xlane.xlu0 %2100
      %v2102 = vsel %vm1460, %v2048, 0.0
      %2103 = vadd.xlane.f32.xlu0 %v2102
      %v2104 = vpop.xlane.xlu0 %2103
      %v2105 = vsel %vm1460, %v2049, 0.0
      %2106 = vadd.xlane.f32.xlu0 %v2105
      %v2107 = vpop.xlane.xlu0 %2106
      %v2108 = vsel %vm1460, %v2050, 0.0
      %2109 = vadd.xlane.f32.xlu0 %v2108
      %v2110 = vpop.xlane.xlu0 %2109
      %v2111 = vsel %vm1460, %v2051, 0.0
      %2112 = vadd.xlane.f32.xlu0 %v2111
      %v2113 = vpop.xlane.xlu0 %2112
      %v2114 = vsel %vm1460, %v2052, 0.0
      %2115 = vadd.xlane.f32.xlu0 %v2114
      %v2116 = vpop.xlane.xlu0 %2115
      %v2117 = vsel %vm1460, %v2053, 0.0
      %2118 = vadd.xlane.f32.xlu0 %v2117
      %v2119 = vpop.xlane.xlu0 %2118
      %v2120 = vsel %vm1460, %v2054, 0.0
      %2121 = vadd.xlane.f32.xlu0 %v2120
      %v2122 = vpop.xlane.xlu0 %2121
      %v2123 = vsel %vm1460, %v2055, 0.0
      %2124 = vadd.xlane.f32.xlu0 %v2123
      %v2125 = vpop.xlane.xlu0 %2124
      %v2126 = vsel %vm1460, %v2056, 0.0
      %2127 = vadd.xlane.f32.xlu0 %v2126
      %v2128 = vpop.xlane.xlu0 %2127
      %v2129 = vsel %vm1460, %v2057, 0.0
      %2130 = vadd.xlane.f32.xlu0 %v2129
      %v2131 = vpop.xlane.xlu0 %2130
      %v2132 = vsel %vm1460, %v2058, 0.0
      %2133 = vadd.xlane.f32.xlu0 %v2132
      %v2134 = vpop.xlane.xlu0 %2133
      %v2135 = vsel %vm1460, %v2059, 0.0
      %2136 = vadd.xlane.f32.xlu0 %v2135
      %v2137 = vpop.xlane.xlu0 %2136
      %v2138 = vsel %vm1460, %v2060, 0.0
      %2139 = vadd.xlane.f32.xlu0 %v2138
      %v2140 = vpop.xlane.xlu0 %2139
      %v2141 = vsel %vm1460, %v2061, 0.0
      %2142 = vadd.xlane.f32.xlu0 %v2141
      %v2143 = vpop.xlane.xlu0 %2142
      %v2144 = vsel %vm1460, %v2062, 0.0
      %2145 = vadd.xlane.f32.xlu0 %v2144
      %v2146 = vpop.xlane.xlu0 %2145
      %v2147 = vsel %vm1460, %v2063, 0.0
      %2148 = vadd.xlane.f32.xlu0 %v2147
      %v2149 = vpop.xlane.xlu0 %2148
      %v2150 = vsel %vm1460, %v2064, 0.0
      %2151 = vadd.xlane.f32.xlu0 %v2150
      %v2152 = vpop.xlane.xlu0 %2151
      %v2153 = vsel %vm1460, %v2065, 0.0
      %2154 = vadd.xlane.f32.xlu0 %v2153
      %v2155 = vpop.xlane.xlu0 %2154
      %v2156 = vsel %vm1460, %v2066, 0.0
      %2157 = vadd.xlane.f32.xlu0 %v2156
      %v2158 = vpop.xlane.xlu0 %2157
      %v2159 = vsel %vm1460, %v2067, 0.0
      %2160 = vadd.xlane.f32.xlu0 %v2159
      %v2161 = vpop.xlane.xlu0 %2160
      %v2162 = vsel %vm1460, %v2068, 0.0
      %2163 = vadd.xlane.f32.xlu0 %v2162
      %v2164 = vpop.xlane.xlu0 %2163
      %v2165 = vsel %vm1460, %v2069, 0.0
      %2166 = vadd.xlane.f32.xlu0 %v2165
      %v2167 = vpop.xlane.xlu0 %2166
      %v2168 = vsel %vm1460, %v2070, 0.0
      %2169 = vadd.xlane.f32.xlu0 %v2168
      %v2170 = vpop.xlane.xlu0 %2169
      %v2171 = vsel %vm1460, %v2071, 0.0
      %2172 = vadd.xlane.f32.xlu0 %v2171
      %v2173 = vpop.xlane.xlu0 %2172
      %v2174 = vsel %vm1460, %v2072, 0.0
      %2175 = vadd.xlane.f32.xlu0 %v2174
      %v2176 = vpop.xlane.xlu0 %2175
      %v2177 = vsel %vm1460, %v2073, 0.0
      %2178 = vadd.xlane.f32.xlu0 %v2177
      %v2179 = vpop.xlane.xlu0 %2178
      %v2180 = vsel %vm1460, %v2074, 0.0
      %2181 = vadd.xlane.f32.xlu0 %v2180
      %v2182 = vpop.xlane.xlu0 %2181
      %v2183 = vsub.f32 %v1857, %v2077
      %v2184 = vsub.f32 %v1858, %v2080
      %v2185 = vsub.f32 %v1859, %v2083
      %v2186 = vsub.f32 %v1860, %v2086
      %v2187 = vsub.f32 %v1861, %v2089
      %v2188 = vsub.f32 %v1862, %v2092
      %v2189 = vsub.f32 %v1863, %v2095
      %v2190 = vsub.f32 %v1864, %v2098
      %v2191 = vsub.f32 %v1865, %v2101
      %v2192 = vsub.f32 %v1866, %v2104
      %v2193 = vsub.f32 %v1867, %v2107
      %v2194 = vsub.f32 %v1868, %v2110
      %v2195 = vsub.f32 %v1869, %v2113
      %v2196 = vsub.f32 %v1870, %v2116
      %v2197 = vsub.f32 %v1871, %v2119
      %v2198 = vsub.f32 %v1872, %v2122
      %v2199 = vsub.f32 %v1873, %v2125
      %v2200 = vsub.f32 %v1874, %v2128
      %v2201 = vsub.f32 %v1875, %v2131
      %v2202 = vsub.f32 %v1876, %v2134
      %v2203 = vsub.f32 %v1877, %v2137
      %v2204 = vsub.f32 %v1878, %v2140
      %v2205 = vsub.f32 %v1879, %v2143
      %v2206 = vsub.f32 %v1880, %v2146
      %v2207 = vsub.f32 %v1881, %v2149
      %v2208 = vsub.f32 %v1882, %v2152
      %v2209 = vsub.f32 %v1883, %v2155
      %v2210 = vsub.f32 %v1884, %v2158
      %v2211 = vsub.f32 %v1885, %v2161
      %v2212 = vsub.f32 %v1886, %v2164
      %v2213 = vsub.f32 %v1887, %v2167
      %v2214 = vsub.f32 %v1888, %v2170
      %v2215 = vsub.f32 %v1889, %v2173
      %v2216 = vsub.f32 %v1890, %v2176
      %v2217 = vsub.f32 %v1891, %v2179
      %v2218 = vsub.f32 %v1892, %v2182
      %vm2219 = vcmask 7168
      %v2220 = vsel %vm2219, %v2183, 0.0
      %v2221 = vsel %vm2219, %v2184, 0.0
      %v2222 = vadd.f32 %v2220, %v2221
      %v2223 = vsel %vm2219, %v2185, 0.0
      %v2224 = vadd.f32 %v2222, %v2223
      %v2225 = vsel %vm2219, %v2186, 0.0
      %v2226 = vadd.f32 %v2224, %v2225
      %v2227 = vsel %vm2219, %v2187, 0.0
      %v2228 = vadd.f32 %v2226, %v2227
      %v2229 = vsel %vm2219, %v2188, 0.0
      %v2230 = vadd.f32 %v2228, %v2229
      %v2231 = vsel %vm2219, %v2189, 0.0
      %v2232 = vadd.f32 %v2230, %v2231
      %v2233 = vsel %vm2219, %v2190, 0.0
      %v2234 = vadd.f32 %v2232, %v2233
      %v2235 = vsel %vm2219, %v2191, 0.0
      %v2236 = vadd.f32 %v2234, %v2235
      %v2237 = vsel %vm2219, %v2192, 0.0
      %v2238 = vadd.f32 %v2236, %v2237
      %v2239 = vsel %vm2219, %v2193, 0.0
      %v2240 = vadd.f32 %v2238, %v2239
      %v2241 = vsel %vm2219, %v2194, 0.0
      %v2242 = vadd.f32 %v2240, %v2241
      %v2243 = vsel %vm2219, %v2195, 0.0
      %v2244 = vadd.f32 %v2242, %v2243
      %v2245 = vsel %vm2219, %v2196, 0.0
      %v2246 = vadd.f32 %v2244, %v2245
      %v2247 = vsel %vm2219, %v2197, 0.0
      %v2248 = vadd.f32 %v2246, %v2247
      %v2249 = vsel %vm2219, %v2198, 0.0
      %v2250 = vadd.f32 %v2248, %v2249
      %v2251 = vsel %vm2219, %v2199, 0.0
      %v2252 = vadd.f32 %v2250, %v2251
      %v2253 = vsel %vm2219, %v2200, 0.0
      %v2254 = vadd.f32 %v2252, %v2253
      %v2255 = vsel %vm2219, %v2201, 0.0
      %v2256 = vadd.f32 %v2254, %v2255
      %v2257 = vsel %vm2219, %v2202, 0.0
      %v2258 = vadd.f32 %v2256, %v2257
      %v2259 = vsel %vm2219, %v2203, 0.0
      %v2260 = vadd.f32 %v2258, %v2259
      %v2261 = vsel %vm2219, %v2204, 0.0
      %v2262 = vadd.f32 %v2260, %v2261
      %v2263 = vsel %vm2219, %v2205, 0.0
      %v2264 = vadd.f32 %v2262, %v2263
      %v2265 = vsel %vm2219, %v2206, 0.0
      %v2266 = vadd.f32 %v2264, %v2265
      %v2267 = vsel %vm2219, %v2207, 0.0
      %v2268 = vadd.f32 %v2266, %v2267
      %v2269 = vsel %vm2219, %v2208, 0.0
      %v2270 = vadd.f32 %v2268, %v2269
      %v2271 = vsel %vm2219, %v2209, 0.0
      %v2272 = vadd.f32 %v2270, %v2271
      %v2273 = vsel %vm2219, %v2210, 0.0
      %v2274 = vadd.f32 %v2272, %v2273
      %v2275 = vsel %vm2219, %v2211, 0.0
      %v2276 = vadd.f32 %v2274, %v2275
      %v2277 = vsel %vm2219, %v2212, 0.0
      %v2278 = vadd.f32 %v2276, %v2277
      %v2279 = vsel %vm2219, %v2213, 0.0
      %v2280 = vadd.f32 %v2278, %v2279
      %v2281 = vsel %vm2219, %v2214, 0.0
      %v2282 = vadd.f32 %v2280, %v2281
      %v2283 = vsel %vm2219, %v2215, 0.0
      %v2284 = vadd.f32 %v2282, %v2283
      %v2285 = vsel %vm2219, %v2216, 0.0
      %v2286 = vadd.f32 %v2284, %v2285
      %v2287 = vsel %vm2219, %v2217, 0.0
      %v2288 = vadd.f32 %v2286, %v2287
      %v2289 = vsel %vm2219, %v2218, 0.0
      %v2290 = vadd.f32 %v2288, %v2289
      %2291 = vadd.xlane.f32.xlu0 %v2290
      %v2292 = vpop.xlane.xlu0 %2291
      %v2293 = vrot.slane %v2292, 4
      %v2294 = vadd.f32 %v2292, %v2293
      %v2295 = vrot.slane %v2294, 2
      %v2296 = vadd.f32 %v2294, %v2295
      %v2297 = vrot.slane %v2296, 1
      %v2298 = vadd.f32 %v2296, %v2297
      %s2299 = vtos %v2298
      %v2300 = vld [vmem:[%s263] sm:$0x1]
      %v2301 = vstv %s2299
      %v2302 = vadd.f32 %v2300, %v2301
      %2303 = vst [vmem:[%s263] sm:$0x1] %v2302
      %p2304 = scmp.lt.s32.totalorder %s19, 3
      %s2305 = scalar_select %p2304, %s19, 3
      %s2306 = scalar_lea.vmem %s4, %s2305
      // Predicated region
      $region41: #{_forward_impl.5} parent=35 // pred_check
        %p2307 = pneg %p146
      $region42: #{_forward_impl.5} parent=35 // pred_check_branch
        %2309 = sbr.rel (%p2307) target = $region44
      $region43: #{_forward_impl.5} parent=35 // pred_region
        _
      $region44: #{_forward_impl.5} parent=35 // pred_fallthru
        _
    $region36: #{_forward_impl.5} parent=5 // pred_fallthru
      _
    %p2310 = scmp.le.s32.totalorder 2, %s10
    // Predicated region
    $region45: #{_forward_impl.5} parent=5 // pred_check
      %p2311 = pneg %p2310
    $region46: #{_forward_impl.5} parent=5 // pred_check_branch
      %2313 = sbr.rel (%p2311) target = $region48
    $region47: #{_forward_impl.5} parent=5 // pred_region
      %s2314 = ssub.s32 %s10, 2
      // Predicated region
      $region49: #{_forward_impl.5} parent=47 // pred_check
        %p2315 = pneg %p152
      $region50: #{_forward_impl.5} parent=47 // pred_check_branch
        %2317 = sbr.rel (%p2315) target = $region52
      $region51: #{_forward_impl.5} parent=47 // pred_region
        %p2318 = scmp.lt.s32.totalorder %s21, 3
        %s2319 = scalar_select %p2318, %s21, 3
        %s2320 = scalar_lea.vmem %s4, %s2319
      $region52: #{_forward_impl.5} parent=47 // pred_fallthru
        _
    $region48: #{_forward_impl.5} parent=5 // pred_fallthru
      _
  $region6: #{_forward_impl.5} parent=0 // loop_footer
    %s14 = sadd.s32 1, %s10
  $region7: #{_forward_impl.5} parent=0 // loop_footer_branch
    %9 = sbr.rel target = $region3
  $region8: #{_forward_impl.5} parent=0 // loop_exit
    _

</llo_original>
